<compile_context>
chip_gen: v7x
topology: tpu7x:2x2x1
jax: 0.10.0
libtpu: 0.0.40
codegen_flags: <defaults>
</compile_context>

<pallas_src>
import functools

import jax
import jax.numpy as jnp
from jax.experimental import pallas as pl
from jax.experimental.pallas import tpu as pltpu


# ----------------------------- config (small, lane-dense) -----------------------------
BATCH = 2
SEQ = 8                 # sublane-aligned
HIDDEN = 128            # lane-dense last dim (multiple of 128)
NUM_HEADS = 4
HEAD_DIM = HIDDEN // NUM_HEADS
INTERMEDIATE = 256      # lane-dense
NUM_LAYERS = 2
LN_EPS = 1e-5


def _quick_gelu(x):
    # CLIP default hidden_act == "quick_gelu": x * sigmoid(1.702 * x)
    return x * jax.nn.sigmoid(1.702 * x)


def _layer_norm(x, w, b, eps):
    mean = jnp.mean(x, axis=-1, keepdims=True)
    var = jnp.mean(jnp.square(x - mean), axis=-1, keepdims=True)
    return (x - mean) * jax.lax.rsqrt(var + eps) * w + b


# ----------------------------- Pallas kernel: fused encoder -----------------------------
def clip_encoder_kernel(
    x_ref, mask_ref,
    ln1_w_ref, ln1_b_ref,
    wq_ref, bq_ref, wk_ref, bk_ref, wv_ref, bv_ref,
    wo_ref, bo_ref,
    ln2_w_ref, ln2_b_ref,
    w1_ref, b1_ref, w2_ref, b2_ref,
    out_ref,
    h_scratch,
    *, num_heads, eps,
):
    layer = pl.program_id(0)
    b = pl.program_id(1)

    # Load this batch element's input into the persistent scratch on layer 0.
    @pl.when(layer == 0)
    def _():
        h_scratch[b] = x_ref[b].astype(jnp.float32)

    x = h_scratch[b]                         # (S, D) f32, carried across layers
    seq, dim = x.shape

    # ---- LN1 + multi-head self-attention --------------------------------
    residual = x
    h = _layer_norm(x, ln1_w_ref[...], ln1_b_ref[...], eps)          # (S, D)
    hb = jnp.broadcast_to(h, (num_heads, seq, dim))                  # (H, S, D)

    # Per-head projections as batched matmuls (scale already folded into wq/bq).
    q = jnp.einsum("hsd,hdk->hsk", hb, wq_ref[...],
                   preferred_element_type=jnp.float32) + bq_ref[...]  # (H, S, hd)
    k = jnp.einsum("hsd,hdk->hsk", hb, wk_ref[...],
                   preferred_element_type=jnp.float32) + bk_ref[...]
    v = jnp.einsum("hsd,hdk->hsk", hb, wv_ref[...],
                   preferred_element_type=jnp.float32) + bv_ref[...]

    scores = jnp.einsum("hqd,hkd->hqk", q, k,
                        preferred_element_type=jnp.float32)          # (H, S, S)
    scores = scores + mask_ref[b]                                    # combined additive mask
    scores = scores - jnp.max(scores, axis=-1, keepdims=True)
    p = jnp.exp(scores)
    p = p * pl.reciprocal(jnp.sum(p, axis=-1, keepdims=True), approx=True)

    ctx = jnp.einsum("hqk,hkd->hqd", p, v,
                     preferred_element_type=jnp.float32)             # (H, S, hd)
    proj = jnp.einsum("hqd,hde->hqe", ctx, wo_ref[...],
                      preferred_element_type=jnp.float32)            # (H, S, D)
    attn_out = jnp.sum(proj, axis=0) + bo_ref[...]                   # (S, D)

    h = residual + attn_out

    # ---- LN2 + MLP --------------------------------------------------------
    residual = h
    h2 = _layer_norm(h, ln2_w_ref[...], ln2_b_ref[...], eps)
    h2 = jnp.dot(h2, w1_ref[...], preferred_element_type=jnp.float32) + b1_ref[...]
    h2 = _quick_gelu(h2)
    h2 = jnp.dot(h2, w2_ref[...], preferred_element_type=jnp.float32) + b2_ref[...]

    new_h = residual + h2
    h_scratch[b] = new_h

    @pl.when(layer == pl.num_programs(0) - 1)
    def _():
        out_ref[b] = new_h.astype(out_ref.dtype)


# ----------------------------- wrapper -----------------------------
def clip_encoder(inputs_embeds, attention_mask, causal_attention_mask, params,
                 *, num_heads=NUM_HEADS, eps=LN_EPS):
    """CLIPEncoder.forward (return_dict=False, no output_attentions/hidden_states)."""
    B, S, D = inputs_embeds.shape
    L = params["wq"].shape[0]
    H = num_heads
    hd = D // H
    I = params["w1"].shape[-1]

    # Fold the two additive masks into one (B, S, S) slab (done once, wrapper side).
    mask = jnp.zeros((B, 1, S, S), inputs_embeds.dtype)
    if attention_mask is not None:
        mask = mask + attention_mask
    if causal_attention_mask is not None:
        mask = mask + causal_attention_mask
    mask = mask.reshape(B, S, S)

    # Fold 1/sqrt(head_dim) into wq/bq; pre-split weights per head so the kernel
    # never reshapes across the lane dimension.
    scale = hd ** -0.5
    wq_r = (params["wq"] * scale).reshape(L, D, H, hd).transpose(0, 2, 1, 3)   # (L,H,D,hd)
    wk_r = params["wk"].reshape(L, D, H, hd).transpose(0, 2, 1, 3)
    wv_r = params["wv"].reshape(L, D, H, hd).transpose(0, 2, 1, 3)
    bq_r = (params["bq"] * scale).reshape(L, H, 1, hd)
    bk_r = params["bk"].reshape(L, H, 1, hd)
    bv_r = params["bv"].reshape(L, H, 1, hd)
    wo_r = params["wo"].reshape(L, H, hd, D)                                   # (L,H,hd,D)
    bo_r = params["bo"].reshape(L, 1, D)
    ln1_w = params["ln1_w"].reshape(L, 1, D)
    ln1_b = params["ln1_b"].reshape(L, 1, D)
    ln2_w = params["ln2_w"].reshape(L, 1, D)
    ln2_b = params["ln2_b"].reshape(L, 1, D)
    w1 = params["w1"]
    b1 = params["b1"].reshape(L, 1, I)
    w2 = params["w2"]
    b2 = params["b2"].reshape(L, 1, D)

    # Per-layer weight blocks: indexed by the layer coordinate only, so each
    # layer's weights are DMA'd exactly once for the whole batch.
    def layer_spec(shape):
        nd = len(shape)
        return pl.BlockSpec((None,) + shape, lambda l, b, _n=nd: (l,) + (0,) * _n)

    in_specs = [
        pl.BlockSpec((B, S, D), lambda l, b: (0, 0, 0)),   # x: resident, fetched once
        pl.BlockSpec((B, S, S), lambda l, b: (0, 0, 0)),   # combined additive mask: resident
        layer_spec((1, D)), layer_spec((1, D)),            # ln1 w/b
        layer_spec((H, D, hd)), layer_spec((H, 1, hd)),    # wq/bq
        layer_spec((H, D, hd)), layer_spec((H, 1, hd)),    # wk/bk
        layer_spec((H, D, hd)), layer_spec((H, 1, hd)),    # wv/bv
        layer_spec((H, hd, D)), layer_spec((1, D)),        # wo/bo
        layer_spec((1, D)), layer_spec((1, D)),            # ln2 w/b
        layer_spec((D, I)), layer_spec((1, I)),            # fc1
        layer_spec((I, D)), layer_spec((1, D)),            # fc2
    ]

    kernel = functools.partial(clip_encoder_kernel, num_heads=H, eps=eps)

    return pl.pallas_call(
        kernel,
        out_shape=jax.ShapeDtypeStruct((B, S, D), inputs_embeds.dtype),
        grid_spec=pltpu.PrefetchScalarGridSpec(
            num_scalar_prefetch=0,
            grid=(L, B),                          # layer outermost -> weights fetched once/layer
            in_specs=in_specs,
            # Constant block index: output stays resident in VMEM, written back once.
            out_specs=pl.BlockSpec((B, S, D), lambda l, b: (0, 0, 0)),
            scratch_shapes=[pltpu.VMEM((B, S, D), jnp.float32)],   # resident hidden states
        ),
        compiler_params=pltpu.CompilerParams(
            dimension_semantics=("arbitrary", "arbitrary"),
        ),
    )(
        inputs_embeds, mask,
        ln1_w, ln1_b,
        wq_r, bq_r, wk_r, bk_r, wv_r, bv_r,
        wo_r, bo_r,
        ln2_w, ln2_b,
        w1, b1, w2, b2,
    )


# ----------------------------- pure-JAX reference -----------------------------
def _ref_encoder(x, amask, cmask, p, *, num_heads=NUM_HEADS, eps=LN_EPS):
    B, S, D = x.shape
    hd = D // num_heads
    scale = hd ** -0.5
    L = p["wq"].shape[0]
    for i in range(L):
        residual = x
        h = _layer_norm(x, p["ln1_w"][i], p["ln1_b"][i], eps)
        q = (h @ p["wq"][i] + p["bq"][i]) * scale
        k = h @ p["wk"][i] + p["bk"][i]
        v = h @ p["wv"][i] + p["bv"][i]
        q = q.reshape(B, S, num_heads, hd).transpose(0, 2, 1, 3)
        k = k.reshape(B, S, num_heads, hd).transpose(0, 2, 1, 3)
        v = v.reshape(B, S, num_heads, hd).transpose(0, 2, 1, 3)
        scores = jnp.einsum("bhqd,bhkd->bhqk", q, k) + cmask + amask
        probs = jax.nn.softmax(scores, axis=-1)
        attn = jnp.einsum("bhqk,bhkd->bhqd", probs, v)
        attn = attn.transpose(0, 2, 1, 3).reshape(B, S, D)
        attn = attn @ p["wo"][i] + p["bo"][i]
        x = residual + attn
        residual = x
        h2 = _layer_norm(x, p["ln2_w"][i], p["ln2_b"][i], eps)
        h2 = _quick_gelu(h2 @ p["w1"][i] + p["b1"][i])
        h2 = h2 @ p["w2"][i] + p["b2"][i]
        x = residual + h2
    return x


# ----------------------------- parameter init (layer-stacked) -----------------------------
def init_params(key, num_layers=NUM_LAYERS, hidden=HIDDEN, intermediate=INTERMEDIATE):
    L, D, I = num_layers, hidden, intermediate
    ks = jax.random.split(key, 16)
    s = 0.02
    n = lambda k, shape: s * jax.random.normal(k, shape, jnp.float32)
    return {
        "ln1_w": 1.0 + 0.1 * jax.random.normal(ks[0], (L, D), jnp.float32),
        "ln1_b": 0.1 * jax.random.normal(ks[1], (L, D), jnp.float32),
        "wq": n(ks[2], (L, D, D)), "bq": n(ks[3], (L, D)),
        "wk": n(ks[4], (L, D, D)), "bk": n(ks[5], (L, D)),
        "wv": n(ks[6], (L, D, D)), "bv": n(ks[7], (L, D)),
        "wo": n(ks[8], (L, D, D)), "bo": n(ks[9], (L, D)),
        "ln2_w": 1.0 + 0.1 * jax.random.normal(ks[10], (L, D), jnp.float32),
        "ln2_b": 0.1 * jax.random.normal(ks[11], (L, D), jnp.float32),
        "w1": n(ks[12], (L, D, I)), "b1": n(ks[13], (L, I)),
        "w2": n(ks[14], (L, I, D)), "b2": n(ks[15], (L, D)),
    }


if __name__ == "__main__":
    key = jax.random.PRNGKey(0)
    k_x, k_p = jax.random.split(key)

    inputs_embeds = jax.random.normal(k_x, (BATCH, SEQ, HIDDEN), jnp.float32)

    # Additive masks, shape (B, 1, S, S): attention_mask = all-visible (zeros),
    # causal_attention_mask = upper-triangular large-negative (CLIP text-model style).
    neg = jnp.asarray(-1e9, jnp.float32)
    causal = jnp.where(
        jnp.arange(SEQ)[:, None] >= jnp.arange(SEQ)[None, :], 0.0, neg
    ).astype(jnp.float32)
    causal_mask = jnp.broadcast_to(causal, (BATCH, 1, SEQ, SEQ))
    attention_mask = jnp.zeros((BATCH, 1, SEQ, SEQ), jnp.float32)

    params = init_params(k_p)

    out = clip_encoder(inputs_embeds, attention_mask, causal_mask, params)
    out = jax.block_until_ready(out)

    ref = _ref_encoder(inputs_embeds, attention_mask, causal_mask, params)
    ref = jax.block_until_ready(ref)

    assert out.shape == (BATCH, SEQ, HIDDEN)
    if not jnp.allclose(out, ref, atol=2e-3, rtol=2e-3):
        max_err = float(jnp.max(jnp.abs(out - ref)))
        raise AssertionError(
            f"Pallas CLIPEncoder output mismatch vs JAX reference (max abs err={max_err})"
        )

    print("KERNEL_OK")
</pallas_src>

<mosaic_0001>
module attributes {stable_mosaic.version = 11 : i64} {
  func.func @clip_encoder_kernel(%arg0: i32, %arg1: i32, %arg2: memref<2x8x128xf32, #tpu.memory_space<vmem>>, %arg3: memref<2x8x8xf32, #tpu.memory_space<vmem>>, %arg4: memref<1x1x128xf32, #tpu.memory_space<vmem>>, %arg5: memref<1x1x128xf32, #tpu.memory_space<vmem>>, %arg6: memref<1x4x128x32xf32, #tpu.memory_space<vmem>>, %arg7: memref<1x4x1x32xf32, #tpu.memory_space<vmem>>, %arg8: memref<1x4x128x32xf32, #tpu.memory_space<vmem>>, %arg9: memref<1x4x1x32xf32, #tpu.memory_space<vmem>>, %arg10: memref<1x4x128x32xf32, #tpu.memory_space<vmem>>, %arg11: memref<1x4x1x32xf32, #tpu.memory_space<vmem>>, %arg12: memref<1x4x32x128xf32, #tpu.memory_space<vmem>>, %arg13: memref<1x1x128xf32, #tpu.memory_space<vmem>>, %arg14: memref<1x1x128xf32, #tpu.memory_space<vmem>>, %arg15: memref<1x1x128xf32, #tpu.memory_space<vmem>>, %arg16: memref<1x128x256xf32, #tpu.memory_space<vmem>>, %arg17: memref<1x1x256xf32, #tpu.memory_space<vmem>>, %arg18: memref<1x256x128xf32, #tpu.memory_space<vmem>>, %arg19: memref<1x1x128xf32, #tpu.memory_space<vmem>>, %arg20: memref<2x8x128xf32, #tpu.memory_space<vmem>>, %arg21: memref<2x8x128xf32, #tpu.memory_space<vmem>>) attributes {dimension_semantics = [#tpu.dimension_semantics<arbitrary>, #tpu.dimension_semantics<arbitrary>], iteration_bounds = array<i64: 2, 2>, scalar_prefetch = 0 : i64, scratch_operands = 1 : i64, tpu.core_type = #tpu.core_type<tc>, window_params = [{pipeline_mode = #tpu.pipeline_mode<synchronous>, transform_indices = @transform_0, window_bounds = array<i64: 2, 8, 128>}, {pipeline_mode = #tpu.pipeline_mode<synchronous>, transform_indices = @transform_1, window_bounds = array<i64: 2, 8, 8>}, {transform_indices = @transform_2, window_bounds = array<i64: 1, 1, 128>}, {transform_indices = @transform_3, window_bounds = array<i64: 1, 1, 128>}, {transform_indices = @transform_4, window_bounds = array<i64: 1, 4, 128, 32>}, {transform_indices = @transform_5, window_bounds = array<i64: 1, 4, 1, 32>}, {transform_indices = @transform_6, window_bounds = array<i64: 1, 4, 128, 32>}, {transform_indices = @transform_7, window_bounds = array<i64: 1, 4, 1, 32>}, {transform_indices = @transform_8, window_bounds = array<i64: 1, 4, 128, 32>}, {transform_indices = @transform_9, window_bounds = array<i64: 1, 4, 1, 32>}, {transform_indices = @transform_10, window_bounds = array<i64: 1, 4, 32, 128>}, {transform_indices = @transform_11, window_bounds = array<i64: 1, 1, 128>}, {transform_indices = @transform_12, window_bounds = array<i64: 1, 1, 128>}, {transform_indices = @transform_13, window_bounds = array<i64: 1, 1, 128>}, {transform_indices = @transform_14, window_bounds = array<i64: 1, 128, 256>}, {transform_indices = @transform_15, window_bounds = array<i64: 1, 1, 256>}, {transform_indices = @transform_16, window_bounds = array<i64: 1, 256, 128>}, {transform_indices = @transform_17, window_bounds = array<i64: 1, 1, 128>}, {pipeline_mode = #tpu.pipeline_mode<synchronous>, transform_indices = @transform_18, window_bounds = array<i64: 2, 8, 128>}]} {
    %c0_i32 = arith.constant 0 : i32
    %0 = arith.cmpi eq, %arg0, %c0_i32 : i32
    %1 = arith.extui %0 : i1 to i32
    %c0_i32_0 = arith.constant 0 : i32
    %2 = arith.cmpi ne, %1, %c0_i32_0 : i32
    scf.if %2 {
      %138 = arith.index_cast %arg1 : i32 to index
      %c0_84 = arith.constant 0 : index
      %c0_85 = arith.constant 0 : index
      %139 = vector.load %arg2[%138, %c0_84, %c0_85] : memref<2x8x128xf32, #tpu.memory_space<vmem>>, vector<1x8x128xf32>
      %140 = vector.shape_cast %139 : vector<1x8x128xf32> to vector<8x128xf32>
      %141 = arith.index_cast %arg1 : i32 to index
      %c0_86 = arith.constant 0 : index
      %c0_87 = arith.constant 0 : index
      %142 = vector.load %arg21[%141, %c0_86, %c0_87] : memref<2x8x128xf32, #tpu.memory_space<vmem>>, vector<1x8x128xf32>
      %143 = vector.shape_cast %142 : vector<1x8x128xf32> to vector<8x128xf32>
      %144 = vector.shape_cast %140 : vector<8x128xf32> to vector<1x8x128xf32>
      tpu.vector_store %arg21[%141, %c0_86, %c0_87], %144 {strides = array<i32>} : memref<2x8x128xf32, #tpu.memory_space<vmem>>, vector<1x8x128xf32>,
    } else {
    }
    %3 = arith.index_cast %arg1 : i32 to index
    %c0 = arith.constant 0 : index
    %c0_1 = arith.constant 0 : index
    %4 = vector.load %arg21[%3, %c0, %c0_1] : memref<2x8x128xf32, #tpu.memory_space<vmem>>, vector<1x8x128xf32>
    %5 = vector.shape_cast %4 : vector<1x8x128xf32> to vector<8x128xf32>
    %c0_2 = arith.constant 0 : index
    %c0_3 = arith.constant 0 : index
    %c0_4 = arith.constant 0 : index
    %6 = vector.load %arg4[%c0_2, %c0_3, %c0_4] : memref<1x1x128xf32, #tpu.memory_space<vmem>>, vector<1x1x128xf32>
    %7 = vector.shape_cast %6 : vector<1x1x128xf32> to vector<1x128xf32>
    %c0_5 = arith.constant 0 : index
    %c0_6 = arith.constant 0 : index
    %c0_7 = arith.constant 0 : index
    %8 = vector.load %arg5[%c0_5, %c0_6, %c0_7] : memref<1x1x128xf32, #tpu.memory_space<vmem>>, vector<1x1x128xf32>
    %9 = vector.shape_cast %8 : vector<1x1x128xf32> to vector<1x128xf32>
    %cst = arith.constant dense<0.000000e+00> : vector<8xf32>
    %10 = vector.multi_reduction <add>, %5, %cst [1] : vector<8x128xf32> to vector<8xf32>
    %11 = vector.shape_cast %10 : vector<8xf32> to vector<8x1xf32>
    %cst_8 = arith.constant 1.280000e+02 : f32
    %12 = vector.broadcast %cst_8 : f32 to vector<8x1xf32>
    %13 = arith.divf %11, %12 : vector<8x1xf32>
    %14 = vector.broadcast %13 : vector<8x1xf32> to vector<8x128xf32>
    %15 = arith.subf %5, %14 : vector<8x128xf32>
    %16 = arith.mulf %15, %15 : vector<8x128xf32>
    %cst_9 = arith.constant dense<0.000000e+00> : vector<8xf32>
    %17 = vector.multi_reduction <add>, %16, %cst_9 [1] : vector<8x128xf32> to vector<8xf32>
    %18 = vector.shape_cast %17 : vector<8xf32> to vector<8x1xf32>
    %cst_10 = arith.constant 1.280000e+02 : f32
    %19 = vector.broadcast %cst_10 : f32 to vector<8x1xf32>
    %20 = arith.divf %18, %19 : vector<8x1xf32>
    %21 = vector.broadcast %13 : vector<8x1xf32> to vector<8x128xf32>
    %22 = arith.subf %5, %21 : vector<8x128xf32>
    %cst_11 = arith.constant 9.99999974E-6 : f32
    %23 = vector.broadcast %cst_11 : f32 to vector<8x1xf32>
    %24 = arith.addf %20, %23 : vector<8x1xf32>
    %25 = math.rsqrt %24 : vector<8x1xf32>
    %26 = vector.broadcast %25 : vector<8x1xf32> to vector<8x128xf32>
    %27 = arith.mulf %22, %26 : vector<8x128xf32>
    %28 = vector.broadcast %7 : vector<1x128xf32> to vector<8x128xf32>
    %29 = arith.mulf %27, %28 : vector<8x128xf32>
    %30 = vector.broadcast %9 : vector<1x128xf32> to vector<8x128xf32>
    %31 = arith.addf %29, %30 : vector<8x128xf32>
    %32 = vector.shape_cast %31 : vector<8x128xf32> to vector<1x8x128xf32>
    %33 = vector.broadcast %32 : vector<1x8x128xf32> to vector<4x8x128xf32>
    %c0_12 = arith.constant 0 : index
    %c0_13 = arith.constant 0 : index
    %c0_14 = arith.constant 0 : index
    %c0_15 = arith.constant 0 : index
    %34 = vector.load %arg6[%c0_12, %c0_13, %c0_14, %c0_15] : memref<1x4x128x32xf32, #tpu.memory_space<vmem>>, vector<1x4x128x32xf32>
    %35 = vector.shape_cast %34 : vector<1x4x128x32xf32> to vector<4x128x32xf32>
    "tpu.trace_start"() <{level = 10 : i32, message = "hsd,hdk->hsk"}> : () -> ()
    %cst_16 = arith.constant dense<0.000000e+00> : vector<4x8x32xf32>
    %36 = tpu.matmul %33, %35, %cst_16 {dimension_numbers = #tpu.dot_dimension_numbers<[2], [1], [1], [2], [0, 0, 0, 1, 1, 2], [0], [0]>} : vector<4x8x128xf32>, vector<4x128x32xf32>, vector<4x8x32xf32> -> vector<4x8x32xf32>
    "tpu.trace_stop"() : () -> ()
    %c0_17 = arith.constant 0 : index
    %c0_18 = arith.constant 0 : index
    %c0_19 = arith.constant 0 : index
    %c0_20 = arith.constant 0 : index
    %37 = vector.load %arg7[%c0_17, %c0_18, %c0_19, %c0_20] : memref<1x4x1x32xf32, #tpu.memory_space<vmem>>, vector<1x4x1x32xf32>
    %38 = vector.shape_cast %37 : vector<1x4x1x32xf32> to vector<4x1x32xf32>
    %39 = vector.broadcast %38 : vector<4x1x32xf32> to vector<4x8x32xf32>
    %40 = arith.addf %36, %39 : vector<4x8x32xf32>
    %c0_21 = arith.constant 0 : index
    %c0_22 = arith.constant 0 : index
    %c0_23 = arith.constant 0 : index
    %c0_24 = arith.constant 0 : index
    %41 = vector.load %arg8[%c0_21, %c0_22, %c0_23, %c0_24] : memref<1x4x128x32xf32, #tpu.memory_space<vmem>>, vector<1x4x128x32xf32>
    %42 = vector.shape_cast %41 : vector<1x4x128x32xf32> to vector<4x128x32xf32>
    "tpu.trace_start"() <{level = 10 : i32, message = "hsd,hdk->hsk"}> : () -> ()
    %cst_25 = arith.constant dense<0.000000e+00> : vector<4x8x32xf32>
    %43 = tpu.matmul %33, %42, %cst_25 {dimension_numbers = #tpu.dot_dimension_numbers<[2], [1], [1], [2], [0, 0, 0, 1, 1, 2], [0], [0]>} : vector<4x8x128xf32>, vector<4x128x32xf32>, vector<4x8x32xf32> -> vector<4x8x32xf32>
    "tpu.trace_stop"() : () -> ()
    %c0_26 = arith.constant 0 : index
    %c0_27 = arith.constant 0 : index
    %c0_28 = arith.constant 0 : index
    %c0_29 = arith.constant 0 : index
    %44 = vector.load %arg9[%c0_26, %c0_27, %c0_28, %c0_29] : memref<1x4x1x32xf32, #tpu.memory_space<vmem>>, vector<1x4x1x32xf32>
    %45 = vector.shape_cast %44 : vector<1x4x1x32xf32> to vector<4x1x32xf32>
    %46 = vector.broadcast %45 : vector<4x1x32xf32> to vector<4x8x32xf32>
    %47 = arith.addf %43, %46 : vector<4x8x32xf32>
    %c0_30 = arith.constant 0 : index
    %c0_31 = arith.constant 0 : index
    %c0_32 = arith.constant 0 : index
    %c0_33 = arith.constant 0 : index
    %48 = vector.load %arg10[%c0_30, %c0_31, %c0_32, %c0_33] : memref<1x4x128x32xf32, #tpu.memory_space<vmem>>, vector<1x4x128x32xf32>
    %49 = vector.shape_cast %48 : vector<1x4x128x32xf32> to vector<4x128x32xf32>
    "tpu.trace_start"() <{level = 10 : i32, message = "hsd,hdk->hsk"}> : () -> ()
    %cst_34 = arith.constant dense<0.000000e+00> : vector<4x8x32xf32>
    %50 = tpu.matmul %33, %49, %cst_34 {dimension_numbers = #tpu.dot_dimension_numbers<[2], [1], [1], [2], [0, 0, 0, 1, 1, 2], [0], [0]>} : vector<4x8x128xf32>, vector<4x128x32xf32>, vector<4x8x32xf32> -> vector<4x8x32xf32>
    "tpu.trace_stop"() : () -> ()
    %c0_35 = arith.constant 0 : index
    %c0_36 = arith.constant 0 : index
    %c0_37 = arith.constant 0 : index
    %c0_38 = arith.constant 0 : index
    %51 = vector.load %arg11[%c0_35, %c0_36, %c0_37, %c0_38] : memref<1x4x1x32xf32, #tpu.memory_space<vmem>>, vector<1x4x1x32xf32>
    %52 = vector.shape_cast %51 : vector<1x4x1x32xf32> to vector<4x1x32xf32>
    %53 = vector.broadcast %52 : vector<4x1x32xf32> to vector<4x8x32xf32>
    %54 = arith.addf %50, %53 : vector<4x8x32xf32>
    "tpu.trace_start"() <{level = 10 : i32, message = "hqd,hkd->hqk"}> : () -> ()
    %cst_39 = arith.constant dense<0.000000e+00> : vector<4x8x8xf32>
    %55 = tpu.matmul %40, %47, %cst_39 {dimension_numbers = #tpu.dot_dimension_numbers<[2], [2], [1], [1], [0, 0, 0, 1, 1, 1], [0], [0]>} : vector<4x8x32xf32>, vector<4x8x32xf32>, vector<4x8x8xf32> -> vector<4x8x8xf32>
    "tpu.trace_stop"() : () -> ()
    %56 = arith.index_cast %arg1 : i32 to index
    %c0_40 = arith.constant 0 : index
    %c0_41 = arith.constant 0 : index
    %57 = vector.load %arg3[%56, %c0_40, %c0_41] : memref<2x8x8xf32, #tpu.memory_space<vmem>>, vector<1x8x8xf32>
    %58 = vector.shape_cast %57 : vector<1x8x8xf32> to vector<8x8xf32>
    %59 = vector.shape_cast %58 : vector<8x8xf32> to vector<1x8x8xf32>
    %60 = vector.broadcast %59 : vector<1x8x8xf32> to vector<4x8x8xf32>
    %61 = arith.addf %55, %60 : vector<4x8x8xf32>
    %cst_42 = arith.constant dense<0xFF800000> : vector<4x8xf32>
    %62 = vector.multi_reduction <maximumf>, %61, %cst_42 [2] : vector<4x8x8xf32> to vector<4x8xf32>
    %63 = vector.shape_cast %62 : vector<4x8xf32> to vector<4x8x1xf32>
    %64 = vector.broadcast %63 : vector<4x8x1xf32> to vector<4x8x8xf32>
    %65 = arith.subf %61, %64 : vector<4x8x8xf32>
    %66 = math.exp %65 : vector<4x8x8xf32>
    %cst_43 = arith.constant dense<0.000000e+00> : vector<4x8xf32>
    %67 = vector.multi_reduction <add>, %66, %cst_43 [2] : vector<4x8x8xf32> to vector<4x8xf32>
    %68 = vector.shape_cast %67 : vector<4x8xf32> to vector<4x8x1xf32>
    %69 = tpu.reciprocal %68 {approx = true} : vector<4x8x1xf32> -> vector<4x8x1xf32>
    %70 = vector.broadcast %69 : vector<4x8x1xf32> to vector<4x8x8xf32>
    %71 = arith.mulf %66, %70 : vector<4x8x8xf32>
    "tpu.trace_start"() <{level = 10 : i32, message = "hqk,hkd->hqd"}> : () -> ()
    %cst_44 = arith.constant dense<0.000000e+00> : vector<4x8x32xf32>
    %72 = tpu.matmul %71, %54, %cst_44 {dimension_numbers = #tpu.dot_dimension_numbers<[2], [1], [1], [2], [0, 0, 0, 1, 1, 2], [0], [0]>} : vector<4x8x8xf32>, vector<4x8x32xf32>, vector<4x8x32xf32> -> vector<4x8x32xf32>
    "tpu.trace_stop"() : () -> ()
    %c0_45 = arith.constant 0 : index
    %c0_46 = arith.constant 0 : index
    %c0_47 = arith.constant 0 : index
    %c0_48 = arith.constant 0 : index
    %73 = vector.load %arg12[%c0_45, %c0_46, %c0_47, %c0_48] : memref<1x4x32x128xf32, #tpu.memory_space<vmem>>, vector<1x4x32x128xf32>
    %74 = vector.shape_cast %73 : vector<1x4x32x128xf32> to vector<4x32x128xf32>
    "tpu.trace_start"() <{level = 10 : i32, message = "hqd,hde->hqe"}> : () -> ()
    %cst_49 = arith.constant dense<0.000000e+00> : vector<4x8x128xf32>
    %75 = tpu.matmul %72, %74, %cst_49 {dimension_numbers = #tpu.dot_dimension_numbers<[2], [1], [1], [2], [0, 0, 0, 1, 1, 2], [0], [0]>} : vector<4x8x32xf32>, vector<4x32x128xf32>, vector<4x8x128xf32> -> vector<4x8x128xf32>
    "tpu.trace_stop"() : () -> ()
    %cst_50 = arith.constant dense<0.000000e+00> : vector<8x128xf32>
    %76 = vector.multi_reduction <add>, %75, %cst_50 [0] : vector<4x8x128xf32> to vector<8x128xf32>
    %c0_51 = arith.constant 0 : index
    %c0_52 = arith.constant 0 : index
    %c0_53 = arith.constant 0 : index
    %77 = vector.load %arg13[%c0_51, %c0_52, %c0_53] : memref<1x1x128xf32, #tpu.memory_space<vmem>>, vector<1x1x128xf32>
    %78 = vector.shape_cast %77 : vector<1x1x128xf32> to vector<1x128xf32>
    %79 = vector.broadcast %78 : vector<1x128xf32> to vector<8x128xf32>
    %80 = arith.addf %76, %79 : vector<8x128xf32>
    %81 = arith.addf %5, %80 : vector<8x128xf32>
    %c0_54 = arith.constant 0 : index
    %c0_55 = arith.constant 0 : index
    %c0_56 = arith.constant 0 : index
    %82 = vector.load %arg14[%c0_54, %c0_55, %c0_56] : memref<1x1x128xf32, #tpu.memory_space<vmem>>, vector<1x1x128xf32>
    %83 = vector.shape_cast %82 : vector<1x1x128xf32> to vector<1x128xf32>
    %c0_57 = arith.constant 0 : index
    %c0_58 = arith.constant 0 : index
    %c0_59 = arith.constant 0 : index
    %84 = vector.load %arg15[%c0_57, %c0_58, %c0_59] : memref<1x1x128xf32, #tpu.memory_space<vmem>>, vector<1x1x128xf32>
    %85 = vector.shape_cast %84 : vector<1x1x128xf32> to vector<1x128xf32>
    %cst_60 = arith.constant dense<0.000000e+00> : vector<8xf32>
    %86 = vector.multi_reduction <add>, %81, %cst_60 [1] : vector<8x128xf32> to vector<8xf32>
    %87 = vector.shape_cast %86 : vector<8xf32> to vector<8x1xf32>
    %cst_61 = arith.constant 1.280000e+02 : f32
    %88 = vector.broadcast %cst_61 : f32 to vector<8x1xf32>
    %89 = arith.divf %87, %88 : vector<8x1xf32>
    %90 = vector.broadcast %89 : vector<8x1xf32> to vector<8x128xf32>
    %91 = arith.subf %81, %90 : vector<8x128xf32>
    %92 = arith.mulf %91, %91 : vector<8x128xf32>
    %cst_62 = arith.constant dense<0.000000e+00> : vector<8xf32>
    %93 = vector.multi_reduction <add>, %92, %cst_62 [1] : vector<8x128xf32> to vector<8xf32>
    %94 = vector.shape_cast %93 : vector<8xf32> to vector<8x1xf32>
    %cst_63 = arith.constant 1.280000e+02 : f32
    %95 = vector.broadcast %cst_63 : f32 to vector<8x1xf32>
    %96 = arith.divf %94, %95 : vector<8x1xf32>
    %97 = vector.broadcast %89 : vector<8x1xf32> to vector<8x128xf32>
    %98 = arith.subf %81, %97 : vector<8x128xf32>
    %cst_64 = arith.constant 9.99999974E-6 : f32
    %99 = vector.broadcast %cst_64 : f32 to vector<8x1xf32>
    %100 = arith.addf %96, %99 : vector<8x1xf32>
    %101 = math.rsqrt %100 : vector<8x1xf32>
    %102 = vector.broadcast %101 : vector<8x1xf32> to vector<8x128xf32>
    %103 = arith.mulf %98, %102 : vector<8x128xf32>
    %104 = vector.broadcast %83 : vector<1x128xf32> to vector<8x128xf32>
    %105 = arith.mulf %103, %104 : vector<8x128xf32>
    %106 = vector.broadcast %85 : vector<1x128xf32> to vector<8x128xf32>
    %107 = arith.addf %105, %106 : vector<8x128xf32>
    %c0_65 = arith.constant 0 : index
    %c0_66 = arith.constant 0 : index
    %c0_67 = arith.constant 0 : index
    %108 = vector.load %arg16[%c0_65, %c0_66, %c0_67] : memref<1x128x256xf32, #tpu.memory_space<vmem>>, vector<1x128x256xf32>
    %109 = vector.shape_cast %108 : vector<1x128x256xf32> to vector<128x256xf32>
    %cst_68 = arith.constant dense<0.000000e+00> : vector<8x256xf32>
    %110 = tpu.matmul %107, %109, %cst_68 {dimension_numbers = #tpu.dot_dimension_numbers<[1], [0], [0], [1], [0, 0, 1, 1], [], []>} : vector<8x128xf32>, vector<128x256xf32>, vector<8x256xf32> -> vector<8x256xf32>
    %c0_69 = arith.constant 0 : index
    %c0_70 = arith.constant 0 : index
    %c0_71 = arith.constant 0 : index
    %111 = vector.load %arg17[%c0_69, %c0_70, %c0_71] : memref<1x1x256xf32, #tpu.memory_space<vmem>>, vector<1x1x256xf32>
    %112 = vector.shape_cast %111 : vector<1x1x256xf32> to vector<1x256xf32>
    %113 = vector.broadcast %112 : vector<1x256xf32> to vector<8x256xf32>
    %114 = arith.addf %110, %113 : vector<8x256xf32>
    %cst_72 = arith.constant 1.702000e+00 : f32
    %115 = vector.broadcast %cst_72 : f32 to vector<8x256xf32>
    %116 = arith.mulf %115, %114 : vector<8x256xf32>
    %117 = arith.negf %116 : vector<8x256xf32>
    %118 = math.exp %117 : vector<8x256xf32>
    %cst_73 = arith.constant 1.000000e+00 : f32
    %119 = vector.broadcast %cst_73 : f32 to vector<8x256xf32>
    %120 = arith.addf %119, %118 : vector<8x256xf32>
    %121 = arith.divf %119, %120 : vector<8x256xf32>
    %122 = arith.mulf %114, %121 : vector<8x256xf32>
    %c0_74 = arith.constant 0 : index
    %c0_75 = arith.constant 0 : index
    %c0_76 = arith.constant 0 : index
    %123 = vector.load %arg18[%c0_74, %c0_75, %c0_76] : memref<1x256x128xf32, #tpu.memory_space<vmem>>, vector<1x256x128xf32>
    %124 = vector.shape_cast %123 : vector<1x256x128xf32> to vector<256x128xf32>
    %cst_77 = arith.constant dense<0.000000e+00> : vector<8x128xf32>
    %125 = tpu.matmul %122, %124, %cst_77 {dimension_numbers = #tpu.dot_dimension_numbers<[1], [0], [0], [1], [0, 0, 1, 1], [], []>} : vector<8x256xf32>, vector<256x128xf32>, vector<8x128xf32> -> vector<8x128xf32>
    %c0_78 = arith.constant 0 : index
    %c0_79 = arith.constant 0 : index
    %c0_80 = arith.constant 0 : index
    %126 = vector.load %arg19[%c0_78, %c0_79, %c0_80] : memref<1x1x128xf32, #tpu.memory_space<vmem>>, vector<1x1x128xf32>
    %127 = vector.shape_cast %126 : vector<1x1x128xf32> to vector<1x128xf32>
    %128 = vector.broadcast %127 : vector<1x128xf32> to vector<8x128xf32>
    %129 = arith.addf %125, %128 : vector<8x128xf32>
    %130 = arith.addf %81, %129 : vector<8x128xf32>
    %131 = arith.index_cast %arg1 : i32 to index
    %c0_81 = arith.constant 0 : index
    %c0_82 = arith.constant 0 : index
    %132 = vector.load %arg21[%131, %c0_81, %c0_82] : memref<2x8x128xf32, #tpu.memory_space<vmem>>, vector<1x8x128xf32>
    %133 = vector.shape_cast %132 : vector<1x8x128xf32> to vector<8x128xf32>
    %134 = vector.shape_cast %130 : vector<8x128xf32> to vector<1x8x128xf32>
    tpu.vector_store %arg21[%131, %c0_81, %c0_82], %134 {strides = array<i32>} : memref<2x8x128xf32, #tpu.memory_space<vmem>>, vector<1x8x128xf32>,
    %c1_i32 = arith.constant 1 : i32
    %135 = arith.cmpi eq, %arg0, %c1_i32 : i32
    %136 = arith.extui %135 : i1 to i32
    %c0_i32_83 = arith.constant 0 : i32
    %137 = arith.cmpi ne, %136, %c0_i32_83 : i32
    scf.if %137 {
      %138 = arith.index_cast %arg1 : i32 to index
      %c0_84 = arith.constant 0 : index
      %c0_85 = arith.constant 0 : index
      %139 = vector.load %arg20[%138, %c0_84, %c0_85] : memref<2x8x128xf32, #tpu.memory_space<vmem>>, vector<1x8x128xf32>
      %140 = vector.shape_cast %139 : vector<1x8x128xf32> to vector<8x128xf32>
      %141 = vector.shape_cast %130 : vector<8x128xf32> to vector<1x8x128xf32>
      tpu.vector_store %arg20[%138, %c0_84, %c0_85], %141 {strides = array<i32>} : memref<2x8x128xf32, #tpu.memory_space<vmem>>, vector<1x8x128xf32>,
    } else {
    }
    return
  }
  func.func @transform_0(%arg0: i32, %arg1: i32) -> (i32, i32, i32) {
    %c0_i32 = arith.constant 0 : i32
    %c0_i32_0 = arith.constant 0 : i32
    %c0_i32_1 = arith.constant 0 : i32
    %c0_i32_2 = arith.constant 0 : i32
    return %c0_i32, %c0_i32_0, %c0_i32_1 : i32, i32, i32
  }
  func.func @transform_1(%arg0: i32, %arg1: i32) -> (i32, i32, i32) {
    %c0_i32 = arith.constant 0 : i32
    %c0_i32_0 = arith.constant 0 : i32
    %c0_i32_1 = arith.constant 0 : i32
    %c0_i32_2 = arith.constant 0 : i32
    return %c0_i32, %c0_i32_0, %c0_i32_1 : i32, i32, i32
  }
  func.func @transform_2(%arg0: i32, %arg1: i32) -> (i32, i32, i32) {
    %c0_i32 = arith.constant 0 : i32
    %c0_i32_0 = arith.constant 0 : i32
    %c0_i32_1 = arith.constant 0 : i32
    return %arg0, %c0_i32, %c0_i32_0 : i32, i32, i32
  }
  func.func @transform_3(%arg0: i32, %arg1: i32) -> (i32, i32, i32) {
    %c0_i32 = arith.constant 0 : i32
    %c0_i32_0 = arith.constant 0 : i32
    %c0_i32_1 = arith.constant 0 : i32
    return %arg0, %c0_i32, %c0_i32_0 : i32, i32, i32
  }
  func.func @transform_4(%arg0: i32, %arg1: i32) -> (i32, i32, i32, i32) {
    %c0_i32 = arith.constant 0 : i32
    %c0_i32_0 = arith.constant 0 : i32
    %c0_i32_1 = arith.constant 0 : i32
    %c0_i32_2 = arith.constant 0 : i32
    return %arg0, %c0_i32, %c0_i32_0, %c0_i32_1 : i32, i32, i32, i32
  }
  func.func @transform_5(%arg0: i32, %arg1: i32) -> (i32, i32, i32, i32) {
    %c0_i32 = arith.constant 0 : i32
    %c0_i32_0 = arith.constant 0 : i32
    %c0_i32_1 = arith.constant 0 : i32
    %c0_i32_2 = arith.constant 0 : i32
    return %arg0, %c0_i32, %c0_i32_0, %c0_i32_1 : i32, i32, i32, i32
  }
  func.func @transform_6(%arg0: i32, %arg1: i32) -> (i32, i32, i32, i32) {
    %c0_i32 = arith.constant 0 : i32
    %c0_i32_0 = arith.constant 0 : i32
    %c0_i32_1 = arith.constant 0 : i32
    %c0_i32_2 = arith.constant 0 : i32
    return %arg0, %c0_i32, %c0_i32_0, %c0_i32_1 : i32, i32, i32, i32
  }
  func.func @transform_7(%arg0: i32, %arg1: i32) -> (i32, i32, i32, i32) {
    %c0_i32 = arith.constant 0 : i32
    %c0_i32_0 = arith.constant 0 : i32
    %c0_i32_1 = arith.constant 0 : i32
    %c0_i32_2 = arith.constant 0 : i32
    return %arg0, %c0_i32, %c0_i32_0, %c0_i32_1 : i32, i32, i32, i32
  }
  func.func @transform_8(%arg0: i32, %arg1: i32) -> (i32, i32, i32, i32) {
    %c0_i32 = arith.constant 0 : i32
    %c0_i32_0 = arith.constant 0 : i32
    %c0_i32_1 = arith.constant 0 : i32
    %c0_i32_2 = arith.constant 0 : i32
    return %arg0, %c0_i32, %c0_i32_0, %c0_i32_1 : i32, i32, i32, i32
  }
  func.func @transform_9(%arg0: i32, %arg1: i32) -> (i32, i32, i32, i32) {
    %c0_i32 = arith.constant 0 : i32
    %c0_i32_0 = arith.constant 0 : i32
    %c0_i32_1 = arith.constant 0 : i32
    %c0_i32_2 = arith.constant 0 : i32
    return %arg0, %c0_i32, %c0_i32_0, %c0_i32_1 : i32, i32, i32, i32
  }
  func.func @transform_10(%arg0: i32, %arg1: i32) -> (i32, i32, i32, i32) {
    %c0_i32 = arith.constant 0 : i32
    %c0_i32_0 = arith.constant 0 : i32
    %c0_i32_1 = arith.constant 0 : i32
    %c0_i32_2 = arith.constant 0 : i32
    return %arg0, %c0_i32, %c0_i32_0, %c0_i32_1 : i32, i32, i32, i32
  }
  func.func @transform_11(%arg0: i32, %arg1: i32) -> (i32, i32, i32) {
    %c0_i32 = arith.constant 0 : i32
    %c0_i32_0 = arith.constant 0 : i32
    %c0_i32_1 = arith.constant 0 : i32
    return %arg0, %c0_i32, %c0_i32_0 : i32, i32, i32
  }
  func.func @transform_12(%arg0: i32, %arg1: i32) -> (i32, i32, i32) {
    %c0_i32 = arith.constant 0 : i32
    %c0_i32_0 = arith.constant 0 : i32
    %c0_i32_1 = arith.constant 0 : i32
    return %arg0, %c0_i32, %c0_i32_0 : i32, i32, i32
  }
  func.func @transform_13(%arg0: i32, %arg1: i32) -> (i32, i32, i32) {
    %c0_i32 = arith.constant 0 : i32
    %c0_i32_0 = arith.constant 0 : i32
    %c0_i32_1 = arith.constant 0 : i32
    return %arg0, %c0_i32, %c0_i32_0 : i32, i32, i32
  }
  func.func @transform_14(%arg0: i32, %arg1: i32) -> (i32, i32, i32) {
    %c0_i32 = arith.constant 0 : i32
    %c0_i32_0 = arith.constant 0 : i32
    %c0_i32_1 = arith.constant 0 : i32
    return %arg0, %c0_i32, %c0_i32_0 : i32, i32, i32
  }
  func.func @transform_15(%arg0: i32, %arg1: i32) -> (i32, i32, i32) {
    %c0_i32 = arith.constant 0 : i32
    %c0_i32_0 = arith.constant 0 : i32
    %c0_i32_1 = arith.constant 0 : i32
    return %arg0, %c0_i32, %c0_i32_0 : i32, i32, i32
  }
  func.func @transform_16(%arg0: i32, %arg1: i32) -> (i32, i32, i32) {
    %c0_i32 = arith.constant 0 : i32
    %c0_i32_0 = arith.constant 0 : i32
    %c0_i32_1 = arith.constant 0 : i32
    return %arg0, %c0_i32, %c0_i32_0 : i32, i32, i32
  }
  func.func @transform_17(%arg0: i32, %arg1: i32) -> (i32, i32, i32) {
    %c0_i32 = arith.constant 0 : i32
    %c0_i32_0 = arith.constant 0 : i32
    %c0_i32_1 = arith.constant 0 : i32
    return %arg0, %c0_i32, %c0_i32_0 : i32, i32, i32
  }
  func.func @transform_18(%arg0: i32, %arg1: i32) -> (i32, i32, i32) {
    %c0_i32 = arith.constant 0 : i32
    %c0_i32_0 = arith.constant 0 : i32
    %c0_i32_1 = arith.constant 0 : i32
    %c0_i32_2 = arith.constant 0 : i32
    return %c0_i32, %c0_i32_0, %c0_i32_1 : i32, i32, i32
  }
}

</mosaic_0001>

<llo_original>
// kernel: tpu_custom_call.1
$region0: #{tpu_custom_call.1}
  #allocation0 [shape = 'u32[]', space=smem, size = 0x4, offset = 0x4, fixed_abs, tag = 'smem constant byte address 0x4 - core index']
  #allocation1 [shape = 'u32[144,128]{1,0:T(1,128)}', space=vmem, size = 0x12000, scoped, tag = 'internal scratch']
  #allocation2 [shape = 'f32[2,8,128]{2,1,0:T(8,128)}', space=vmem, size = 0x2000, scoped, tag = 'scratch operand']
  %s0 = inlined_call_operand.vmem [shape: f32[2,8,128], index: 0, kind: input, shape index: {}]
  %s1 = inlined_call_operand.vmem [shape: f32[2,8,8], index: 1, kind: input, shape index: {}]
  %s2 = inlined_call_operand.vmem [shape: f32[2,1,128], index: 2, kind: input, shape index: {}]
  %s3 = inlined_call_operand.vmem [shape: f32[2,1,128], index: 3, kind: input, shape index: {}]
  %s4 = inlined_call_operand.vmem [shape: f32[2,4,128,32], index: 4, kind: input, shape index: {}]
  %s5 = inlined_call_operand.vmem [shape: f32[2,4,1,32], index: 5, kind: input, shape index: {}]
  %s6 = inlined_call_operand.vmem [shape: f32[2,4,128,32], index: 6, kind: input, shape index: {}]
  %s7 = inlined_call_operand.vmem [shape: f32[2,4,1,32], index: 7, kind: input, shape index: {}]
  %s8 = inlined_call_operand.vmem [shape: f32[2,4,128,32], index: 8, kind: input, shape index: {}]
  %s9 = inlined_call_operand.vmem [shape: f32[2,4,1,32], index: 9, kind: input, shape index: {}]
  %s10 = inlined_call_operand.vmem [shape: f32[2,4,32,128], index: 10, kind: input, shape index: {}]
  %s11 = inlined_call_operand.vmem [shape: f32[2,1,128], index: 11, kind: input, shape index: {}]
  %s12 = inlined_call_operand.vmem [shape: f32[2,1,128], index: 12, kind: input, shape index: {}]
  %s13 = inlined_call_operand.vmem [shape: f32[2,1,128], index: 13, kind: input, shape index: {}]
  %s14 = inlined_call_operand.vmem [shape: f32[2,128,256], index: 14, kind: input, shape index: {}]
  %s15 = inlined_call_operand.vmem [shape: f32[2,1,256], index: 15, kind: input, shape index: {}]
  %s16 = inlined_call_operand.vmem [shape: f32[2,256,128], index: 16, kind: input, shape index: {}]
  %s17 = inlined_call_operand.vmem [shape: f32[2,1,128], index: 17, kind: input, shape index: {}]
  %s18 = inlined_call_operand.hbm [shape: f32[2,8,128], index: 18, kind: output, shape index: {}]
  %s19 = sld [smem:[#allocation0]]
  $region113: #{tpu_custom_call.1} parent=0
    _
  %s21 = ssub.s32 1, %s19
  %s22 = scalar_select 0, %s21, %s19
  $region1: #{tpu_custom_call.1} parent=0
    #allocation3 [shape = 'u8[8192]{0}', space=vmem, size = 0x2000, scoped, tag = 'output window, operand 0, single buffered']
    #allocation4 [shape = 's32[2]{0}', space=sflag, size = 0x8, scoped, tag = 'scoped memory for tpu_custom_call.1']
    %23 = vsyncpa [#allocation4], 0
    loop: start=0, step=1, limit=6
    $region2: #{tpu_custom_call.1} parent=1 // loop_pre_header
      _
    $region3: #{tpu_custom_call.1} parent=1 // loop_header
      %s25 = sphi 0, %s29
      %p26 = scmp.ge.s32.totalorder %s25, 6
      %s32 = sphi 0, %s44
      %s33 = sphi 0, %s40
      %s34 = sphi 0, %s32
      %s35 = sphi 0, %s33
      %s36 = sphi 0, %s34
      %s37 = sphi 0, %s35
      %s45 = sphi 0, %s45
      %s47 = sphi 0, %s45
      %s48 = sphi 0, %s47
      %s62 = sphi 0, %s48
      %s66 = sphi 0, %s66
      %s68 = sphi 0, %s66
      %s69 = sphi 0, %s68
      %s83 = sphi 0, %s69
      %s89 = sphi 0, %s91
      %s92 = sphi 0, %s89
      %s93 = sphi 0, %s92
      %s109 = sphi 0, %s93
      %s115 = sphi 0, %s117
      %s118 = sphi 0, %s115
      %s119 = sphi 0, %s118
      %s135 = sphi 0, %s119
      %s141 = sphi 0, %s143
      %s144 = sphi 0, %s141
      %s145 = sphi 0, %s144
      %s161 = sphi 0, %s145
      %s167 = sphi 0, %s169
      %s170 = sphi 0, %s167
      %s171 = sphi 0, %s170
      %s187 = sphi 0, %s171
      %s193 = sphi 0, %s195
      %s196 = sphi 0, %s193
      %s197 = sphi 0, %s196
      %s213 = sphi 0, %s197
      %s219 = sphi 0, %s221
      %s222 = sphi 0, %s219
      %s223 = sphi 0, %s222
      %s239 = sphi 0, %s223
      %s245 = sphi 0, %s247
      %s248 = sphi 0, %s245
      %s249 = sphi 0, %s248
      %s265 = sphi 0, %s249
      %s271 = sphi 0, %s273
      %s274 = sphi 0, %s271
      %s275 = sphi 0, %s274
      %s291 = sphi 0, %s275
      %s297 = sphi 0, %s299
      %s300 = sphi 0, %s297
      %s301 = sphi 0, %s300
      %s317 = sphi 0, %s301
      %s323 = sphi 0, %s325
      %s326 = sphi 0, %s323
      %s327 = sphi 0, %s326
      %s343 = sphi 0, %s327
      %s349 = sphi 0, %s351
      %s352 = sphi 0, %s349
      %s353 = sphi 0, %s352
      %s369 = sphi 0, %s353
      %s375 = sphi 0, %s377
      %s378 = sphi 0, %s375
      %s379 = sphi 0, %s378
      %s395 = sphi 0, %s379
      %s401 = sphi 0, %s403
      %s404 = sphi 0, %s401
      %s405 = sphi 0, %s404
      %s421 = sphi 0, %s405
      %s427 = sphi 0, %s429
      %s430 = sphi 0, %s427
      %s431 = sphi 0, %s430
      %s447 = sphi 0, %s431
      %s453 = sphi 0, %s455
      %s456 = sphi 0, %s453
      %s457 = sphi 0, %s456
      %s473 = sphi 0, %s457
      %s479 = sphi 0, %s481
      %s482 = sphi 0, %s479
      %s483 = sphi 0, %s482
      %s499 = sphi 0, %s483
      %s503 = sphi 0, %s503
      %s505 = sphi 0, %s503
      %s506 = sphi 0, %s505
      %s520 = sphi 0, %s506
    $region4: #{tpu_custom_call.1} parent=1 // loop_header_branch
      %28 = sbr.rel (%p26) target = $region8
    $region5: #{tpu_custom_call.1} parent=1 // loop_body
      %s30 = ssub.s32 %s25, 1
      %s31 = ssub.s32 %s25, 2
      %s38 = sadd.s32 1, %s33
      %p39 = scmp.ge.s32.totalorder %s38, 2
      %s40 = scalar_select %p39, 0, %s38
      %s41 = sadd.s32 1, %s32
      %s42 = scalar_select %p39, %s41, %s32
      %p43 = scmp.ge.s32.totalorder %s42, 2
      %s44 = scalar_select %p43, 0, %s42
      %s46 = sadd.s32 %s45, 1
      %p49 = scmp.eq.s32.totalorder %s25, 3
      %p50 = scmp.ne.s32.totalorder %s45, %s47
      %p51 = scmp.eq.s32.totalorder %s25, 0
      %p52 = por %p50, %p51
      %p53 = scmp.ne.s32.totalorder %s45, %s47
      %p54 = scmp.eq.s32.totalorder %s30, 3
      %p55 = por %p53, %p54
      %p56 = scmp.ne.s32.totalorder %s47, %s48
      %p57 = scmp.eq.s32.totalorder %s30, 0
      %p58 = por %p56, %p57
      %p59 = scmp.ne.s32.totalorder %s47, %s48
      %p60 = scmp.eq.s32.totalorder %s31, 3
      %p61 = por %p59, %p60
      %p63 = scmp.ne.s32.totalorder %s48, %s62
      %p64 = scmp.eq.s32.totalorder %s31, 0
      %p65 = por %p63, %p64
      %s67 = sadd.s32 %s66, 1
      %p70 = scmp.eq.s32.totalorder %s25, 3
      %p71 = scmp.ne.s32.totalorder %s66, %s68
      %p72 = scmp.eq.s32.totalorder %s25, 0
      %p73 = por %p71, %p72
      %p74 = scmp.ne.s32.totalorder %s66, %s68
      %p75 = scmp.eq.s32.totalorder %s30, 3
      %p76 = por %p74, %p75
      %p77 = scmp.ne.s32.totalorder %s68, %s69
      %p78 = scmp.eq.s32.totalorder %s30, 0
      %p79 = por %p77, %p78
      %p80 = scmp.ne.s32.totalorder %s68, %s69
      %p81 = scmp.eq.s32.totalorder %s31, 3
      %p82 = por %p80, %p81
      %p84 = scmp.ne.s32.totalorder %s69, %s83
      %p85 = scmp.eq.s32.totalorder %s31, 0
      %p86 = por %p84, %p85
      %s87 = ssub.s32 %s32, %s44
      %p88 = scmp.eq.s32.totalorder %s87, 0
      %s90 = sadd.s32 %s89, 1
      %s91 = scalar_select %p88, %s89, %s90
      %p94 = pneg %p88
      %p95 = scmp.eq.s32.totalorder %s25, 3
      %p96 = por %p94, %p95
      %p97 = scmp.ne.s32.totalorder %s89, %s92
      %p98 = scmp.eq.s32.totalorder %s25, 0
      %p99 = por %p97, %p98
      %p100 = scmp.ne.s32.totalorder %s89, %s92
      %p101 = scmp.eq.s32.totalorder %s30, 3
      %p102 = por %p100, %p101
      %p103 = scmp.ne.s32.totalorder %s92, %s93
      %p104 = scmp.eq.s32.totalorder %s30, 0
      %p105 = por %p103, %p104
      %p106 = scmp.ne.s32.totalorder %s92, %s93
      %p107 = scmp.eq.s32.totalorder %s31, 3
      %p108 = por %p106, %p107
      %p110 = scmp.ne.s32.totalorder %s93, %s109
      %p111 = scmp.eq.s32.totalorder %s31, 0
      %p112 = por %p110, %p111
      %s113 = ssub.s32 %s32, %s44
      %p114 = scmp.eq.s32.totalorder %s113, 0
      %s116 = sadd.s32 %s115, 1
      %s117 = scalar_select %p114, %s115, %s116
      %p120 = pneg %p114
      %p121 = scmp.eq.s32.totalorder %s25, 3
      %p122 = por %p120, %p121
      %p123 = scmp.ne.s32.totalorder %s115, %s118
      %p124 = scmp.eq.s32.totalorder %s25, 0
      %p125 = por %p123, %p124
      %p126 = scmp.ne.s32.totalorder %s115, %s118
      %p127 = scmp.eq.s32.totalorder %s30, 3
      %p128 = por %p126, %p127
      %p129 = scmp.ne.s32.totalorder %s118, %s119
      %p130 = scmp.eq.s32.totalorder %s30, 0
      %p131 = por %p129, %p130
      %p132 = scmp.ne.s32.totalorder %s118, %s119
      %p133 = scmp.eq.s32.totalorder %s31, 3
      %p134 = por %p132, %p133
      %p136 = scmp.ne.s32.totalorder %s119, %s135
      %p137 = scmp.eq.s32.totalorder %s31, 0
      %p138 = por %p136, %p137
      %s139 = ssub.s32 %s32, %s44
      %p140 = scmp.eq.s32.totalorder %s139, 0
      %s142 = sadd.s32 %s141, 1
      %s143 = scalar_select %p140, %s141, %s142
      %p146 = pneg %p140
      %p147 = scmp.eq.s32.totalorder %s25, 3
      %p148 = por %p146, %p147
      %p149 = scmp.ne.s32.totalorder %s141, %s144
      %p150 = scmp.eq.s32.totalorder %s25, 0
      %p151 = por %p149, %p150
      %p152 = scmp.ne.s32.totalorder %s141, %s144
      %p153 = scmp.eq.s32.totalorder %s30, 3
      %p154 = por %p152, %p153
      %p155 = scmp.ne.s32.totalorder %s144, %s145
      %p156 = scmp.eq.s32.totalorder %s30, 0
      %p157 = por %p155, %p156
      %p158 = scmp.ne.s32.totalorder %s144, %s145
      %p159 = scmp.eq.s32.totalorder %s31, 3
      %p160 = por %p158, %p159
      %p162 = scmp.ne.s32.totalorder %s145, %s161
      %p163 = scmp.eq.s32.totalorder %s31, 0
      %p164 = por %p162, %p163
      %s165 = ssub.s32 %s32, %s44
      %p166 = scmp.eq.s32.totalorder %s165, 0
      %s168 = sadd.s32 %s167, 1
      %s169 = scalar_select %p166, %s167, %s168
      %p172 = pneg %p166
      %p173 = scmp.eq.s32.totalorder %s25, 3
      %p174 = por %p172, %p173
      %p175 = scmp.ne.s32.totalorder %s167, %s170
      %p176 = scmp.eq.s32.totalorder %s25, 0
      %p177 = por %p175, %p176
      %p178 = scmp.ne.s32.totalorder %s167, %s170
      %p179 = scmp.eq.s32.totalorder %s30, 3
      %p180 = por %p178, %p179
      %p181 = scmp.ne.s32.totalorder %s170, %s171
      %p182 = scmp.eq.s32.totalorder %s30, 0
      %p183 = por %p181, %p182
      %p184 = scmp.ne.s32.totalorder %s170, %s171
      %p185 = scmp.eq.s32.totalorder %s31, 3
      %p186 = por %p184, %p185
      %p188 = scmp.ne.s32.totalorder %s171, %s187
      %p189 = scmp.eq.s32.totalorder %s31, 0
      %p190 = por %p188, %p189
      %s191 = ssub.s32 %s32, %s44
      %p192 = scmp.eq.s32.totalorder %s191, 0
      %s194 = sadd.s32 %s193, 1
      %s195 = scalar_select %p192, %s193, %s194
      %p198 = pneg %p192
      %p199 = scmp.eq.s32.totalorder %s25, 3
      %p200 = por %p198, %p199
      %p201 = scmp.ne.s32.totalorder %s193, %s196
      %p202 = scmp.eq.s32.totalorder %s25, 0
      %p203 = por %p201, %p202
      %p204 = scmp.ne.s32.totalorder %s193, %s196
      %p205 = scmp.eq.s32.totalorder %s30, 3
      %p206 = por %p204, %p205
      %p207 = scmp.ne.s32.totalorder %s196, %s197
      %p208 = scmp.eq.s32.totalorder %s30, 0
      %p209 = por %p207, %p208
      %p210 = scmp.ne.s32.totalorder %s196, %s197
      %p211 = scmp.eq.s32.totalorder %s31, 3
      %p212 = por %p210, %p211
      %p214 = scmp.ne.s32.totalorder %s197, %s213
      %p215 = scmp.eq.s32.totalorder %s31, 0
      %p216 = por %p214, %p215
      %s217 = ssub.s32 %s32, %s44
      %p218 = scmp.eq.s32.totalorder %s217, 0
      %s220 = sadd.s32 %s219, 1
      %s221 = scalar_select %p218, %s219, %s220
      %p224 = pneg %p218
      %p225 = scmp.eq.s32.totalorder %s25, 3
      %p226 = por %p224, %p225
      %p227 = scmp.ne.s32.totalorder %s219, %s222
      %p228 = scmp.eq.s32.totalorder %s25, 0
      %p229 = por %p227, %p228
      %p230 = scmp.ne.s32.totalorder %s219, %s222
      %p231 = scmp.eq.s32.totalorder %s30, 3
      %p232 = por %p230, %p231
      %p233 = scmp.ne.s32.totalorder %s222, %s223
      %p234 = scmp.eq.s32.totalorder %s30, 0
      %p235 = por %p233, %p234
      %p236 = scmp.ne.s32.totalorder %s222, %s223
      %p237 = scmp.eq.s32.totalorder %s31, 3
      %p238 = por %p236, %p237
      %p240 = scmp.ne.s32.totalorder %s223, %s239
      %p241 = scmp.eq.s32.totalorder %s31, 0
      %p242 = por %p240, %p241
      %s243 = ssub.s32 %s32, %s44
      %p244 = scmp.eq.s32.totalorder %s243, 0
      %s246 = sadd.s32 %s245, 1
      %s247 = scalar_select %p244, %s245, %s246
      %p250 = pneg %p244
      %p251 = scmp.eq.s32.totalorder %s25, 3
      %p252 = por %p250, %p251
      %p253 = scmp.ne.s32.totalorder %s245, %s248
      %p254 = scmp.eq.s32.totalorder %s25, 0
      %p255 = por %p253, %p254
      %p256 = scmp.ne.s32.totalorder %s245, %s248
      %p257 = scmp.eq.s32.totalorder %s30, 3
      %p258 = por %p256, %p257
      %p259 = scmp.ne.s32.totalorder %s248, %s249
      %p260 = scmp.eq.s32.totalorder %s30, 0
      %p261 = por %p259, %p260
      %p262 = scmp.ne.s32.totalorder %s248, %s249
      %p263 = scmp.eq.s32.totalorder %s31, 3
      %p264 = por %p262, %p263
      %p266 = scmp.ne.s32.totalorder %s249, %s265
      %p267 = scmp.eq.s32.totalorder %s31, 0
      %p268 = por %p266, %p267
      %s269 = ssub.s32 %s32, %s44
      %p270 = scmp.eq.s32.totalorder %s269, 0
      %s272 = sadd.s32 %s271, 1
      %s273 = scalar_select %p270, %s271, %s272
      %p276 = pneg %p270
      %p277 = scmp.eq.s32.totalorder %s25, 3
      %p278 = por %p276, %p277
      %p279 = scmp.ne.s32.totalorder %s271, %s274
      %p280 = scmp.eq.s32.totalorder %s25, 0
      %p281 = por %p279, %p280
      %p282 = scmp.ne.s32.totalorder %s271, %s274
      %p283 = scmp.eq.s32.totalorder %s30, 3
      %p284 = por %p282, %p283
      %p285 = scmp.ne.s32.totalorder %s274, %s275
      %p286 = scmp.eq.s32.totalorder %s30, 0
      %p287 = por %p285, %p286
      %p288 = scmp.ne.s32.totalorder %s274, %s275
      %p289 = scmp.eq.s32.totalorder %s31, 3
      %p290 = por %p288, %p289
      %p292 = scmp.ne.s32.totalorder %s275, %s291
      %p293 = scmp.eq.s32.totalorder %s31, 0
      %p294 = por %p292, %p293
      %s295 = ssub.s32 %s32, %s44
      %p296 = scmp.eq.s32.totalorder %s295, 0
      %s298 = sadd.s32 %s297, 1
      %s299 = scalar_select %p296, %s297, %s298
      %p302 = pneg %p296
      %p303 = scmp.eq.s32.totalorder %s25, 3
      %p304 = por %p302, %p303
      %p305 = scmp.ne.s32.totalorder %s297, %s300
      %p306 = scmp.eq.s32.totalorder %s25, 0
      %p307 = por %p305, %p306
      %p308 = scmp.ne.s32.totalorder %s297, %s300
      %p309 = scmp.eq.s32.totalorder %s30, 3
      %p310 = por %p308, %p309
      %p311 = scmp.ne.s32.totalorder %s300, %s301
      %p312 = scmp.eq.s32.totalorder %s30, 0
      %p313 = por %p311, %p312
      %p314 = scmp.ne.s32.totalorder %s300, %s301
      %p315 = scmp.eq.s32.totalorder %s31, 3
      %p316 = por %p314, %p315
      %p318 = scmp.ne.s32.totalorder %s301, %s317
      %p319 = scmp.eq.s32.totalorder %s31, 0
      %p320 = por %p318, %p319
      %s321 = ssub.s32 %s32, %s44
      %p322 = scmp.eq.s32.totalorder %s321, 0
      %s324 = sadd.s32 %s323, 1
      %s325 = scalar_select %p322, %s323, %s324
      %p328 = pneg %p322
      %p329 = scmp.eq.s32.totalorder %s25, 3
      %p330 = por %p328, %p329
      %p331 = scmp.ne.s32.totalorder %s323, %s326
      %p332 = scmp.eq.s32.totalorder %s25, 0
      %p333 = por %p331, %p332
      %p334 = scmp.ne.s32.totalorder %s323, %s326
      %p335 = scmp.eq.s32.totalorder %s30, 3
      %p336 = por %p334, %p335
      %p337 = scmp.ne.s32.totalorder %s326, %s327
      %p338 = scmp.eq.s32.totalorder %s30, 0
      %p339 = por %p337, %p338
      %p340 = scmp.ne.s32.totalorder %s326, %s327
      %p341 = scmp.eq.s32.totalorder %s31, 3
      %p342 = por %p340, %p341
      %p344 = scmp.ne.s32.totalorder %s327, %s343
      %p345 = scmp.eq.s32.totalorder %s31, 0
      %p346 = por %p344, %p345
      %s347 = ssub.s32 %s32, %s44
      %p348 = scmp.eq.s32.totalorder %s347, 0
      %s350 = sadd.s32 %s349, 1
      %s351 = scalar_select %p348, %s349, %s350
      %p354 = pneg %p348
      %p355 = scmp.eq.s32.totalorder %s25, 3
      %p356 = por %p354, %p355
      %p357 = scmp.ne.s32.totalorder %s349, %s352
      %p358 = scmp.eq.s32.totalorder %s25, 0
      %p359 = por %p357, %p358
      %p360 = scmp.ne.s32.totalorder %s349, %s352
      %p361 = scmp.eq.s32.totalorder %s30, 3
      %p362 = por %p360, %p361
      %p363 = scmp.ne.s32.totalorder %s352, %s353
      %p364 = scmp.eq.s32.totalorder %s30, 0
      %p365 = por %p363, %p364
      %p366 = scmp.ne.s32.totalorder %s352, %s353
      %p367 = scmp.eq.s32.totalorder %s31, 3
      %p368 = por %p366, %p367
      %p370 = scmp.ne.s32.totalorder %s353, %s369
      %p371 = scmp.eq.s32.totalorder %s31, 0
      %p372 = por %p370, %p371
      %s373 = ssub.s32 %s32, %s44
      %p374 = scmp.eq.s32.totalorder %s373, 0
      %s376 = sadd.s32 %s375, 1
      %s377 = scalar_select %p374, %s375, %s376
      %p380 = pneg %p374
      %p381 = scmp.eq.s32.totalorder %s25, 3
      %p382 = por %p380, %p381
      %p383 = scmp.ne.s32.totalorder %s375, %s378
      %p384 = scmp.eq.s32.totalorder %s25, 0
      %p385 = por %p383, %p384
      %p386 = scmp.ne.s32.totalorder %s375, %s378
      %p387 = scmp.eq.s32.totalorder %s30, 3
      %p388 = por %p386, %p387
      %p389 = scmp.ne.s32.totalorder %s378, %s379
      %p390 = scmp.eq.s32.totalorder %s30, 0
      %p391 = por %p389, %p390
      %p392 = scmp.ne.s32.totalorder %s378, %s379
      %p393 = scmp.eq.s32.totalorder %s31, 3
      %p394 = por %p392, %p393
      %p396 = scmp.ne.s32.totalorder %s379, %s395
      %p397 = scmp.eq.s32.totalorder %s31, 0
      %p398 = por %p396, %p397
      %s399 = ssub.s32 %s32, %s44
      %p400 = scmp.eq.s32.totalorder %s399, 0
      %s402 = sadd.s32 %s401, 1
      %s403 = scalar_select %p400, %s401, %s402
      %p406 = pneg %p400
      %p407 = scmp.eq.s32.totalorder %s25, 3
      %p408 = por %p406, %p407
      %p409 = scmp.ne.s32.totalorder %s401, %s404
      %p410 = scmp.eq.s32.totalorder %s25, 0
      %p411 = por %p409, %p410
      %p412 = scmp.ne.s32.totalorder %s401, %s404
      %p413 = scmp.eq.s32.totalorder %s30, 3
      %p414 = por %p412, %p413
      %p415 = scmp.ne.s32.totalorder %s404, %s405
      %p416 = scmp.eq.s32.totalorder %s30, 0
      %p417 = por %p415, %p416
      %p418 = scmp.ne.s32.totalorder %s404, %s405
      %p419 = scmp.eq.s32.totalorder %s31, 3
      %p420 = por %p418, %p419
      %p422 = scmp.ne.s32.totalorder %s405, %s421
      %p423 = scmp.eq.s32.totalorder %s31, 0
      %p424 = por %p422, %p423
      %s425 = ssub.s32 %s32, %s44
      %p426 = scmp.eq.s32.totalorder %s425, 0
      %s428 = sadd.s32 %s427, 1
      %s429 = scalar_select %p426, %s427, %s428
      %p432 = pneg %p426
      %p433 = scmp.eq.s32.totalorder %s25, 3
      %p434 = por %p432, %p433
      %p435 = scmp.ne.s32.totalorder %s427, %s430
      %p436 = scmp.eq.s32.totalorder %s25, 0
      %p437 = por %p435, %p436
      %p438 = scmp.ne.s32.totalorder %s427, %s430
      %p439 = scmp.eq.s32.totalorder %s30, 3
      %p440 = por %p438, %p439
      %p441 = scmp.ne.s32.totalorder %s430, %s431
      %p442 = scmp.eq.s32.totalorder %s30, 0
      %p443 = por %p441, %p442
      %p444 = scmp.ne.s32.totalorder %s430, %s431
      %p445 = scmp.eq.s32.totalorder %s31, 3
      %p446 = por %p444, %p445
      %p448 = scmp.ne.s32.totalorder %s431, %s447
      %p449 = scmp.eq.s32.totalorder %s31, 0
      %p450 = por %p448, %p449
      %s451 = ssub.s32 %s32, %s44
      %p452 = scmp.eq.s32.totalorder %s451, 0
      %s454 = sadd.s32 %s453, 1
      %s455 = scalar_select %p452, %s453, %s454
      %p458 = pneg %p452
      %p459 = scmp.eq.s32.totalorder %s25, 3
      %p460 = por %p458, %p459
      %p461 = scmp.ne.s32.totalorder %s453, %s456
      %p462 = scmp.eq.s32.totalorder %s25, 0
      %p463 = por %p461, %p462
      %p464 = scmp.ne.s32.totalorder %s453, %s456
      %p465 = scmp.eq.s32.totalorder %s30, 3
      %p466 = por %p464, %p465
      %p467 = scmp.ne.s32.totalorder %s456, %s457
      %p468 = scmp.eq.s32.totalorder %s30, 0
      %p469 = por %p467, %p468
      %p470 = scmp.ne.s32.totalorder %s456, %s457
      %p471 = scmp.eq.s32.totalorder %s31, 3
      %p472 = por %p470, %p471
      %p474 = scmp.ne.s32.totalorder %s457, %s473
      %p475 = scmp.eq.s32.totalorder %s31, 0
      %p476 = por %p474, %p475
      %s477 = ssub.s32 %s32, %s44
      %p478 = scmp.eq.s32.totalorder %s477, 0
      %s480 = sadd.s32 %s479, 1
      %s481 = scalar_select %p478, %s479, %s480
      %p484 = pneg %p478
      %p485 = scmp.eq.s32.totalorder %s25, 3
      %p486 = por %p484, %p485
      %p487 = scmp.ne.s32.totalorder %s479, %s482
      %p488 = scmp.eq.s32.totalorder %s25, 0
      %p489 = por %p487, %p488
      %p490 = scmp.ne.s32.totalorder %s479, %s482
      %p491 = scmp.eq.s32.totalorder %s30, 3
      %p492 = por %p490, %p491
      %p493 = scmp.ne.s32.totalorder %s482, %s483
      %p494 = scmp.eq.s32.totalorder %s30, 0
      %p495 = por %p493, %p494
      %p496 = scmp.ne.s32.totalorder %s482, %s483
      %p497 = scmp.eq.s32.totalorder %s31, 3
      %p498 = por %p496, %p497
      %p500 = scmp.ne.s32.totalorder %s483, %s499
      %p501 = scmp.eq.s32.totalorder %s31, 0
      %p502 = por %p500, %p501
      %s504 = sadd.s32 %s503, 1
      %p507 = scmp.eq.s32.totalorder %s25, 3
      %p508 = scmp.ne.s32.totalorder %s503, %s505
      %p509 = scmp.eq.s32.totalorder %s25, 0
      %p510 = por %p508, %p509
      %p511 = scmp.ne.s32.totalorder %s503, %s505
      %p512 = scmp.eq.s32.totalorder %s30, 3
      %p513 = por %p511, %p512
      %p514 = scmp.ne.s32.totalorder %s505, %s506
      %p515 = scmp.eq.s32.totalorder %s30, 0
      %p516 = por %p514, %p515
      %p517 = scmp.ne.s32.totalorder %s505, %s506
      %p518 = scmp.eq.s32.totalorder %s31, 3
      %p519 = por %p517, %p518
      %p521 = scmp.ne.s32.totalorder %s506, %s520
      %p522 = scmp.eq.s32.totalorder %s31, 0
      %p523 = por %p521, %p522
      %p524 = scmp.le.s32.totalorder 1, %s25
      %p525 = scmp.lt.s32.totalorder %s25, 5
      %p526 = pnand %p524, %p525
      %p527 = pneg %p526
      // Predicated region
      $region9: #{tpu_custom_call.1} parent=5 // pred_check
        _
      $region10: #{tpu_custom_call.1} parent=5 // pred_check_branch
        %529 = sbr.rel (%p526) target = $region12
      $region11: #{tpu_custom_call.1} parent=5 // pred_region
        %s530 = ssub.s32 %s25, 1
        // Predicated region
        $region13: #{tpu_custom_call.1} parent=11 // pred_check
          %p531 = pneg %p58
        $region14: #{tpu_custom_call.1} parent=11 // pred_check_branch
          %533 = sbr.rel (%p531) target = $region16
        $region15: #{tpu_custom_call.1} parent=11 // pred_region
          _
        $region16: #{tpu_custom_call.1} parent=11 // pred_fallthru
          _
        // Predicated region
        $region17: #{tpu_custom_call.1} parent=11 // pred_check
          %p534 = pneg %p79
        $region18: #{tpu_custom_call.1} parent=11 // pred_check_branch
          %536 = sbr.rel (%p534) target = $region20
        $region19: #{tpu_custom_call.1} parent=11 // pred_region
          _
        $region20: #{tpu_custom_call.1} parent=11 // pred_fallthru
          _
      $region12: #{tpu_custom_call.1} parent=5 // pred_fallthru
        _
      %p537 = scmp.lt.s32.totalorder %s25, 4
      // Predicated region
      $region21: #{tpu_custom_call.1} parent=5 // pred_check
        %p538 = pneg %p537
      $region22: #{tpu_custom_call.1} parent=5 // pred_check_branch
        %540 = sbr.rel (%p538) target = $region24
      $region23: #{tpu_custom_call.1} parent=5 // pred_region
        // Predicated region
        $region25: #{tpu_custom_call.1} parent=23 // pred_check
          %p541 = pneg %p99
        $region26: #{tpu_custom_call.1} parent=23 // pred_check_branch
          %543 = sbr.rel (%p541) target = $region28
        $region27: #{tpu_custom_call.1} parent=23 // pred_region
          %p544 = scmp.lt.s32.totalorder %s32, 1
          %s545 = scalar_select %p544, %s32, 1
          %s546 = scalar_lea.vmem %s2, %s545
        $region28: #{tpu_custom_call.1} parent=23 // pred_fallthru
          _
        // Predicated region
        $region29: #{tpu_custom_call.1} parent=23 // pred_check
          %p547 = pneg %p125
        $region30: #{tpu_custom_call.1} parent=23 // pred_check_branch
          %549 = sbr.rel (%p547) target = $region32
        $region31: #{tpu_custom_call.1} parent=23 // pred_region
          %p550 = scmp.lt.s32.totalorder %s32, 1
          %s551 = scalar_select %p550, %s32, 1
          %s552 = scalar_lea.vmem %s3, %s551
        $region32: #{tpu_custom_call.1} parent=23 // pred_fallthru
          _
        // Predicated region
        $region33: #{tpu_custom_call.1} parent=23 // pred_check
          %p553 = pneg %p151
        $region34: #{tpu_custom_call.1} parent=23 // pred_check_branch
          %555 = sbr.rel (%p553) target = $region36
        $region35: #{tpu_custom_call.1} parent=23 // pred_region
          %p556 = scmp.lt.s32.totalorder %s32, 1
          %s557 = scalar_select %p556, %s32, 1
          %s558 = smul.addr %s557, 64
          %s559 = smul.addr %s558, 8
          %s560 = scalar_lea.vmem %s4, %s559
        $region36: #{tpu_custom_call.1} parent=23 // pred_fallthru
          _
        // Predicated region
        $region37: #{tpu_custom_call.1} parent=23 // pred_check
          %p561 = pneg %p177
        $region38: #{tpu_custom_call.1} parent=23 // pred_check_branch
          %563 = sbr.rel (%p561) target = $region40
        $region39: #{tpu_custom_call.1} parent=23 // pred_region
          %p564 = scmp.lt.s32.totalorder %s32, 1
          %s565 = scalar_select %p564, %s32, 1
          %s566 = smul.addr %s565, 4
          %s567 = scalar_lea.vmem %s5, %s566
        $region40: #{tpu_custom_call.1} parent=23 // pred_fallthru
          _
        // Predicated region
        $region41: #{tpu_custom_call.1} parent=23 // pred_check
          %p568 = pneg %p203
        $region42: #{tpu_custom_call.1} parent=23 // pred_check_branch
          %570 = sbr.rel (%p568) target = $region44
        $region43: #{tpu_custom_call.1} parent=23 // pred_region
          %p571 = scmp.lt.s32.totalorder %s32, 1
          %s572 = scalar_select %p571, %s32, 1
          %s573 = smul.addr %s572, 64
          %s574 = smul.addr %s573, 8
          %s575 = scalar_lea.vmem %s6, %s574
        $region44: #{tpu_custom_call.1} parent=23 // pred_fallthru
          _
        // Predicated region
        $region45: #{tpu_custom_call.1} parent=23 // pred_check
          %p576 = pneg %p229
        $region46: #{tpu_custom_call.1} parent=23 // pred_check_branch
          %578 = sbr.rel (%p576) target = $region48
        $region47: #{tpu_custom_call.1} parent=23 // pred_region
          %p579 = scmp.lt.s32.totalorder %s32, 1
          %s580 = scalar_select %p579, %s32, 1
          %s581 = smul.addr %s580, 4
          %s582 = scalar_lea.vmem %s7, %s581
        $region48: #{tpu_custom_call.1} parent=23 // pred_fallthru
          _
        // Predicated region
        $region49: #{tpu_custom_call.1} parent=23 // pred_check
          %p583 = pneg %p255
        $region50: #{tpu_custom_call.1} parent=23 // pred_check_branch
          %585 = sbr.rel (%p583) target = $region52
        $region51: #{tpu_custom_call.1} parent=23 // pred_region
          %p586 = scmp.lt.s32.totalorder %s32, 1
          %s587 = scalar_select %p586, %s32, 1
          %s588 = smul.addr %s587, 64
          %s589 = smul.addr %s588, 8
          %s590 = scalar_lea.vmem %s8, %s589
        $region52: #{tpu_custom_call.1} parent=23 // pred_fallthru
          _
        // Predicated region
        $region53: #{tpu_custom_call.1} parent=23 // pred_check
          %p591 = pneg %p281
        $region54: #{tpu_custom_call.1} parent=23 // pred_check_branch
          %593 = sbr.rel (%p591) target = $region56
        $region55: #{tpu_custom_call.1} parent=23 // pred_region
          %p594 = scmp.lt.s32.totalorder %s32, 1
          %s595 = scalar_select %p594, %s32, 1
          %s596 = smul.addr %s595, 4
          %s597 = scalar_lea.vmem %s9, %s596
        $region56: #{tpu_custom_call.1} parent=23 // pred_fallthru
          _
        // Predicated region
        $region57: #{tpu_custom_call.1} parent=23 // pred_check
          %p598 = pneg %p307
        $region58: #{tpu_custom_call.1} parent=23 // pred_check_branch
          %600 = sbr.rel (%p598) target = $region60
        $region59: #{tpu_custom_call.1} parent=23 // pred_region
          %p601 = scmp.lt.s32.totalorder %s32, 1
          %s602 = scalar_select %p601, %s32, 1
          %s603 = smul.addr %s602, 16
          %s604 = smul.addr %s603, 8
          %s605 = scalar_lea.vmem %s10, %s604
        $region60: #{tpu_custom_call.1} parent=23 // pred_fallthru
          _
        // Predicated region
        $region61: #{tpu_custom_call.1} parent=23 // pred_check
          %p606 = pneg %p333
        $region62: #{tpu_custom_call.1} parent=23 // pred_check_branch
          %608 = sbr.rel (%p606) target = $region64
        $region63: #{tpu_custom_call.1} parent=23 // pred_region
          %p609 = scmp.lt.s32.totalorder %s32, 1
          %s610 = scalar_select %p609, %s32, 1
          %s611 = scalar_lea.vmem %s11, %s610
        $region64: #{tpu_custom_call.1} parent=23 // pred_fallthru
          _
        // Predicated region
        $region65: #{tpu_custom_call.1} parent=23 // pred_check
          %p612 = pneg %p359
        $region66: #{tpu_custom_call.1} parent=23 // pred_check_branch
          %614 = sbr.rel (%p612) target = $region68
        $region67: #{tpu_custom_call.1} parent=23 // pred_region
          %p615 = scmp.lt.s32.totalorder %s32, 1
          %s616 = scalar_select %p615, %s32, 1
          %s617 = scalar_lea.vmem %s12, %s616
        $region68: #{tpu_custom_call.1} parent=23 // pred_fallthru
          _
        // Predicated region
        $region69: #{tpu_custom_call.1} parent=23 // pred_check
          %p618 = pneg %p385
        $region70: #{tpu_custom_call.1} parent=23 // pred_check_branch
          %620 = sbr.rel (%p618) target = $region72
        $region71: #{tpu_custom_call.1} parent=23 // pred_region
          %p621 = scmp.lt.s32.totalorder %s32, 1
          %s622 = scalar_select %p621, %s32, 1
          %s623 = scalar_lea.vmem %s13, %s622
        $region72: #{tpu_custom_call.1} parent=23 // pred_fallthru
          _
        // Predicated region
        $region73: #{tpu_custom_call.1} parent=23 // pred_check
          %p624 = pneg %p411
        $region74: #{tpu_custom_call.1} parent=23 // pred_check_branch
          %626 = sbr.rel (%p624) target = $region76
        $region75: #{tpu_custom_call.1} parent=23 // pred_region
          %p627 = scmp.lt.s32.totalorder %s32, 1
          %s628 = scalar_select %p627, %s32, 1
          %s629 = smul.addr %s628, 32
          %s630 = smul.addr %s629, 8
          %s631 = scalar_lea.vmem %s14, %s630
        $region76: #{tpu_custom_call.1} parent=23 // pred_fallthru
          _
        // Predicated region
        $region77: #{tpu_custom_call.1} parent=23 // pred_check
          %p632 = pneg %p437
        $region78: #{tpu_custom_call.1} parent=23 // pred_check_branch
          %634 = sbr.rel (%p632) target = $region80
        $region79: #{tpu_custom_call.1} parent=23 // pred_region
          %p635 = scmp.lt.s32.totalorder %s32, 1
          %s636 = scalar_select %p635, %s32, 1
          %s637 = smul.addr %s636, 2
          %s638 = scalar_lea.vmem %s15, %s637
        $region80: #{tpu_custom_call.1} parent=23 // pred_fallthru
          _
        // Predicated region
        $region81: #{tpu_custom_call.1} parent=23 // pred_check
          %p639 = pneg %p463
        $region82: #{tpu_custom_call.1} parent=23 // pred_check_branch
          %641 = sbr.rel (%p639) target = $region84
        $region83: #{tpu_custom_call.1} parent=23 // pred_region
          %p642 = scmp.lt.s32.totalorder %s32, 1
          %s643 = scalar_select %p642, %s32, 1
          %s644 = smul.addr %s643, 32
          %s645 = smul.addr %s644, 8
          %s646 = scalar_lea.vmem %s16, %s645
        $region84: #{tpu_custom_call.1} parent=23 // pred_fallthru
          _
        // Predicated region
        $region85: #{tpu_custom_call.1} parent=23 // pred_check
          %p647 = pneg %p489
        $region86: #{tpu_custom_call.1} parent=23 // pred_check_branch
          %649 = sbr.rel (%p647) target = $region88
        $region87: #{tpu_custom_call.1} parent=23 // pred_region
          %p650 = scmp.lt.s32.totalorder %s32, 1
          %s651 = scalar_select %p650, %s32, 1
          %s652 = scalar_lea.vmem %s17, %s651
        $region88: #{tpu_custom_call.1} parent=23 // pred_fallthru
          _
      $region24: #{tpu_custom_call.1} parent=5 // pred_fallthru
        _
      %p653 = scmp.le.s32.totalorder 1, %s25
      %p654 = scmp.lt.s32.totalorder %s25, 5
      %p655 = pnand %p653, %p654
      %p656 = pneg %p655
      // Predicated region
      $region89: #{tpu_custom_call.1} parent=5 // pred_check
        _
      $region90: #{tpu_custom_call.1} parent=5 // pred_check_branch
        %658 = sbr.rel (%p655) target = $region92
      $region91: #{tpu_custom_call.1} parent=5 // pred_region
        %s659 = ssub.s32 %s25, 1
        %p660 = pneg %p58
        %p661 = pneg %p55
        %p662 = pneg %p79
        %p663 = pneg %p76
        %p664 = scmp.lt.s32.totalorder %s34, 1
        %s665 = scalar_select %p664, %s34, 1
        %s666 = scalar_lea.vmem %s2, %s665
        %p667 = pneg %p105
        %p668 = pneg %p102
        %p669 = scmp.lt.s32.totalorder %s34, 1
        %s670 = scalar_select %p669, %s34, 1
        %s671 = scalar_lea.vmem %s3, %s670
        %p672 = pneg %p131
        %p673 = pneg %p128
        %p674 = scmp.lt.s32.totalorder %s34, 1
        %s675 = scalar_select %p674, %s34, 1
        %s676 = smul.addr %s675, 64
        %s677 = smul.addr %s676, 8
        %s678 = scalar_lea.vmem %s4, %s677
        %p679 = pneg %p157
        %p680 = pneg %p154
        %p681 = scmp.lt.s32.totalorder %s34, 1
        %s682 = scalar_select %p681, %s34, 1
        %s683 = smul.addr %s682, 4
        %s684 = scalar_lea.vmem %s5, %s683
        %p685 = pneg %p183
        %p686 = pneg %p180
        %p687 = scmp.lt.s32.totalorder %s34, 1
        %s688 = scalar_select %p687, %s34, 1
        %s689 = smul.addr %s688, 64
        %s690 = smul.addr %s689, 8
        %s691 = scalar_lea.vmem %s6, %s690
        %p692 = pneg %p209
        %p693 = pneg %p206
        %p694 = scmp.lt.s32.totalorder %s34, 1
        %s695 = scalar_select %p694, %s34, 1
        %s696 = smul.addr %s695, 4
        %s697 = scalar_lea.vmem %s7, %s696
        %p698 = pneg %p235
        %p699 = pneg %p232
        %p700 = scmp.lt.s32.totalorder %s34, 1
        %s701 = scalar_select %p700, %s34, 1
        %s702 = smul.addr %s701, 64
        %s703 = smul.addr %s702, 8
        %s704 = scalar_lea.vmem %s8, %s703
        %p705 = pneg %p261
        %p706 = pneg %p258
        %p707 = scmp.lt.s32.totalorder %s34, 1
        %s708 = scalar_select %p707, %s34, 1
        %s709 = smul.addr %s708, 4
        %s710 = scalar_lea.vmem %s9, %s709
        %p711 = pneg %p287
        %p712 = pneg %p284
        %p713 = scmp.lt.s32.totalorder %s34, 1
        %s714 = scalar_select %p713, %s34, 1
        %s715 = smul.addr %s714, 16
        %s716 = smul.addr %s715, 8
        %s717 = scalar_lea.vmem %s10, %s716
        %p718 = pneg %p313
        %p719 = pneg %p310
        %p720 = scmp.lt.s32.totalorder %s34, 1
        %s721 = scalar_select %p720, %s34, 1
        %s722 = scalar_lea.vmem %s11, %s721
        %p723 = pneg %p339
        %p724 = pneg %p336
        %p725 = scmp.lt.s32.totalorder %s34, 1
        %s726 = scalar_select %p725, %s34, 1
        %s727 = scalar_lea.vmem %s12, %s726
        %p728 = pneg %p365
        %p729 = pneg %p362
        %p730 = scmp.lt.s32.totalorder %s34, 1
        %s731 = scalar_select %p730, %s34, 1
        %s732 = scalar_lea.vmem %s13, %s731
        %p733 = pneg %p391
        %p734 = pneg %p388
        %p735 = scmp.lt.s32.totalorder %s34, 1
        %s736 = scalar_select %p735, %s34, 1
        %s737 = smul.addr %s736, 32
        %s738 = smul.addr %s737, 8
        %s739 = scalar_lea.vmem %s14, %s738
        %p740 = pneg %p417
        %p741 = pneg %p414
        %p742 = scmp.lt.s32.totalorder %s34, 1
        %s743 = scalar_select %p742, %s34, 1
        %s744 = smul.addr %s743, 2
        %s745 = scalar_lea.vmem %s15, %s744
        %p746 = pneg %p443
        %p747 = pneg %p440
        %p748 = scmp.lt.s32.totalorder %s34, 1
        %s749 = scalar_select %p748, %s34, 1
        %s750 = smul.addr %s749, 32
        %s751 = smul.addr %s750, 8
        %s752 = scalar_lea.vmem %s16, %s751
        %p753 = pneg %p469
        %p754 = pneg %p466
        %p755 = scmp.lt.s32.totalorder %s34, 1
        %s756 = scalar_select %p755, %s34, 1
        %s757 = scalar_lea.vmem %s17, %s756
        %p758 = pneg %p495
        %p759 = pneg %p492
        %p760 = pneg %p516
        %p761 = pneg %p513
        %p762 = scmp.lt.s32.totalorder %s34, 1
        %s763 = scalar_select %p762, %s34, 1
        %s764 = scalar_lea.vmem %s2, %s763
        %p765 = scmp.lt.s32.totalorder %s34, 1
        %s766 = scalar_select %p765, %s34, 1
        %s767 = scalar_lea.vmem %s3, %s766
        %p768 = scmp.lt.s32.totalorder %s34, 1
        %s769 = scalar_select %p768, %s34, 1
        %s770 = smul.addr %s769, 64
        %s771 = smul.addr %s770, 8
        %s772 = scalar_lea.vmem %s4, %s771
        %p773 = scmp.lt.s32.totalorder %s34, 1
        %s774 = scalar_select %p773, %s34, 1
        %s775 = smul.addr %s774, 4
        %s776 = scalar_lea.vmem %s5, %s775
        %p777 = scmp.lt.s32.totalorder %s34, 1
        %s778 = scalar_select %p777, %s34, 1
        %s779 = smul.addr %s778, 64
        %s780 = smul.addr %s779, 8
        %s781 = scalar_lea.vmem %s6, %s780
        %p782 = scmp.lt.s32.totalorder %s34, 1
        %s783 = scalar_select %p782, %s34, 1
        %s784 = smul.addr %s783, 4
        %s785 = scalar_lea.vmem %s7, %s784
        %p786 = scmp.lt.s32.totalorder %s34, 1
        %s787 = scalar_select %p786, %s34, 1
        %s788 = smul.addr %s787, 64
        %s789 = smul.addr %s788, 8
        %s790 = scalar_lea.vmem %s8, %s789
        %p791 = scmp.lt.s32.totalorder %s34, 1
        %s792 = scalar_select %p791, %s34, 1
        %s793 = smul.addr %s792, 4
        %s794 = scalar_lea.vmem %s9, %s793
        %p795 = scmp.lt.s32.totalorder %s34, 1
        %s796 = scalar_select %p795, %s34, 1
        %s797 = smul.addr %s796, 16
        %s798 = smul.addr %s797, 8
        %s799 = scalar_lea.vmem %s10, %s798
        %p800 = scmp.lt.s32.totalorder %s34, 1
        %s801 = scalar_select %p800, %s34, 1
        %s802 = scalar_lea.vmem %s11, %s801
        %p803 = scmp.lt.s32.totalorder %s34, 1
        %s804 = scalar_select %p803, %s34, 1
        %s805 = scalar_lea.vmem %s12, %s804
        %p806 = scmp.lt.s32.totalorder %s34, 1
        %s807 = scalar_select %p806, %s34, 1
        %s808 = scalar_lea.vmem %s13, %s807
        %p809 = scmp.lt.s32.totalorder %s34, 1
        %s810 = scalar_select %p809, %s34, 1
        %s811 = smul.addr %s810, 32
        %s812 = smul.addr %s811, 8
        %s813 = scalar_lea.vmem %s14, %s812
        %p814 = scmp.lt.s32.totalorder %s34, 1
        %s815 = scalar_select %p814, %s34, 1
        %s816 = smul.addr %s815, 2
        %s817 = scalar_lea.vmem %s15, %s816
        %p818 = scmp.lt.s32.totalorder %s34, 1
        %s819 = scalar_select %p818, %s34, 1
        %s820 = smul.addr %s819, 32
        %s821 = smul.addr %s820, 8
        %s822 = scalar_lea.vmem %s16, %s821
        %p823 = scmp.lt.s32.totalorder %s34, 1
        %s824 = scalar_select %p823, %s34, 1
        %s825 = scalar_lea.vmem %s17, %s824
        %p826 = scmp.eq.s32.totalorder %s34, 0
        // Predicated region
        $region93: #{tpu_custom_call.1} parent=91 // pred_check
          %p827 = pneg %p826
        $region94: #{tpu_custom_call.1} parent=91 // pred_check_branch
          %829 = sbr.rel (%p827) target = $region96
        $region95: #{tpu_custom_call.1} parent=91 // pred_region
          %s830 = smul.u32 %s35, 8
          %s831 = scalar_lea.vmem %s0, %s830
          %v832 = vld [vmem:[%s831] sm:$0xff]
          %s833 = scalar_lea.vmem [#allocation2], %s830
          %834 = vst [vmem:[%s833] sm:$0xff] %v832
        $region96: #{tpu_custom_call.1} parent=91 // pred_fallthru
          _
        %s835 = smul.u32 %s35, 8
        %s836 = scalar_lea.vmem [#allocation2], %s835
        %v837 = vld [vmem:[%s836] sm:$0xff]
        %v838 = vld [vmem:[%s764] sm:$0x1]
        %v839 = vld [vmem:[%s767] sm:$0x1]
        %840 = vadd.xlane.f32.xlu0 %v837
        %v841 = vpop.xlane.xlu0 %840
        %v842 = vrcp.pop 128.0
        %v843 = vmul.f32 %v841, %v842
        %v844 = vsub.f32 %v837, %v843
        %v845 = vmul.f32 %v844, %v844
        %846 = vadd.xlane.f32.xlu0 %v845
        %v847 = vpop.xlane.xlu0 %846
        %v848 = vmul.f32 %v847, %v842
        %v849 = vadd.f32 %v848, 1e-05
        %v850 = vrsqrt.pop %v849
        %v851 = vmul.f32 %v844, %v850
        %v853 = vlaneseq
        %v854 = vshrl.u32 %v853, 7
        %v855 = vsub.s32 0, %v854
        %v856 = vrot.slane %v838, %v855
        %v858 = vmul.f32 %v851, %v856
        %v860 = vlaneseq
        %v861 = vshrl.u32 %v860, 7
        %v862 = vsub.s32 0, %v861
        %v863 = vrot.slane %v839, %v862
        %v865 = vadd.f32 %v858, %v863
        %v866 = vld [vmem:[%s772] sm:$0xff]
        %v867 = vld [vmem:[%s772 + $0x8] sm:$0xff]
        %v868 = vld [vmem:[%s772 + $0x10] sm:$0xff]
        %v869 = vld [vmem:[%s772 + $0x18] sm:$0xff]
        %v870 = vld [vmem:[%s772 + $0x20] sm:$0xff]
        %v871 = vld [vmem:[%s772 + $0x28] sm:$0xff]
        %v872 = vld [vmem:[%s772 + $0x30] sm:$0xff]
        %v873 = vld [vmem:[%s772 + $0x38] sm:$0xff]
        %v874 = vld [vmem:[%s772 + $0x40] sm:$0xff]
        %v875 = vld [vmem:[%s772 + $0x48] sm:$0xff]
        %v876 = vld [vmem:[%s772 + $0x50] sm:$0xff]
        %v877 = vld [vmem:[%s772 + $0x58] sm:$0xff]
        %v878 = vld [vmem:[%s772 + $0x60] sm:$0xff]
        %v879 = vld [vmem:[%s772 + $0x68] sm:$0xff]
        %v880 = vld [vmem:[%s772 + $0x70] sm:$0xff]
        %v881 = vld [vmem:[%s772 + $0x78] sm:$0xff]
        %v882 = vld [vmem:[%s772 + $0x80] sm:$0xff]
        %v883 = vld [vmem:[%s772 + $0x88] sm:$0xff]
        %v884 = vld [vmem:[%s772 + $0x90] sm:$0xff]
        %v885 = vld [vmem:[%s772 + $0x98] sm:$0xff]
        %v886 = vld [vmem:[%s772 + $0xa0] sm:$0xff]
        %v887 = vld [vmem:[%s772 + $0xa8] sm:$0xff]
        %v888 = vld [vmem:[%s772 + $0xb0] sm:$0xff]
        %v889 = vld [vmem:[%s772 + $0xb8] sm:$0xff]
        %v890 = vld [vmem:[%s772 + $0xc0] sm:$0xff]
        %v891 = vld [vmem:[%s772 + $0xc8] sm:$0xff]
        %v892 = vld [vmem:[%s772 + $0xd0] sm:$0xff]
        %v893 = vld [vmem:[%s772 + $0xd8] sm:$0xff]
        %v894 = vld [vmem:[%s772 + $0xe0] sm:$0xff]
        %v895 = vld [vmem:[%s772 + $0xe8] sm:$0xff]
        %v896 = vld [vmem:[%s772 + $0xf0] sm:$0xff]
        %v897 = vld [vmem:[%s772 + $0xf8] sm:$0xff]
        %v898 = vld [vmem:[%s772 + $0x100] sm:$0xff]
        %v899 = vld [vmem:[%s772 + $0x108] sm:$0xff]
        %v900 = vld [vmem:[%s772 + $0x110] sm:$0xff]
        %v901 = vld [vmem:[%s772 + $0x118] sm:$0xff]
        %v902 = vld [vmem:[%s772 + $0x120] sm:$0xff]
        %v903 = vld [vmem:[%s772 + $0x128] sm:$0xff]
        %v904 = vld [vmem:[%s772 + $0x130] sm:$0xff]
        %v905 = vld [vmem:[%s772 + $0x138] sm:$0xff]
        %v906 = vld [vmem:[%s772 + $0x140] sm:$0xff]
        %v907 = vld [vmem:[%s772 + $0x148] sm:$0xff]
        %v908 = vld [vmem:[%s772 + $0x150] sm:$0xff]
        %v909 = vld [vmem:[%s772 + $0x158] sm:$0xff]
        %v910 = vld [vmem:[%s772 + $0x160] sm:$0xff]
        %v911 = vld [vmem:[%s772 + $0x168] sm:$0xff]
        %v912 = vld [vmem:[%s772 + $0x170] sm:$0xff]
        %v913 = vld [vmem:[%s772 + $0x178] sm:$0xff]
        %v914 = vld [vmem:[%s772 + $0x180] sm:$0xff]
        %v915 = vld [vmem:[%s772 + $0x188] sm:$0xff]
        %v916 = vld [vmem:[%s772 + $0x190] sm:$0xff]
        %v917 = vld [vmem:[%s772 + $0x198] sm:$0xff]
        %v918 = vld [vmem:[%s772 + $0x1a0] sm:$0xff]
        %v919 = vld [vmem:[%s772 + $0x1a8] sm:$0xff]
        %v920 = vld [vmem:[%s772 + $0x1b0] sm:$0xff]
        %v921 = vld [vmem:[%s772 + $0x1b8] sm:$0xff]
        %v922 = vld [vmem:[%s772 + $0x1c0] sm:$0xff]
        %v923 = vld [vmem:[%s772 + $0x1c8] sm:$0xff]
        %v924 = vld [vmem:[%s772 + $0x1d0] sm:$0xff]
        %v925 = vld [vmem:[%s772 + $0x1d8] sm:$0xff]
        %v926 = vld [vmem:[%s772 + $0x1e0] sm:$0xff]
        %v927 = vld [vmem:[%s772 + $0x1e8] sm:$0xff]
        %v928 = vld [vmem:[%s772 + $0x1f0] sm:$0xff]
        %v929 = vld [vmem:[%s772 + $0x1f8] sm:$0xff]
        %v930 = vld [vmem:[%s776] sm:$0x1]
        %v931 = vld [vmem:[%s776 + $0x1] sm:$0x1]
        %v932 = vld [vmem:[%s776 + $0x2] sm:$0x1]
        %v933 = vld [vmem:[%s776 + $0x3] sm:$0x1]
        %v938 = vlaneseq
        %v939 = vshrl.u32 %v938, 7
        %v940 = vsub.s32 0, %v939
        %v941 = vrot.slane %v930, %v940
        %v942 = vlaneseq
        %v943 = vshrl.u32 %v942, 7
        %v944 = vsub.s32 0, %v943
        %v945 = vrot.slane %v931, %v944
        %v946 = vlaneseq
        %v947 = vshrl.u32 %v946, 7
        %v948 = vsub.s32 0, %v947
        %v949 = vrot.slane %v932, %v948
        %v950 = vlaneseq
        %v951 = vshrl.u32 %v950, 7
        %v952 = vsub.s32 0, %v951
        %v953 = vrot.slane %v933, %v952
        %958 = vmatprep.subr.mxu0 0.0
        %959 = vmatpush1.msra.mxu0 %v866
        %960 = vmatprep.subr.mxu0 0.0
        %961 = vmatpush1.msra.mxu0 %v867
        %962 = vmatprep.subr.mxu0 0.0
        %963 = vmatpush1.msra.mxu0 %v868
        %964 = vmatprep.subr.mxu0 0.0
        %965 = vmatpush1.msra.mxu0 %v869
        %966 = vmatprep.subr.mxu0 0.0
        %967 = vmatpush1.msra.mxu0 %v870
        %968 = vmatprep.subr.mxu0 0.0
        %969 = vmatpush1.msra.mxu0 %v871
        %970 = vmatprep.subr.mxu0 0.0
        %971 = vmatpush1.msra.mxu0 %v872
        %972 = vmatprep.subr.mxu0 0.0
        %973 = vmatpush1.msra.mxu0 %v873
        %974 = vmatprep.subr.mxu0 0.0
        %975 = vmatpush1.msra.mxu0 %v874
        %976 = vmatprep.subr.mxu0 0.0
        %977 = vmatpush1.msra.mxu0 %v875
        %978 = vmatprep.subr.mxu0 0.0
        %979 = vmatpush1.msra.mxu0 %v876
        %980 = vmatprep.subr.mxu0 0.0
        %981 = vmatpush1.msra.mxu0 %v877
        %982 = vmatprep.subr.mxu0 0.0
        %983 = vmatpush1.msra.mxu0 %v878
        %984 = vmatprep.subr.mxu0 0.0
        %985 = vmatpush1.msra.mxu0 %v879
        %986 = vmatprep.subr.mxu0 0.0
        %987 = vmatpush1.msra.mxu0 %v880
        %988 = vmatprep.subr.mxu0 0.0
        %989 = vmatpush1.msra.mxu0 %v881
        %990 = vmatprep.subr.mxu0 0.0
        %991 = vmatpush1.msra.mxu0 0.0
        %992 = vmatprep.subr.mxu0 0.0
        %993 = vmatpush1.msra.mxu0 0.0
        %994 = vmatprep.subr.mxu0 0.0
        %995 = vmatpush1.msra.mxu0 0.0
        %996 = vmatprep.subr.mxu0 0.0
        %997 = vmatpush1.msra.mxu0 0.0
        %998 = vmatprep.subr.mxu0 0.0
        %999 = vmatpush1.msra.mxu0 0.0
        %1000 = vmatprep.subr.mxu0 0.0
        %1001 = vmatpush1.msra.mxu0 0.0
        %1002 = vmatprep.subr.mxu0 0.0
        %1003 = vmatpush1.msra.mxu0 0.0
        %1004 = vmatprep.subr.mxu0 0.0
        %1005 = vmatpush1.msra.mxu0 0.0
        %1006 = vmatprep.subr.mxu0 0.0
        %1007 = vmatpush1.msra.mxu0 0.0
        %1008 = vmatprep.subr.mxu0 0.0
        %1009 = vmatpush1.msra.mxu0 0.0
        %1010 = vmatprep.subr.mxu0 0.0
        %1011 = vmatpush1.msra.mxu0 0.0
        %1012 = vmatprep.subr.mxu0 0.0
        %1013 = vmatpush1.msra.mxu0 0.0
        %1014 = vmatprep.subr.mxu0 0.0
        %1015 = vmatpush1.msra.mxu0 0.0
        %1016 = vmatprep.subr.mxu0 0.0
        %1017 = vmatpush1.msra.mxu0 0.0
        %1018 = vmatprep.subr.mxu0 0.0
        %1019 = vmatpush1.msra.mxu0 0.0
        %1020 = vmatprep.subr.mxu0 0.0
        %1021 = vmatpush1.msra.mxu0 0.0
        %1022 = vmatprep.mubr.f32.mxu0 0.0
        %1023 = vmatmul.mubr.f32.gmra.mrb[0].mxu0 %v865
        %v1024 = vpop.f32.mrb[0].mxu0
        %v1025 = vadd.f32 %v941, %v1024
        %v1026 = vpop.f32.mrb[0].mxu0
        %1027 = vdwg.mxu0
        %1028 = vmatprep.subr.mxu0 0.0
        %1029 = vmatpush1.msra.mxu0 %v882
        %1030 = vmatprep.subr.mxu0 0.0
        %1031 = vmatpush1.msra.mxu0 %v883
        %1032 = vmatprep.subr.mxu0 0.0
        %1033 = vmatpush1.msra.mxu0 %v884
        %1034 = vmatprep.subr.mxu0 0.0
        %1035 = vmatpush1.msra.mxu0 %v885
        %1036 = vmatprep.subr.mxu0 0.0
        %1037 = vmatpush1.msra.mxu0 %v886
        %1038 = vmatprep.subr.mxu0 0.0
        %1039 = vmatpush1.msra.mxu0 %v887
        %1040 = vmatprep.subr.mxu0 0.0
        %1041 = vmatpush1.msra.mxu0 %v888
        %1042 = vmatprep.subr.mxu0 0.0
        %1043 = vmatpush1.msra.mxu0 %v889
        %1044 = vmatprep.subr.mxu0 0.0
        %1045 = vmatpush1.msra.mxu0 %v890
        %1046 = vmatprep.subr.mxu0 0.0
        %1047 = vmatpush1.msra.mxu0 %v891
        %1048 = vmatprep.subr.mxu0 0.0
        %1049 = vmatpush1.msra.mxu0 %v892
        %1050 = vmatprep.subr.mxu0 0.0
        %1051 = vmatpush1.msra.mxu0 %v893
        %1052 = vmatprep.subr.mxu0 0.0
        %1053 = vmatpush1.msra.mxu0 %v894
        %1054 = vmatprep.subr.mxu0 0.0
        %1055 = vmatpush1.msra.mxu0 %v895
        %1056 = vmatprep.subr.mxu0 0.0
        %1057 = vmatpush1.msra.mxu0 %v896
        %1058 = vmatprep.subr.mxu0 0.0
        %1059 = vmatpush1.msra.mxu0 %v897
        %1060 = vmatprep.subr.mxu0 0.0
        %1061 = vmatpush1.msra.mxu0 0.0
        %1062 = vmatprep.subr.mxu0 0.0
        %1063 = vmatpush1.msra.mxu0 0.0
        %1064 = vmatprep.subr.mxu0 0.0
        %1065 = vmatpush1.msra.mxu0 0.0
        %1066 = vmatprep.subr.mxu0 0.0
        %1067 = vmatpush1.msra.mxu0 0.0
        %1068 = vmatprep.subr.mxu0 0.0
        %1069 = vmatpush1.msra.mxu0 0.0
        %1070 = vmatprep.subr.mxu0 0.0
        %1071 = vmatpush1.msra.mxu0 0.0
        %1072 = vmatprep.subr.mxu0 0.0
        %1073 = vmatpush1.msra.mxu0 0.0
        %1074 = vmatprep.subr.mxu0 0.0
        %1075 = vmatpush1.msra.mxu0 0.0
        %1076 = vmatprep.subr.mxu0 0.0
        %1077 = vmatpush1.msra.mxu0 0.0
        %1078 = vmatprep.subr.mxu0 0.0
        %1079 = vmatpush1.msra.mxu0 0.0
        %1080 = vmatprep.subr.mxu0 0.0
        %1081 = vmatpush1.msra.mxu0 0.0
        %1082 = vmatprep.subr.mxu0 0.0
        %1083 = vmatpush1.msra.mxu0 0.0
        %1084 = vmatprep.subr.mxu0 0.0
        %1085 = vmatpush1.msra.mxu0 0.0
        %1086 = vmatprep.subr.mxu0 0.0
        %1087 = vmatpush1.msra.mxu0 0.0
        %1088 = vmatprep.subr.mxu0 0.0
        %1089 = vmatpush1.msra.mxu0 0.0
        %1090 = vmatprep.subr.mxu0 0.0
        %1091 = vmatpush1.msra.mxu0 0.0
        %1092 = vmatprep.mubr.f32.mxu0 0.0
        %1093 = vmatmul.mubr.f32.gmra.mrb[0].mxu0 %v865
        %v1094 = vpop.f32.mrb[0].mxu0
        %v1095 = vadd.f32 %v945, %v1094
        %v1096 = vpop.f32.mrb[0].mxu0
        %1097 = vdwg.mxu0
        %1098 = vmatprep.subr.mxu0 0.0
        %1099 = vmatpush1.msra.mxu0 %v898
        %1100 = vmatprep.subr.mxu0 0.0
        %1101 = vmatpush1.msra.mxu0 %v899
        %1102 = vmatprep.subr.mxu0 0.0
        %1103 = vmatpush1.msra.mxu0 %v900
        %1104 = vmatprep.subr.mxu0 0.0
        %1105 = vmatpush1.msra.mxu0 %v901
        %1106 = vmatprep.subr.mxu0 0.0
        %1107 = vmatpush1.msra.mxu0 %v902
        %1108 = vmatprep.subr.mxu0 0.0
        %1109 = vmatpush1.msra.mxu0 %v903
        %1110 = vmatprep.subr.mxu0 0.0
        %1111 = vmatpush1.msra.mxu0 %v904
        %1112 = vmatprep.subr.mxu0 0.0
        %1113 = vmatpush1.msra.mxu0 %v905
        %1114 = vmatprep.subr.mxu0 0.0
        %1115 = vmatpush1.msra.mxu0 %v906
        %1116 = vmatprep.subr.mxu0 0.0
        %1117 = vmatpush1.msra.mxu0 %v907
        %1118 = vmatprep.subr.mxu0 0.0
        %1119 = vmatpush1.msra.mxu0 %v908
        %1120 = vmatprep.subr.mxu0 0.0
        %1121 = vmatpush1.msra.mxu0 %v909
        %1122 = vmatprep.subr.mxu0 0.0
        %1123 = vmatpush1.msra.mxu0 %v910
        %1124 = vmatprep.subr.mxu0 0.0
        %1125 = vmatpush1.msra.mxu0 %v911
        %1126 = vmatprep.subr.mxu0 0.0
        %1127 = vmatpush1.msra.mxu0 %v912
        %1128 = vmatprep.subr.mxu0 0.0
        %1129 = vmatpush1.msra.mxu0 %v913
        %1130 = vmatprep.subr.mxu0 0.0
        %1131 = vmatpush1.msra.mxu0 0.0
        %1132 = vmatprep.subr.mxu0 0.0
        %1133 = vmatpush1.msra.mxu0 0.0
        %1134 = vmatprep.subr.mxu0 0.0
        %1135 = vmatpush1.msra.mxu0 0.0
        %1136 = vmatprep.subr.mxu0 0.0
        %1137 = vmatpush1.msra.mxu0 0.0
        %1138 = vmatprep.subr.mxu0 0.0
        %1139 = vmatpush1.msra.mxu0 0.0
        %1140 = vmatprep.subr.mxu0 0.0
        %1141 = vmatpush1.msra.mxu0 0.0
        %1142 = vmatprep.subr.mxu0 0.0
        %1143 = vmatpush1.msra.mxu0 0.0
        %1144 = vmatprep.subr.mxu0 0.0
        %1145 = vmatpush1.msra.mxu0 0.0
        %1146 = vmatprep.subr.mxu0 0.0
        %1147 = vmatpush1.msra.mxu0 0.0
        %1148 = vmatprep.subr.mxu0 0.0
        %1149 = vmatpush1.msra.mxu0 0.0
        %1150 = vmatprep.subr.mxu0 0.0
        %1151 = vmatpush1.msra.mxu0 0.0
        %1152 = vmatprep.subr.mxu0 0.0
        %1153 = vmatpush1.msra.mxu0 0.0
        %1154 = vmatprep.subr.mxu0 0.0
        %1155 = vmatpush1.msra.mxu0 0.0
        %1156 = vmatprep.subr.mxu0 0.0
        %1157 = vmatpush1.msra.mxu0 0.0
        %1158 = vmatprep.subr.mxu0 0.0
        %1159 = vmatpush1.msra.mxu0 0.0
        %1160 = vmatprep.subr.mxu0 0.0
        %1161 = vmatpush1.msra.mxu0 0.0
        %1162 = vmatprep.mubr.f32.mxu0 0.0
        %1163 = vmatmul.mubr.f32.gmra.mrb[0].mxu0 %v865
        %v1164 = vpop.f32.mrb[0].mxu0
        %v1165 = vadd.f32 %v949, %v1164
        %v1166 = vpop.f32.mrb[0].mxu0
        %1167 = vdwg.mxu0
        %1168 = vmatprep.subr.mxu0 0.0
        %1169 = vmatpush1.msra.mxu0 %v914
        %1170 = vmatprep.subr.mxu0 0.0
        %1171 = vmatpush1.msra.mxu0 %v915
        %1172 = vmatprep.subr.mxu0 0.0
        %1173 = vmatpush1.msra.mxu0 %v916
        %1174 = vmatprep.subr.mxu0 0.0
        %1175 = vmatpush1.msra.mxu0 %v917
        %1176 = vmatprep.subr.mxu0 0.0
        %1177 = vmatpush1.msra.mxu0 %v918
        %1178 = vmatprep.subr.mxu0 0.0
        %1179 = vmatpush1.msra.mxu0 %v919
        %1180 = vmatprep.subr.mxu0 0.0
        %1181 = vmatpush1.msra.mxu0 %v920
        %1182 = vmatprep.subr.mxu0 0.0
        %1183 = vmatpush1.msra.mxu0 %v921
        %1184 = vmatprep.subr.mxu0 0.0
        %1185 = vmatpush1.msra.mxu0 %v922
        %1186 = vmatprep.subr.mxu0 0.0
        %1187 = vmatpush1.msra.mxu0 %v923
        %1188 = vmatprep.subr.mxu0 0.0
        %1189 = vmatpush1.msra.mxu0 %v924
        %1190 = vmatprep.subr.mxu0 0.0
        %1191 = vmatpush1.msra.mxu0 %v925
        %1192 = vmatprep.subr.mxu0 0.0
        %1193 = vmatpush1.msra.mxu0 %v926
        %1194 = vmatprep.subr.mxu0 0.0
        %1195 = vmatpush1.msra.mxu0 %v927
        %1196 = vmatprep.subr.mxu0 0.0
        %1197 = vmatpush1.msra.mxu0 %v928
        %1198 = vmatprep.subr.mxu0 0.0
        %1199 = vmatpush1.msra.mxu0 %v929
        %1200 = vmatprep.subr.mxu0 0.0
        %1201 = vmatpush1.msra.mxu0 0.0
        %1202 = vmatprep.subr.mxu0 0.0
        %1203 = vmatpush1.msra.mxu0 0.0
        %1204 = vmatprep.subr.mxu0 0.0
        %1205 = vmatpush1.msra.mxu0 0.0
        %1206 = vmatprep.subr.mxu0 0.0
        %1207 = vmatpush1.msra.mxu0 0.0
        %1208 = vmatprep.subr.mxu0 0.0
        %1209 = vmatpush1.msra.mxu0 0.0
        %1210 = vmatprep.subr.mxu0 0.0
        %1211 = vmatpush1.msra.mxu0 0.0
        %1212 = vmatprep.subr.mxu0 0.0
        %1213 = vmatpush1.msra.mxu0 0.0
        %1214 = vmatprep.subr.mxu0 0.0
        %1215 = vmatpush1.msra.mxu0 0.0
        %1216 = vmatprep.subr.mxu0 0.0
        %1217 = vmatpush1.msra.mxu0 0.0
        %1218 = vmatprep.subr.mxu0 0.0
        %1219 = vmatpush1.msra.mxu0 0.0
        %1220 = vmatprep.subr.mxu0 0.0
        %1221 = vmatpush1.msra.mxu0 0.0
        %1222 = vmatprep.subr.mxu0 0.0
        %1223 = vmatpush1.msra.mxu0 0.0
        %1224 = vmatprep.subr.mxu0 0.0
        %1225 = vmatpush1.msra.mxu0 0.0
        %1226 = vmatprep.subr.mxu0 0.0
        %1227 = vmatpush1.msra.mxu0 0.0
        %1228 = vmatprep.subr.mxu0 0.0
        %1229 = vmatpush1.msra.mxu0 0.0
        %1230 = vmatprep.subr.mxu0 0.0
        %1231 = vmatpush1.msra.mxu0 0.0
        %1232 = vmatprep.mubr.f32.mxu0 0.0
        %1233 = vmatmul.mubr.f32.gmra.mrb[0].mxu0 %v865
        %v1234 = vpop.f32.mrb[0].mxu0
        %v1235 = vadd.f32 %v953, %v1234
        %v1236 = vpop.f32.mrb[0].mxu0
        %1237 = vdwg.mxu0
        %v1238 = vld [vmem:[%s781] sm:$0xff]
        %v1239 = vld [vmem:[%s781 + $0x8] sm:$0xff]
        %v1240 = vld [vmem:[%s781 + $0x10] sm:$0xff]
        %v1241 = vld [vmem:[%s781 + $0x18] sm:$0xff]
        %v1242 = vld [vmem:[%s781 + $0x20] sm:$0xff]
        %v1243 = vld [vmem:[%s781 + $0x28] sm:$0xff]
        %v1244 = vld [vmem:[%s781 + $0x30] sm:$0xff]
        %v1245 = vld [vmem:[%s781 + $0x38] sm:$0xff]
        %v1246 = vld [vmem:[%s781 + $0x40] sm:$0xff]
        %v1247 = vld [vmem:[%s781 + $0x48] sm:$0xff]
        %v1248 = vld [vmem:[%s781 + $0x50] sm:$0xff]
        %v1249 = vld [vmem:[%s781 + $0x58] sm:$0xff]
        %v1250 = vld [vmem:[%s781 + $0x60] sm:$0xff]
        %v1251 = vld [vmem:[%s781 + $0x68] sm:$0xff]
        %v1252 = vld [vmem:[%s781 + $0x70] sm:$0xff]
        %v1253 = vld [vmem:[%s781 + $0x78] sm:$0xff]
        %v1254 = vld [vmem:[%s781 + $0x80] sm:$0xff]
        %v1255 = vld [vmem:[%s781 + $0x88] sm:$0xff]
        %v1256 = vld [vmem:[%s781 + $0x90] sm:$0xff]
        %v1257 = vld [vmem:[%s781 + $0x98] sm:$0xff]
        %v1258 = vld [vmem:[%s781 + $0xa0] sm:$0xff]
        %v1259 = vld [vmem:[%s781 + $0xa8] sm:$0xff]
        %v1260 = vld [vmem:[%s781 + $0xb0] sm:$0xff]
        %v1261 = vld [vmem:[%s781 + $0xb8] sm:$0xff]
        %v1262 = vld [vmem:[%s781 + $0xc0] sm:$0xff]
        %v1263 = vld [vmem:[%s781 + $0xc8] sm:$0xff]
        %v1264 = vld [vmem:[%s781 + $0xd0] sm:$0xff]
        %v1265 = vld [vmem:[%s781 + $0xd8] sm:$0xff]
        %v1266 = vld [vmem:[%s781 + $0xe0] sm:$0xff]
        %v1267 = vld [vmem:[%s781 + $0xe8] sm:$0xff]
        %v1268 = vld [vmem:[%s781 + $0xf0] sm:$0xff]
        %v1269 = vld [vmem:[%s781 + $0xf8] sm:$0xff]
        %v1270 = vld [vmem:[%s781 + $0x100] sm:$0xff]
        %v1271 = vld [vmem:[%s781 + $0x108] sm:$0xff]
        %v1272 = vld [vmem:[%s781 + $0x110] sm:$0xff]
        %v1273 = vld [vmem:[%s781 + $0x118] sm:$0xff]
        %v1274 = vld [vmem:[%s781 + $0x120] sm:$0xff]
        %v1275 = vld [vmem:[%s781 + $0x128] sm:$0xff]
        %v1276 = vld [vmem:[%s781 + $0x130] sm:$0xff]
        %v1277 = vld [vmem:[%s781 + $0x138] sm:$0xff]
        %v1278 = vld [vmem:[%s781 + $0x140] sm:$0xff]
        %v1279 = vld [vmem:[%s781 + $0x148] sm:$0xff]
        %v1280 = vld [vmem:[%s781 + $0x150] sm:$0xff]
        %v1281 = vld [vmem:[%s781 + $0x158] sm:$0xff]
        %v1282 = vld [vmem:[%s781 + $0x160] sm:$0xff]
        %v1283 = vld [vmem:[%s781 + $0x168] sm:$0xff]
        %v1284 = vld [vmem:[%s781 + $0x170] sm:$0xff]
        %v1285 = vld [vmem:[%s781 + $0x178] sm:$0xff]
        %v1286 = vld [vmem:[%s781 + $0x180] sm:$0xff]
        %v1287 = vld [vmem:[%s781 + $0x188] sm:$0xff]
        %v1288 = vld [vmem:[%s781 + $0x190] sm:$0xff]
        %v1289 = vld [vmem:[%s781 + $0x198] sm:$0xff]
        %v1290 = vld [vmem:[%s781 + $0x1a0] sm:$0xff]
        %v1291 = vld [vmem:[%s781 + $0x1a8] sm:$0xff]
        %v1292 = vld [vmem:[%s781 + $0x1b0] sm:$0xff]
        %v1293 = vld [vmem:[%s781 + $0x1b8] sm:$0xff]
        %v1294 = vld [vmem:[%s781 + $0x1c0] sm:$0xff]
        %v1295 = vld [vmem:[%s781 + $0x1c8] sm:$0xff]
        %v1296 = vld [vmem:[%s781 + $0x1d0] sm:$0xff]
        %v1297 = vld [vmem:[%s781 + $0x1d8] sm:$0xff]
        %v1298 = vld [vmem:[%s781 + $0x1e0] sm:$0xff]
        %v1299 = vld [vmem:[%s781 + $0x1e8] sm:$0xff]
        %v1300 = vld [vmem:[%s781 + $0x1f0] sm:$0xff]
        %v1301 = vld [vmem:[%s781 + $0x1f8] sm:$0xff]
        %v1302 = vld [vmem:[%s785] sm:$0x1]
        %v1303 = vld [vmem:[%s785 + $0x1] sm:$0x1]
        %v1304 = vld [vmem:[%s785 + $0x2] sm:$0x1]
        %v1305 = vld [vmem:[%s785 + $0x3] sm:$0x1]
        %v1310 = vlaneseq
        %v1311 = vshrl.u32 %v1310, 7
        %v1312 = vsub.s32 0, %v1311
        %v1313 = vrot.slane %v1302, %v1312
        %v1314 = vlaneseq
        %v1315 = vshrl.u32 %v1314, 7
        %v1316 = vsub.s32 0, %v1315
        %v1317 = vrot.slane %v1303, %v1316
        %v1318 = vlaneseq
        %v1319 = vshrl.u32 %v1318, 7
        %v1320 = vsub.s32 0, %v1319
        %v1321 = vrot.slane %v1304, %v1320
        %v1322 = vlaneseq
        %v1323 = vshrl.u32 %v1322, 7
        %v1324 = vsub.s32 0, %v1323
        %v1325 = vrot.slane %v1305, %v1324
        %1330 = vmatprep.subr.mxu0 0.0
        %1331 = vmatpush1.msra.mxu0 %v1238
        %1332 = vmatprep.subr.mxu0 0.0
        %1333 = vmatpush1.msra.mxu0 %v1239
        %1334 = vmatprep.subr.mxu0 0.0
        %1335 = vmatpush1.msra.mxu0 %v1240
        %1336 = vmatprep.subr.mxu0 0.0
        %1337 = vmatpush1.msra.mxu0 %v1241
        %1338 = vmatprep.subr.mxu0 0.0
        %1339 = vmatpush1.msra.mxu0 %v1242
        %1340 = vmatprep.subr.mxu0 0.0
        %1341 = vmatpush1.msra.mxu0 %v1243
        %1342 = vmatprep.subr.mxu0 0.0
        %1343 = vmatpush1.msra.mxu0 %v1244
        %1344 = vmatprep.subr.mxu0 0.0
        %1345 = vmatpush1.msra.mxu0 %v1245
        %1346 = vmatprep.subr.mxu0 0.0
        %1347 = vmatpush1.msra.mxu0 %v1246
        %1348 = vmatprep.subr.mxu0 0.0
        %1349 = vmatpush1.msra.mxu0 %v1247
        %1350 = vmatprep.subr.mxu0 0.0
        %1351 = vmatpush1.msra.mxu0 %v1248
        %1352 = vmatprep.subr.mxu0 0.0
        %1353 = vmatpush1.msra.mxu0 %v1249
        %1354 = vmatprep.subr.mxu0 0.0
        %1355 = vmatpush1.msra.mxu0 %v1250
        %1356 = vmatprep.subr.mxu0 0.0
        %1357 = vmatpush1.msra.mxu0 %v1251
        %1358 = vmatprep.subr.mxu0 0.0
        %1359 = vmatpush1.msra.mxu0 %v1252
        %1360 = vmatprep.subr.mxu0 0.0
        %1361 = vmatpush1.msra.mxu0 %v1253
        %1362 = vmatprep.subr.mxu0 0.0
        %1363 = vmatpush1.msra.mxu0 0.0
        %1364 = vmatprep.subr.mxu0 0.0
        %1365 = vmatpush1.msra.mxu0 0.0
        %1366 = vmatprep.subr.mxu0 0.0
        %1367 = vmatpush1.msra.mxu0 0.0
        %1368 = vmatprep.subr.mxu0 0.0
        %1369 = vmatpush1.msra.mxu0 0.0
        %1370 = vmatprep.subr.mxu0 0.0
        %1371 = vmatpush1.msra.mxu0 0.0
        %1372 = vmatprep.subr.mxu0 0.0
        %1373 = vmatpush1.msra.mxu0 0.0
        %1374 = vmatprep.subr.mxu0 0.0
        %1375 = vmatpush1.msra.mxu0 0.0
        %1376 = vmatprep.subr.mxu0 0.0
        %1377 = vmatpush1.msra.mxu0 0.0
        %1378 = vmatprep.subr.mxu0 0.0
        %1379 = vmatpush1.msra.mxu0 0.0
        %1380 = vmatprep.subr.mxu0 0.0
        %1381 = vmatpush1.msra.mxu0 0.0
        %1382 = vmatprep.subr.mxu0 0.0
        %1383 = vmatpush1.msra.mxu0 0.0
        %1384 = vmatprep.subr.mxu0 0.0
        %1385 = vmatpush1.msra.mxu0 0.0
        %1386 = vmatprep.subr.mxu0 0.0
        %1387 = vmatpush1.msra.mxu0 0.0
        %1388 = vmatprep.subr.mxu0 0.0
        %1389 = vmatpush1.msra.mxu0 0.0
        %1390 = vmatprep.subr.mxu0 0.0
        %1391 = vmatpush1.msra.mxu0 0.0
        %1392 = vmatprep.subr.mxu0 0.0
        %1393 = vmatpush1.msra.mxu0 0.0
        %1394 = vmatprep.mubr.f32.mxu0 0.0
        %1395 = vmatmul.mubr.f32.gmra.mrb[0].mxu0 %v865
        %v1396 = vpop.f32.mrb[0].mxu0
        %v1397 = vadd.f32 %v1313, %v1396
        %v1398 = vpop.f32.mrb[0].mxu0
        %1399 = vdwg.mxu0
        %1400 = vmatprep.subr.mxu0 0.0
        %1401 = vmatpush1.msra.mxu0 %v1254
        %1402 = vmatprep.subr.mxu0 0.0
        %1403 = vmatpush1.msra.mxu0 %v1255
        %1404 = vmatprep.subr.mxu0 0.0
        %1405 = vmatpush1.msra.mxu0 %v1256
        %1406 = vmatprep.subr.mxu0 0.0
        %1407 = vmatpush1.msra.mxu0 %v1257
        %1408 = vmatprep.subr.mxu0 0.0
        %1409 = vmatpush1.msra.mxu0 %v1258
        %1410 = vmatprep.subr.mxu0 0.0
        %1411 = vmatpush1.msra.mxu0 %v1259
        %1412 = vmatprep.subr.mxu0 0.0
        %1413 = vmatpush1.msra.mxu0 %v1260
        %1414 = vmatprep.subr.mxu0 0.0
        %1415 = vmatpush1.msra.mxu0 %v1261
        %1416 = vmatprep.subr.mxu0 0.0
        %1417 = vmatpush1.msra.mxu0 %v1262
        %1418 = vmatprep.subr.mxu0 0.0
        %1419 = vmatpush1.msra.mxu0 %v1263
        %1420 = vmatprep.subr.mxu0 0.0
        %1421 = vmatpush1.msra.mxu0 %v1264
        %1422 = vmatprep.subr.mxu0 0.0
        %1423 = vmatpush1.msra.mxu0 %v1265
        %1424 = vmatprep.subr.mxu0 0.0
        %1425 = vmatpush1.msra.mxu0 %v1266
        %1426 = vmatprep.subr.mxu0 0.0
        %1427 = vmatpush1.msra.mxu0 %v1267
        %1428 = vmatprep.subr.mxu0 0.0
        %1429 = vmatpush1.msra.mxu0 %v1268
        %1430 = vmatprep.subr.mxu0 0.0
        %1431 = vmatpush1.msra.mxu0 %v1269
        %1432 = vmatprep.subr.mxu0 0.0
        %1433 = vmatpush1.msra.mxu0 0.0
        %1434 = vmatprep.subr.mxu0 0.0
        %1435 = vmatpush1.msra.mxu0 0.0
        %1436 = vmatprep.subr.mxu0 0.0
        %1437 = vmatpush1.msra.mxu0 0.0
        %1438 = vmatprep.subr.mxu0 0.0
        %1439 = vmatpush1.msra.mxu0 0.0
        %1440 = vmatprep.subr.mxu0 0.0
        %1441 = vmatpush1.msra.mxu0 0.0
        %1442 = vmatprep.subr.mxu0 0.0
        %1443 = vmatpush1.msra.mxu0 0.0
        %1444 = vmatprep.subr.mxu0 0.0
        %1445 = vmatpush1.msra.mxu0 0.0
        %1446 = vmatprep.subr.mxu0 0.0
        %1447 = vmatpush1.msra.mxu0 0.0
        %1448 = vmatprep.subr.mxu0 0.0
        %1449 = vmatpush1.msra.mxu0 0.0
        %1450 = vmatprep.subr.mxu0 0.0
        %1451 = vmatpush1.msra.mxu0 0.0
        %1452 = vmatprep.subr.mxu0 0.0
        %1453 = vmatpush1.msra.mxu0 0.0
        %1454 = vmatprep.subr.mxu0 0.0
        %1455 = vmatpush1.msra.mxu0 0.0
        %1456 = vmatprep.subr.mxu0 0.0
        %1457 = vmatpush1.msra.mxu0 0.0
        %1458 = vmatprep.subr.mxu0 0.0
        %1459 = vmatpush1.msra.mxu0 0.0
        %1460 = vmatprep.subr.mxu0 0.0
        %1461 = vmatpush1.msra.mxu0 0.0
        %1462 = vmatprep.subr.mxu0 0.0
        %1463 = vmatpush1.msra.mxu0 0.0
        %1464 = vmatprep.mubr.f32.mxu0 0.0
        %1465 = vmatmul.mubr.f32.gmra.mrb[0].mxu0 %v865
        %v1466 = vpop.f32.mrb[0].mxu0
        %v1467 = vadd.f32 %v1317, %v1466
        %v1468 = vpop.f32.mrb[0].mxu0
        %1469 = vdwg.mxu0
        %1470 = vmatprep.subr.mxu0 0.0
        %1471 = vmatpush1.msra.mxu0 %v1270
        %1472 = vmatprep.subr.mxu0 0.0
        %1473 = vmatpush1.msra.mxu0 %v1271
        %1474 = vmatprep.subr.mxu0 0.0
        %1475 = vmatpush1.msra.mxu0 %v1272
        %1476 = vmatprep.subr.mxu0 0.0
        %1477 = vmatpush1.msra.mxu0 %v1273
        %1478 = vmatprep.subr.mxu0 0.0
        %1479 = vmatpush1.msra.mxu0 %v1274
        %1480 = vmatprep.subr.mxu0 0.0
        %1481 = vmatpush1.msra.mxu0 %v1275
        %1482 = vmatprep.subr.mxu0 0.0
        %1483 = vmatpush1.msra.mxu0 %v1276
        %1484 = vmatprep.subr.mxu0 0.0
        %1485 = vmatpush1.msra.mxu0 %v1277
        %1486 = vmatprep.subr.mxu0 0.0
        %1487 = vmatpush1.msra.mxu0 %v1278
        %1488 = vmatprep.subr.mxu0 0.0
        %1489 = vmatpush1.msra.mxu0 %v1279
        %1490 = vmatprep.subr.mxu0 0.0
        %1491 = vmatpush1.msra.mxu0 %v1280
        %1492 = vmatprep.subr.mxu0 0.0
        %1493 = vmatpush1.msra.mxu0 %v1281
        %1494 = vmatprep.subr.mxu0 0.0
        %1495 = vmatpush1.msra.mxu0 %v1282
        %1496 = vmatprep.subr.mxu0 0.0
        %1497 = vmatpush1.msra.mxu0 %v1283
        %1498 = vmatprep.subr.mxu0 0.0
        %1499 = vmatpush1.msra.mxu0 %v1284
        %1500 = vmatprep.subr.mxu0 0.0
        %1501 = vmatpush1.msra.mxu0 %v1285
        %1502 = vmatprep.subr.mxu0 0.0
        %1503 = vmatpush1.msra.mxu0 0.0
        %1504 = vmatprep.subr.mxu0 0.0
        %1505 = vmatpush1.msra.mxu0 0.0
        %1506 = vmatprep.subr.mxu0 0.0
        %1507 = vmatpush1.msra.mxu0 0.0
        %1508 = vmatprep.subr.mxu0 0.0
        %1509 = vmatpush1.msra.mxu0 0.0
        %1510 = vmatprep.subr.mxu0 0.0
        %1511 = vmatpush1.msra.mxu0 0.0
        %1512 = vmatprep.subr.mxu0 0.0
        %1513 = vmatpush1.msra.mxu0 0.0
        %1514 = vmatprep.subr.mxu0 0.0
        %1515 = vmatpush1.msra.mxu0 0.0
        %1516 = vmatprep.subr.mxu0 0.0
        %1517 = vmatpush1.msra.mxu0 0.0
        %1518 = vmatprep.subr.mxu0 0.0
        %1519 = vmatpush1.msra.mxu0 0.0
        %1520 = vmatprep.subr.mxu0 0.0
        %1521 = vmatpush1.msra.mxu0 0.0
        %1522 = vmatprep.subr.mxu0 0.0
        %1523 = vmatpush1.msra.mxu0 0.0
        %1524 = vmatprep.subr.mxu0 0.0
        %1525 = vmatpush1.msra.mxu0 0.0
        %1526 = vmatprep.subr.mxu0 0.0
        %1527 = vmatpush1.msra.mxu0 0.0
        %1528 = vmatprep.subr.mxu0 0.0
        %1529 = vmatpush1.msra.mxu0 0.0
        %1530 = vmatprep.subr.mxu0 0.0
        %1531 = vmatpush1.msra.mxu0 0.0
        %1532 = vmatprep.subr.mxu0 0.0
        %1533 = vmatpush1.msra.mxu0 0.0
        %1534 = vmatprep.mubr.f32.mxu0 0.0
        %1535 = vmatmul.mubr.f32.gmra.mrb[0].mxu0 %v865
        %v1536 = vpop.f32.mrb[0].mxu0
        %v1537 = vadd.f32 %v1321, %v1536
        %v1538 = vpop.f32.mrb[0].mxu0
        %1539 = vdwg.mxu0
        %1540 = vmatprep.subr.mxu0 0.0
        %1541 = vmatpush1.msra.mxu0 %v1286
        %1542 = vmatprep.subr.mxu0 0.0
        %1543 = vmatpush1.msra.mxu0 %v1287
        %1544 = vmatprep.subr.mxu0 0.0
        %1545 = vmatpush1.msra.mxu0 %v1288
        %1546 = vmatprep.subr.mxu0 0.0
        %1547 = vmatpush1.msra.mxu0 %v1289
        %1548 = vmatprep.subr.mxu0 0.0
        %1549 = vmatpush1.msra.mxu0 %v1290
        %1550 = vmatprep.subr.mxu0 0.0
        %1551 = vmatpush1.msra.mxu0 %v1291
        %1552 = vmatprep.subr.mxu0 0.0
        %1553 = vmatpush1.msra.mxu0 %v1292
        %1554 = vmatprep.subr.mxu0 0.0
        %1555 = vmatpush1.msra.mxu0 %v1293
        %1556 = vmatprep.subr.mxu0 0.0
        %1557 = vmatpush1.msra.mxu0 %v1294
        %1558 = vmatprep.subr.mxu0 0.0
        %1559 = vmatpush1.msra.mxu0 %v1295
        %1560 = vmatprep.subr.mxu0 0.0
        %1561 = vmatpush1.msra.mxu0 %v1296
        %1562 = vmatprep.subr.mxu0 0.0
        %1563 = vmatpush1.msra.mxu0 %v1297
        %1564 = vmatprep.subr.mxu0 0.0
        %1565 = vmatpush1.msra.mxu0 %v1298
        %1566 = vmatprep.subr.mxu0 0.0
        %1567 = vmatpush1.msra.mxu0 %v1299
        %1568 = vmatprep.subr.mxu0 0.0
        %1569 = vmatpush1.msra.mxu0 %v1300
        %1570 = vmatprep.subr.mxu0 0.0
        %1571 = vmatpush1.msra.mxu0 %v1301
        %1572 = vmatprep.subr.mxu0 0.0
        %1573 = vmatpush1.msra.mxu0 0.0
        %1574 = vmatprep.subr.mxu0 0.0
        %1575 = vmatpush1.msra.mxu0 0.0
        %1576 = vmatprep.subr.mxu0 0.0
        %1577 = vmatpush1.msra.mxu0 0.0
        %1578 = vmatprep.subr.mxu0 0.0
        %1579 = vmatpush1.msra.mxu0 0.0
        %1580 = vmatprep.subr.mxu0 0.0
        %1581 = vmatpush1.msra.mxu0 0.0
        %1582 = vmatprep.subr.mxu0 0.0
        %1583 = vmatpush1.msra.mxu0 0.0
        %1584 = vmatprep.subr.mxu0 0.0
        %1585 = vmatpush1.msra.mxu0 0.0
        %1586 = vmatprep.subr.mxu0 0.0
        %1587 = vmatpush1.msra.mxu0 0.0
        %1588 = vmatprep.subr.mxu0 0.0
        %1589 = vmatpush1.msra.mxu0 0.0
        %1590 = vmatprep.subr.mxu0 0.0
        %1591 = vmatpush1.msra.mxu0 0.0
        %1592 = vmatprep.subr.mxu0 0.0
        %1593 = vmatpush1.msra.mxu0 0.0
        %1594 = vmatprep.subr.mxu0 0.0
        %1595 = vmatpush1.msra.mxu0 0.0
        %1596 = vmatprep.subr.mxu0 0.0
        %1597 = vmatpush1.msra.mxu0 0.0
        %1598 = vmatprep.subr.mxu0 0.0
        %1599 = vmatpush1.msra.mxu0 0.0
        %1600 = vmatprep.subr.mxu0 0.0
        %1601 = vmatpush1.msra.mxu0 0.0
        %1602 = vmatprep.subr.mxu0 0.0
        %1603 = vmatpush1.msra.mxu0 0.0
        %1604 = vmatprep.mubr.f32.mxu0 0.0
        %1605 = vmatmul.mubr.f32.gmra.mrb[0].mxu0 %v865
        %v1606 = vpop.f32.mrb[0].mxu0
        %v1607 = vadd.f32 %v1325, %v1606
        %v1608 = vpop.f32.mrb[0].mxu0
        %1609 = vdwg.mxu0
        %v1610 = vld [vmem:[%s790] sm:$0xff]
        %v1611 = vld [vmem:[%s790 + $0x8] sm:$0xff]
        %v1612 = vld [vmem:[%s790 + $0x10] sm:$0xff]
        %v1613 = vld [vmem:[%s790 + $0x18] sm:$0xff]
        %v1614 = vld [vmem:[%s790 + $0x20] sm:$0xff]
        %v1615 = vld [vmem:[%s790 + $0x28] sm:$0xff]
        %v1616 = vld [vmem:[%s790 + $0x30] sm:$0xff]
        %v1617 = vld [vmem:[%s790 + $0x38] sm:$0xff]
        %v1618 = vld [vmem:[%s790 + $0x40] sm:$0xff]
        %v1619 = vld [vmem:[%s790 + $0x48] sm:$0xff]
        %v1620 = vld [vmem:[%s790 + $0x50] sm:$0xff]
        %v1621 = vld [vmem:[%s790 + $0x58] sm:$0xff]
        %v1622 = vld [vmem:[%s790 + $0x60] sm:$0xff]
        %v1623 = vld [vmem:[%s790 + $0x68] sm:$0xff]
        %v1624 = vld [vmem:[%s790 + $0x70] sm:$0xff]
        %v1625 = vld [vmem:[%s790 + $0x78] sm:$0xff]
        %v1626 = vld [vmem:[%s790 + $0x80] sm:$0xff]
        %v1627 = vld [vmem:[%s790 + $0x88] sm:$0xff]
        %v1628 = vld [vmem:[%s790 + $0x90] sm:$0xff]
        %v1629 = vld [vmem:[%s790 + $0x98] sm:$0xff]
        %v1630 = vld [vmem:[%s790 + $0xa0] sm:$0xff]
        %v1631 = vld [vmem:[%s790 + $0xa8] sm:$0xff]
        %v1632 = vld [vmem:[%s790 + $0xb0] sm:$0xff]
        %v1633 = vld [vmem:[%s790 + $0xb8] sm:$0xff]
        %v1634 = vld [vmem:[%s790 + $0xc0] sm:$0xff]
        %v1635 = vld [vmem:[%s790 + $0xc8] sm:$0xff]
        %v1636 = vld [vmem:[%s790 + $0xd0] sm:$0xff]
        %v1637 = vld [vmem:[%s790 + $0xd8] sm:$0xff]
        %v1638 = vld [vmem:[%s790 + $0xe0] sm:$0xff]
        %v1639 = vld [vmem:[%s790 + $0xe8] sm:$0xff]
        %v1640 = vld [vmem:[%s790 + $0xf0] sm:$0xff]
        %v1641 = vld [vmem:[%s790 + $0xf8] sm:$0xff]
        %v1642 = vld [vmem:[%s790 + $0x100] sm:$0xff]
        %v1643 = vld [vmem:[%s790 + $0x108] sm:$0xff]
        %v1644 = vld [vmem:[%s790 + $0x110] sm:$0xff]
        %v1645 = vld [vmem:[%s790 + $0x118] sm:$0xff]
        %v1646 = vld [vmem:[%s790 + $0x120] sm:$0xff]
        %v1647 = vld [vmem:[%s790 + $0x128] sm:$0xff]
        %v1648 = vld [vmem:[%s790 + $0x130] sm:$0xff]
        %v1649 = vld [vmem:[%s790 + $0x138] sm:$0xff]
        %v1650 = vld [vmem:[%s790 + $0x140] sm:$0xff]
        %v1651 = vld [vmem:[%s790 + $0x148] sm:$0xff]
        %v1652 = vld [vmem:[%s790 + $0x150] sm:$0xff]
        %v1653 = vld [vmem:[%s790 + $0x158] sm:$0xff]
        %v1654 = vld [vmem:[%s790 + $0x160] sm:$0xff]
        %v1655 = vld [vmem:[%s790 + $0x168] sm:$0xff]
        %v1656 = vld [vmem:[%s790 + $0x170] sm:$0xff]
        %v1657 = vld [vmem:[%s790 + $0x178] sm:$0xff]
        %v1658 = vld [vmem:[%s790 + $0x180] sm:$0xff]
        %v1659 = vld [vmem:[%s790 + $0x188] sm:$0xff]
        %v1660 = vld [vmem:[%s790 + $0x190] sm:$0xff]
        %v1661 = vld [vmem:[%s790 + $0x198] sm:$0xff]
        %v1662 = vld [vmem:[%s790 + $0x1a0] sm:$0xff]
        %v1663 = vld [vmem:[%s790 + $0x1a8] sm:$0xff]
        %v1664 = vld [vmem:[%s790 + $0x1b0] sm:$0xff]
        %v1665 = vld [vmem:[%s790 + $0x1b8] sm:$0xff]
        %v1666 = vld [vmem:[%s790 + $0x1c0] sm:$0xff]
        %v1667 = vld [vmem:[%s790 + $0x1c8] sm:$0xff]
        %v1668 = vld [vmem:[%s790 + $0x1d0] sm:$0xff]
        %v1669 = vld [vmem:[%s790 + $0x1d8] sm:$0xff]
        %v1670 = vld [vmem:[%s790 + $0x1e0] sm:$0xff]
        %v1671 = vld [vmem:[%s790 + $0x1e8] sm:$0xff]
        %v1672 = vld [vmem:[%s790 + $0x1f0] sm:$0xff]
        %v1673 = vld [vmem:[%s790 + $0x1f8] sm:$0xff]
        %v1674 = vld [vmem:[%s794] sm:$0x1]
        %v1675 = vld [vmem:[%s794 + $0x1] sm:$0x1]
        %v1676 = vld [vmem:[%s794 + $0x2] sm:$0x1]
        %v1677 = vld [vmem:[%s794 + $0x3] sm:$0x1]
        %v1682 = vlaneseq
        %v1683 = vshrl.u32 %v1682, 7
        %v1684 = vsub.s32 0, %v1683
        %v1685 = vrot.slane %v1674, %v1684
        %v1686 = vlaneseq
        %v1687 = vshrl.u32 %v1686, 7
        %v1688 = vsub.s32 0, %v1687
        %v1689 = vrot.slane %v1675, %v1688
        %v1690 = vlaneseq
        %v1691 = vshrl.u32 %v1690, 7
        %v1692 = vsub.s32 0, %v1691
        %v1693 = vrot.slane %v1676, %v1692
        %v1694 = vlaneseq
        %v1695 = vshrl.u32 %v1694, 7
        %v1696 = vsub.s32 0, %v1695
        %v1697 = vrot.slane %v1677, %v1696
        %1702 = vmatprep.subr.mxu0 0.0
        %1703 = vmatpush1.msra.mxu0 %v1610
        %1704 = vmatprep.subr.mxu0 0.0
        %1705 = vmatpush1.msra.mxu0 %v1611
        %1706 = vmatprep.subr.mxu0 0.0
        %1707 = vmatpush1.msra.mxu0 %v1612
        %1708 = vmatprep.subr.mxu0 0.0
        %1709 = vmatpush1.msra.mxu0 %v1613
        %1710 = vmatprep.subr.mxu0 0.0
        %1711 = vmatpush1.msra.mxu0 %v1614
        %1712 = vmatprep.subr.mxu0 0.0
        %1713 = vmatpush1.msra.mxu0 %v1615
        %1714 = vmatprep.subr.mxu0 0.0
        %1715 = vmatpush1.msra.mxu0 %v1616
        %1716 = vmatprep.subr.mxu0 0.0
        %1717 = vmatpush1.msra.mxu0 %v1617
        %1718 = vmatprep.subr.mxu0 0.0
        %1719 = vmatpush1.msra.mxu0 %v1618
        %1720 = vmatprep.subr.mxu0 0.0
        %1721 = vmatpush1.msra.mxu0 %v1619
        %1722 = vmatprep.subr.mxu0 0.0
        %1723 = vmatpush1.msra.mxu0 %v1620
        %1724 = vmatprep.subr.mxu0 0.0
        %1725 = vmatpush1.msra.mxu0 %v1621
        %1726 = vmatprep.subr.mxu0 0.0
        %1727 = vmatpush1.msra.mxu0 %v1622
        %1728 = vmatprep.subr.mxu0 0.0
        %1729 = vmatpush1.msra.mxu0 %v1623
        %1730 = vmatprep.subr.mxu0 0.0
        %1731 = vmatpush1.msra.mxu0 %v1624
        %1732 = vmatprep.subr.mxu0 0.0
        %1733 = vmatpush1.msra.mxu0 %v1625
        %1734 = vmatprep.subr.mxu0 0.0
        %1735 = vmatpush1.msra.mxu0 0.0
        %1736 = vmatprep.subr.mxu0 0.0
        %1737 = vmatpush1.msra.mxu0 0.0
        %1738 = vmatprep.subr.mxu0 0.0
        %1739 = vmatpush1.msra.mxu0 0.0
        %1740 = vmatprep.subr.mxu0 0.0
        %1741 = vmatpush1.msra.mxu0 0.0
        %1742 = vmatprep.subr.mxu0 0.0
        %1743 = vmatpush1.msra.mxu0 0.0
        %1744 = vmatprep.subr.mxu0 0.0
        %1745 = vmatpush1.msra.mxu0 0.0
        %1746 = vmatprep.subr.mxu0 0.0
        %1747 = vmatpush1.msra.mxu0 0.0
        %1748 = vmatprep.subr.mxu0 0.0
        %1749 = vmatpush1.msra.mxu0 0.0
        %1750 = vmatprep.subr.mxu0 0.0
        %1751 = vmatpush1.msra.mxu0 0.0
        %1752 = vmatprep.subr.mxu0 0.0
        %1753 = vmatpush1.msra.mxu0 0.0
        %1754 = vmatprep.subr.mxu0 0.0
        %1755 = vmatpush1.msra.mxu0 0.0
        %1756 = vmatprep.subr.mxu0 0.0
        %1757 = vmatpush1.msra.mxu0 0.0
        %1758 = vmatprep.subr.mxu0 0.0
        %1759 = vmatpush1.msra.mxu0 0.0
        %1760 = vmatprep.subr.mxu0 0.0
        %1761 = vmatpush1.msra.mxu0 0.0
        %1762 = vmatprep.subr.mxu0 0.0
        %1763 = vmatpush1.msra.mxu0 0.0
        %1764 = vmatprep.subr.mxu0 0.0
        %1765 = vmatpush1.msra.mxu0 0.0
        %1766 = vmatprep.mubr.f32.mxu0 0.0
        %1767 = vmatmul.mubr.f32.gmra.mrb[0].mxu0 %v865
        %v1768 = vpop.f32.mrb[0].mxu0
        %v1769 = vadd.f32 %v1685, %v1768
        %v1770 = vpop.f32.mrb[0].mxu0
        %1771 = vdwg.mxu0
        %1772 = vmatprep.subr.mxu0 0.0
        %1773 = vmatpush1.msra.mxu0 %v1626
        %1774 = vmatprep.subr.mxu0 0.0
        %1775 = vmatpush1.msra.mxu0 %v1627
        %1776 = vmatprep.subr.mxu0 0.0
        %1777 = vmatpush1.msra.mxu0 %v1628
        %1778 = vmatprep.subr.mxu0 0.0
        %1779 = vmatpush1.msra.mxu0 %v1629
        %1780 = vmatprep.subr.mxu0 0.0
        %1781 = vmatpush1.msra.mxu0 %v1630
        %1782 = vmatprep.subr.mxu0 0.0
        %1783 = vmatpush1.msra.mxu0 %v1631
        %1784 = vmatprep.subr.mxu0 0.0
        %1785 = vmatpush1.msra.mxu0 %v1632
        %1786 = vmatprep.subr.mxu0 0.0
        %1787 = vmatpush1.msra.mxu0 %v1633
        %1788 = vmatprep.subr.mxu0 0.0
        %1789 = vmatpush1.msra.mxu0 %v1634
        %1790 = vmatprep.subr.mxu0 0.0
        %1791 = vmatpush1.msra.mxu0 %v1635
        %1792 = vmatprep.subr.mxu0 0.0
        %1793 = vmatpush1.msra.mxu0 %v1636
        %1794 = vmatprep.subr.mxu0 0.0
        %1795 = vmatpush1.msra.mxu0 %v1637
        %1796 = vmatprep.subr.mxu0 0.0
        %1797 = vmatpush1.msra.mxu0 %v1638
        %1798 = vmatprep.subr.mxu0 0.0
        %1799 = vmatpush1.msra.mxu0 %v1639
        %1800 = vmatprep.subr.mxu0 0.0
        %1801 = vmatpush1.msra.mxu0 %v1640
        %1802 = vmatprep.subr.mxu0 0.0
        %1803 = vmatpush1.msra.mxu0 %v1641
        %1804 = vmatprep.subr.mxu0 0.0
        %1805 = vmatpush1.msra.mxu0 0.0
        %1806 = vmatprep.subr.mxu0 0.0
        %1807 = vmatpush1.msra.mxu0 0.0
        %1808 = vmatprep.subr.mxu0 0.0
        %1809 = vmatpush1.msra.mxu0 0.0
        %1810 = vmatprep.subr.mxu0 0.0
        %1811 = vmatpush1.msra.mxu0 0.0
        %1812 = vmatprep.subr.mxu0 0.0
        %1813 = vmatpush1.msra.mxu0 0.0
        %1814 = vmatprep.subr.mxu0 0.0
        %1815 = vmatpush1.msra.mxu0 0.0
        %1816 = vmatprep.subr.mxu0 0.0
        %1817 = vmatpush1.msra.mxu0 0.0
        %1818 = vmatprep.subr.mxu0 0.0
        %1819 = vmatpush1.msra.mxu0 0.0
        %1820 = vmatprep.subr.mxu0 0.0
        %1821 = vmatpush1.msra.mxu0 0.0
        %1822 = vmatprep.subr.mxu0 0.0
        %1823 = vmatpush1.msra.mxu0 0.0
        %1824 = vmatprep.subr.mxu0 0.0
        %1825 = vmatpush1.msra.mxu0 0.0
        %1826 = vmatprep.subr.mxu0 0.0
        %1827 = vmatpush1.msra.mxu0 0.0
        %1828 = vmatprep.subr.mxu0 0.0
        %1829 = vmatpush1.msra.mxu0 0.0
        %1830 = vmatprep.subr.mxu0 0.0
        %1831 = vmatpush1.msra.mxu0 0.0
        %1832 = vmatprep.subr.mxu0 0.0
        %1833 = vmatpush1.msra.mxu0 0.0
        %1834 = vmatprep.subr.mxu0 0.0
        %1835 = vmatpush1.msra.mxu0 0.0
        %1836 = vmatprep.mubr.f32.mxu0 0.0
        %1837 = vmatmul.mubr.f32.gmra.mrb[0].mxu0 %v865
        %v1838 = vpop.f32.mrb[0].mxu0
        %v1839 = vadd.f32 %v1689, %v1838
        %v1840 = vpop.f32.mrb[0].mxu0
        %1841 = vdwg.mxu0
        %1842 = vmatprep.subr.mxu0 0.0
        %1843 = vmatpush1.msra.mxu0 %v1642
        %1844 = vmatprep.subr.mxu0 0.0
        %1845 = vmatpush1.msra.mxu0 %v1643
        %1846 = vmatprep.subr.mxu0 0.0
        %1847 = vmatpush1.msra.mxu0 %v1644
        %1848 = vmatprep.subr.mxu0 0.0
        %1849 = vmatpush1.msra.mxu0 %v1645
        %1850 = vmatprep.subr.mxu0 0.0
        %1851 = vmatpush1.msra.mxu0 %v1646
        %1852 = vmatprep.subr.mxu0 0.0
        %1853 = vmatpush1.msra.mxu0 %v1647
        %1854 = vmatprep.subr.mxu0 0.0
        %1855 = vmatpush1.msra.mxu0 %v1648
        %1856 = vmatprep.subr.mxu0 0.0
        %1857 = vmatpush1.msra.mxu0 %v1649
        %1858 = vmatprep.subr.mxu0 0.0
        %1859 = vmatpush1.msra.mxu0 %v1650
        %1860 = vmatprep.subr.mxu0 0.0
        %1861 = vmatpush1.msra.mxu0 %v1651
        %1862 = vmatprep.subr.mxu0 0.0
        %1863 = vmatpush1.msra.mxu0 %v1652
        %1864 = vmatprep.subr.mxu0 0.0
        %1865 = vmatpush1.msra.mxu0 %v1653
        %1866 = vmatprep.subr.mxu0 0.0
        %1867 = vmatpush1.msra.mxu0 %v1654
        %1868 = vmatprep.subr.mxu0 0.0
        %1869 = vmatpush1.msra.mxu0 %v1655
        %1870 = vmatprep.subr.mxu0 0.0
        %1871 = vmatpush1.msra.mxu0 %v1656
        %1872 = vmatprep.subr.mxu0 0.0
        %1873 = vmatpush1.msra.mxu0 %v1657
        %1874 = vmatprep.subr.mxu0 0.0
        %1875 = vmatpush1.msra.mxu0 0.0
        %1876 = vmatprep.subr.mxu0 0.0
        %1877 = vmatpush1.msra.mxu0 0.0
        %1878 = vmatprep.subr.mxu0 0.0
        %1879 = vmatpush1.msra.mxu0 0.0
        %1880 = vmatprep.subr.mxu0 0.0
        %1881 = vmatpush1.msra.mxu0 0.0
        %1882 = vmatprep.subr.mxu0 0.0
        %1883 = vmatpush1.msra.mxu0 0.0
        %1884 = vmatprep.subr.mxu0 0.0
        %1885 = vmatpush1.msra.mxu0 0.0
        %1886 = vmatprep.subr.mxu0 0.0
        %1887 = vmatpush1.msra.mxu0 0.0
        %1888 = vmatprep.subr.mxu0 0.0
        %1889 = vmatpush1.msra.mxu0 0.0
        %1890 = vmatprep.subr.mxu0 0.0
        %1891 = vmatpush1.msra.mxu0 0.0
        %1892 = vmatprep.subr.mxu0 0.0
        %1893 = vmatpush1.msra.mxu0 0.0
        %1894 = vmatprep.subr.mxu0 0.0
        %1895 = vmatpush1.msra.mxu0 0.0
        %1896 = vmatprep.subr.mxu0 0.0
        %1897 = vmatpush1.msra.mxu0 0.0
        %1898 = vmatprep.subr.mxu0 0.0
        %1899 = vmatpush1.msra.mxu0 0.0
        %1900 = vmatprep.subr.mxu0 0.0
        %1901 = vmatpush1.msra.mxu0 0.0
        %1902 = vmatprep.subr.mxu0 0.0
        %1903 = vmatpush1.msra.mxu0 0.0
        %1904 = vmatprep.subr.mxu0 0.0
        %1905 = vmatpush1.msra.mxu0 0.0
        %1906 = vmatprep.mubr.f32.mxu0 0.0
        %1907 = vmatmul.mubr.f32.gmra.mrb[0].mxu0 %v865
        %v1908 = vpop.f32.mrb[0].mxu0
        %v1909 = vadd.f32 %v1693, %v1908
        %v1910 = vpop.f32.mrb[0].mxu0
        %1911 = vdwg.mxu0
        %1912 = vmatprep.subr.mxu0 0.0
        %1913 = vmatpush1.msra.mxu0 %v1658
        %1914 = vmatprep.subr.mxu0 0.0
        %1915 = vmatpush1.msra.mxu0 %v1659
        %1916 = vmatprep.subr.mxu0 0.0
        %1917 = vmatpush1.msra.mxu0 %v1660
        %1918 = vmatprep.subr.mxu0 0.0
        %1919 = vmatpush1.msra.mxu0 %v1661
        %1920 = vmatprep.subr.mxu0 0.0
        %1921 = vmatpush1.msra.mxu0 %v1662
        %1922 = vmatprep.subr.mxu0 0.0
        %1923 = vmatpush1.msra.mxu0 %v1663
        %1924 = vmatprep.subr.mxu0 0.0
        %1925 = vmatpush1.msra.mxu0 %v1664
        %1926 = vmatprep.subr.mxu0 0.0
        %1927 = vmatpush1.msra.mxu0 %v1665
        %1928 = vmatprep.subr.mxu0 0.0
        %1929 = vmatpush1.msra.mxu0 %v1666
        %1930 = vmatprep.subr.mxu0 0.0
        %1931 = vmatpush1.msra.mxu0 %v1667
        %1932 = vmatprep.subr.mxu0 0.0
        %1933 = vmatpush1.msra.mxu0 %v1668
        %1934 = vmatprep.subr.mxu0 0.0
        %1935 = vmatpush1.msra.mxu0 %v1669
        %1936 = vmatprep.subr.mxu0 0.0
        %1937 = vmatpush1.msra.mxu0 %v1670
        %1938 = vmatprep.subr.mxu0 0.0
        %1939 = vmatpush1.msra.mxu0 %v1671
        %1940 = vmatprep.subr.mxu0 0.0
        %1941 = vmatpush1.msra.mxu0 %v1672
        %1942 = vmatprep.subr.mxu0 0.0
        %1943 = vmatpush1.msra.mxu0 %v1673
        %1944 = vmatprep.subr.mxu0 0.0
        %1945 = vmatpush1.msra.mxu0 0.0
        %1946 = vmatprep.subr.mxu0 0.0
        %1947 = vmatpush1.msra.mxu0 0.0
        %1948 = vmatprep.subr.mxu0 0.0
        %1949 = vmatpush1.msra.mxu0 0.0
        %1950 = vmatprep.subr.mxu0 0.0
        %1951 = vmatpush1.msra.mxu0 0.0
        %1952 = vmatprep.subr.mxu0 0.0
        %1953 = vmatpush1.msra.mxu0 0.0
        %1954 = vmatprep.subr.mxu0 0.0
        %1955 = vmatpush1.msra.mxu0 0.0
        %1956 = vmatprep.subr.mxu0 0.0
        %1957 = vmatpush1.msra.mxu0 0.0
        %1958 = vmatprep.subr.mxu0 0.0
        %1959 = vmatpush1.msra.mxu0 0.0
        %1960 = vmatprep.subr.mxu0 0.0
        %1961 = vmatpush1.msra.mxu0 0.0
        %1962 = vmatprep.subr.mxu0 0.0
        %1963 = vmatpush1.msra.mxu0 0.0
        %1964 = vmatprep.subr.mxu0 0.0
        %1965 = vmatpush1.msra.mxu0 0.0
        %1966 = vmatprep.subr.mxu0 0.0
        %1967 = vmatpush1.msra.mxu0 0.0
        %1968 = vmatprep.subr.mxu0 0.0
        %1969 = vmatpush1.msra.mxu0 0.0
        %1970 = vmatprep.subr.mxu0 0.0
        %1971 = vmatpush1.msra.mxu0 0.0
        %1972 = vmatprep.subr.mxu0 0.0
        %1973 = vmatpush1.msra.mxu0 0.0
        %1974 = vmatprep.subr.mxu0 0.0
        %1975 = vmatpush1.msra.mxu0 0.0
        %1976 = vmatprep.mubr.f32.mxu0 0.0
        %1977 = vmatmul.mubr.f32.gmra.mrb[0].mxu0 %v865
        %v1978 = vpop.f32.mrb[0].mxu0
        %v1979 = vadd.f32 %v1697, %v1978
        %v1980 = vpop.f32.mrb[0].mxu0
        %1981 = vdwg.mxu0
        %s1982 = scalar_lea.vmem %s1, %s835
        %v1983 = vld [vmem:[%s1982] sm:$0xff]
        %vm1984 = vcmask 261120
        %v1986 = vsel %vm1984, %v1025, 0
        %v1989 = vsel %vm1984, %v1397, 0
        %1991 = vmatprep.subr.mxu0 0.0
        %1992 = vmatpush1.xpose.msra.mxu0 %v1989
        %1993 = vmatprep.subr.mxu0 0.0
        %1994 = vmatpush1.xpose.msra.mxu0 0.0
        %1995 = vmatprep.subr.mxu0 0.0
        %1996 = vmatpush1.xpose.msra.mxu0 0.0
        %1997 = vmatprep.subr.mxu0 0.0
        %1998 = vmatpush1.xpose.msra.mxu0 0.0
        %1999 = vmatprep.subr.mxu0 0.0
        %2000 = vmatpush1.xpose.msra.mxu0 0.0
        %2001 = vmatprep.subr.mxu0 0.0
        %2002 = vmatpush1.xpose.msra.mxu0 0.0
        %2003 = vmatprep.subr.mxu0 0.0
        %2004 = vmatpush1.xpose.msra.mxu0 0.0
        %2005 = vmatprep.subr.mxu0 0.0
        %2006 = vmatpush1.xpose.msra.mxu0 0.0
        %2007 = vmatprep.subr.mxu0 0.0
        %2008 = vmatpush1.xpose.msra.mxu0 0.0
        %2009 = vmatprep.subr.mxu0 0.0
        %2010 = vmatpush1.xpose.msra.mxu0 0.0
        %2011 = vmatprep.subr.mxu0 0.0
        %2012 = vmatpush1.xpose.msra.mxu0 0.0
        %2013 = vmatprep.subr.mxu0 0.0
        %2014 = vmatpush1.xpose.msra.mxu0 0.0
        %2015 = vmatprep.subr.mxu0 0.0
        %2016 = vmatpush1.xpose.msra.mxu0 0.0
        %2017 = vmatprep.subr.mxu0 0.0
        %2018 = vmatpush1.xpose.msra.mxu0 0.0
        %2019 = vmatprep.subr.mxu0 0.0
        %2020 = vmatpush1.xpose.msra.mxu0 0.0
        %2021 = vmatprep.subr.mxu0 0.0
        %2022 = vmatpush1.xpose.msra.mxu0 0.0
        %2023 = vmatprep.subr.mxu0 0.0
        %2024 = vmatpush1.xpose.msra.mxu0 0.0
        %2025 = vmatprep.subr.mxu0 0.0
        %2026 = vmatpush1.xpose.msra.mxu0 0.0
        %2027 = vmatprep.subr.mxu0 0.0
        %2028 = vmatpush1.xpose.msra.mxu0 0.0
        %2029 = vmatprep.subr.mxu0 0.0
        %2030 = vmatpush1.xpose.msra.mxu0 0.0
        %2031 = vmatprep.subr.mxu0 0.0
        %2032 = vmatpush1.xpose.msra.mxu0 0.0
        %2033 = vmatprep.subr.mxu0 0.0
        %2034 = vmatpush1.xpose.msra.mxu0 0.0
        %2035 = vmatprep.subr.mxu0 0.0
        %2036 = vmatpush1.xpose.msra.mxu0 0.0
        %2037 = vmatprep.subr.mxu0 0.0
        %2038 = vmatpush1.xpose.msra.mxu0 0.0
        %2039 = vmatprep.subr.mxu0 0.0
        %2040 = vmatpush1.xpose.msra.mxu0 0.0
        %2041 = vmatprep.subr.mxu0 0.0
        %2042 = vmatpush1.xpose.msra.mxu0 0.0
        %2043 = vmatprep.subr.mxu0 0.0
        %2044 = vmatpush1.xpose.msra.mxu0 0.0
        %2045 = vmatprep.subr.mxu0 0.0
        %2046 = vmatpush1.xpose.msra.mxu0 0.0
        %2047 = vmatprep.subr.mxu0 0.0
        %2048 = vmatpush1.xpose.msra.mxu0 0.0
        %2049 = vmatprep.subr.mxu0 0.0
        %2050 = vmatpush1.xpose.msra.mxu0 0.0
        %2051 = vmatprep.subr.mxu0 0.0
        %2052 = vmatpush1.xpose.msra.mxu0 0.0
        %2053 = vmatprep.subr.mxu0 0.0
        %2054 = vmatpush1.xpose.msra.mxu0 0.0
        %2055 = vmatprep.mubr.f32.mxu0 0.0
        %2056 = vmatmul.mubr.f32.gmra.mrb[0].mxu0 %v1986
        %v2057 = vpop.f32.mrb[0].mxu0
        %v2058 = vadd.f32 %v1983, %v2057
        %v2059 = vpop.f32.mrb[0].mxu0
        %2060 = vdwg.mxu0
        %v2062 = vsel %vm1984, %v1095, 0
        %v2065 = vsel %vm1984, %v1467, 0
        %2067 = vmatprep.subr.mxu0 0.0
        %2068 = vmatpush1.xpose.msra.mxu0 %v2065
        %2069 = vmatprep.subr.mxu0 0.0
        %2070 = vmatpush1.xpose.msra.mxu0 0.0
        %2071 = vmatprep.subr.mxu0 0.0
        %2072 = vmatpush1.xpose.msra.mxu0 0.0
        %2073 = vmatprep.subr.mxu0 0.0
        %2074 = vmatpush1.xpose.msra.mxu0 0.0
        %2075 = vmatprep.subr.mxu0 0.0
        %2076 = vmatpush1.xpose.msra.mxu0 0.0
        %2077 = vmatprep.subr.mxu0 0.0
        %2078 = vmatpush1.xpose.msra.mxu0 0.0
        %2079 = vmatprep.subr.mxu0 0.0
        %2080 = vmatpush1.xpose.msra.mxu0 0.0
        %2081 = vmatprep.subr.mxu0 0.0
        %2082 = vmatpush1.xpose.msra.mxu0 0.0
        %2083 = vmatprep.subr.mxu0 0.0
        %2084 = vmatpush1.xpose.msra.mxu0 0.0
        %2085 = vmatprep.subr.mxu0 0.0
        %2086 = vmatpush1.xpose.msra.mxu0 0.0
        %2087 = vmatprep.subr.mxu0 0.0
        %2088 = vmatpush1.xpose.msra.mxu0 0.0
        %2089 = vmatprep.subr.mxu0 0.0
        %2090 = vmatpush1.xpose.msra.mxu0 0.0
        %2091 = vmatprep.subr.mxu0 0.0
        %2092 = vmatpush1.xpose.msra.mxu0 0.0
        %2093 = vmatprep.subr.mxu0 0.0
        %2094 = vmatpush1.xpose.msra.mxu0 0.0
        %2095 = vmatprep.subr.mxu0 0.0
        %2096 = vmatpush1.xpose.msra.mxu0 0.0
        %2097 = vmatprep.subr.mxu0 0.0
        %2098 = vmatpush1.xpose.msra.mxu0 0.0
        %2099 = vmatprep.subr.mxu0 0.0
        %2100 = vmatpush1.xpose.msra.mxu0 0.0
        %2101 = vmatprep.subr.mxu0 0.0
        %2102 = vmatpush1.xpose.msra.mxu0 0.0
        %2103 = vmatprep.subr.mxu0 0.0
        %2104 = vmatpush1.xpose.msra.mxu0 0.0
        %2105 = vmatprep.subr.mxu0 0.0
        %2106 = vmatpush1.xpose.msra.mxu0 0.0
        %2107 = vmatprep.subr.mxu0 0.0
        %2108 = vmatpush1.xpose.msra.mxu0 0.0
        %2109 = vmatprep.subr.mxu0 0.0
        %2110 = vmatpush1.xpose.msra.mxu0 0.0
        %2111 = vmatprep.subr.mxu0 0.0
        %2112 = vmatpush1.xpose.msra.mxu0 0.0
        %2113 = vmatprep.subr.mxu0 0.0
        %2114 = vmatpush1.xpose.msra.mxu0 0.0
        %2115 = vmatprep.subr.mxu0 0.0
        %2116 = vmatpush1.xpose.msra.mxu0 0.0
        %2117 = vmatprep.subr.mxu0 0.0
        %2118 = vmatpush1.xpose.msra.mxu0 0.0
        %2119 = vmatprep.subr.mxu0 0.0
        %2120 = vmatpush1.xpose.msra.mxu0 0.0
        %2121 = vmatprep.subr.mxu0 0.0
        %2122 = vmatpush1.xpose.msra.mxu0 0.0
        %2123 = vmatprep.subr.mxu0 0.0
        %2124 = vmatpush1.xpose.msra.mxu0 0.0
        %2125 = vmatprep.subr.mxu0 0.0
        %2126 = vmatpush1.xpose.msra.mxu0 0.0
        %2127 = vmatprep.subr.mxu0 0.0
        %2128 = vmatpush1.xpose.msra.mxu0 0.0
        %2129 = vmatprep.subr.mxu0 0.0
        %2130 = vmatpush1.xpose.msra.mxu0 0.0
        %2131 = vmatprep.mubr.f32.mxu0 0.0
        %2132 = vmatmul.mubr.f32.gmra.mrb[0].mxu0 %v2062
        %v2133 = vpop.f32.mrb[0].mxu0
        %v2134 = vadd.f32 %v1983, %v2133
        %v2135 = vpop.f32.mrb[0].mxu0
        %2136 = vdwg.mxu0
        %v2138 = vsel %vm1984, %v1165, 0
        %v2141 = vsel %vm1984, %v1537, 0
        %2143 = vmatprep.subr.mxu0 0.0
        %2144 = vmatpush1.xpose.msra.mxu0 %v2141
        %2145 = vmatprep.subr.mxu0 0.0
        %2146 = vmatpush1.xpose.msra.mxu0 0.0
        %2147 = vmatprep.subr.mxu0 0.0
        %2148 = vmatpush1.xpose.msra.mxu0 0.0
        %2149 = vmatprep.subr.mxu0 0.0
        %2150 = vmatpush1.xpose.msra.mxu0 0.0
        %2151 = vmatprep.subr.mxu0 0.0
        %2152 = vmatpush1.xpose.msra.mxu0 0.0
        %2153 = vmatprep.subr.mxu0 0.0
        %2154 = vmatpush1.xpose.msra.mxu0 0.0
        %2155 = vmatprep.subr.mxu0 0.0
        %2156 = vmatpush1.xpose.msra.mxu0 0.0
        %2157 = vmatprep.subr.mxu0 0.0
        %2158 = vmatpush1.xpose.msra.mxu0 0.0
        %2159 = vmatprep.subr.mxu0 0.0
        %2160 = vmatpush1.xpose.msra.mxu0 0.0
        %2161 = vmatprep.subr.mxu0 0.0
        %2162 = vmatpush1.xpose.msra.mxu0 0.0
        %2163 = vmatprep.subr.mxu0 0.0
        %2164 = vmatpush1.xpose.msra.mxu0 0.0
        %2165 = vmatprep.subr.mxu0 0.0
        %2166 = vmatpush1.xpose.msra.mxu0 0.0
        %2167 = vmatprep.subr.mxu0 0.0
        %2168 = vmatpush1.xpose.msra.mxu0 0.0
        %2169 = vmatprep.subr.mxu0 0.0
        %2170 = vmatpush1.xpose.msra.mxu0 0.0
        %2171 = vmatprep.subr.mxu0 0.0
        %2172 = vmatpush1.xpose.msra.mxu0 0.0
        %2173 = vmatprep.subr.mxu0 0.0
        %2174 = vmatpush1.xpose.msra.mxu0 0.0
        %2175 = vmatprep.subr.mxu0 0.0
        %2176 = vmatpush1.xpose.msra.mxu0 0.0
        %2177 = vmatprep.subr.mxu0 0.0
        %2178 = vmatpush1.xpose.msra.mxu0 0.0
        %2179 = vmatprep.subr.mxu0 0.0
        %2180 = vmatpush1.xpose.msra.mxu0 0.0
        %2181 = vmatprep.subr.mxu0 0.0
        %2182 = vmatpush1.xpose.msra.mxu0 0.0
        %2183 = vmatprep.subr.mxu0 0.0
        %2184 = vmatpush1.xpose.msra.mxu0 0.0
        %2185 = vmatprep.subr.mxu0 0.0
        %2186 = vmatpush1.xpose.msra.mxu0 0.0
        %2187 = vmatprep.subr.mxu0 0.0
        %2188 = vmatpush1.xpose.msra.mxu0 0.0
        %2189 = vmatprep.subr.mxu0 0.0
        %2190 = vmatpush1.xpose.msra.mxu0 0.0
        %2191 = vmatprep.subr.mxu0 0.0
        %2192 = vmatpush1.xpose.msra.mxu0 0.0
        %2193 = vmatprep.subr.mxu0 0.0
        %2194 = vmatpush1.xpose.msra.mxu0 0.0
        %2195 = vmatprep.subr.mxu0 0.0
        %2196 = vmatpush1.xpose.msra.mxu0 0.0
        %2197 = vmatprep.subr.mxu0 0.0
        %2198 = vmatpush1.xpose.msra.mxu0 0.0
        %2199 = vmatprep.subr.mxu0 0.0
        %2200 = vmatpush1.xpose.msra.mxu0 0.0
        %2201 = vmatprep.subr.mxu0 0.0
        %2202 = vmatpush1.xpose.msra.mxu0 0.0
        %2203 = vmatprep.subr.mxu0 0.0
        %2204 = vmatpush1.xpose.msra.mxu0 0.0
        %2205 = vmatprep.subr.mxu0 0.0
        %2206 = vmatpush1.xpose.msra.mxu0 0.0
        %2207 = vmatprep.mubr.f32.mxu0 0.0
        %2208 = vmatmul.mubr.f32.gmra.mrb[0].mxu0 %v2138
        %v2209 = vpop.f32.mrb[0].mxu0
        %v2210 = vadd.f32 %v1983, %v2209
        %v2211 = vpop.f32.mrb[0].mxu0
        %2212 = vdwg.mxu0
        %v2214 = vsel %vm1984, %v1235, 0
        %v2217 = vsel %vm1984, %v1607, 0
        %2219 = vmatprep.subr.mxu0 0.0
        %2220 = vmatpush1.xpose.msra.mxu0 %v2217
        %2221 = vmatprep.subr.mxu0 0.0
        %2222 = vmatpush1.xpose.msra.mxu0 0.0
        %2223 = vmatprep.subr.mxu0 0.0
        %2224 = vmatpush1.xpose.msra.mxu0 0.0
        %2225 = vmatprep.subr.mxu0 0.0
        %2226 = vmatpush1.xpose.msra.mxu0 0.0
        %2227 = vmatprep.subr.mxu0 0.0
        %2228 = vmatpush1.xpose.msra.mxu0 0.0
        %2229 = vmatprep.subr.mxu0 0.0
        %2230 = vmatpush1.xpose.msra.mxu0 0.0
        %2231 = vmatprep.subr.mxu0 0.0
        %2232 = vmatpush1.xpose.msra.mxu0 0.0
        %2233 = vmatprep.subr.mxu0 0.0
        %2234 = vmatpush1.xpose.msra.mxu0 0.0
        %2235 = vmatprep.subr.mxu0 0.0
        %2236 = vmatpush1.xpose.msra.mxu0 0.0
        %2237 = vmatprep.subr.mxu0 0.0
        %2238 = vmatpush1.xpose.msra.mxu0 0.0
        %2239 = vmatprep.subr.mxu0 0.0
        %2240 = vmatpush1.xpose.msra.mxu0 0.0
        %2241 = vmatprep.subr.mxu0 0.0
        %2242 = vmatpush1.xpose.msra.mxu0 0.0
        %2243 = vmatprep.subr.mxu0 0.0
        %2244 = vmatpush1.xpose.msra.mxu0 0.0
        %2245 = vmatprep.subr.mxu0 0.0
        %2246 = vmatpush1.xpose.msra.mxu0 0.0
        %2247 = vmatprep.subr.mxu0 0.0
        %2248 = vmatpush1.xpose.msra.mxu0 0.0
        %2249 = vmatprep.subr.mxu0 0.0
        %2250 = vmatpush1.xpose.msra.mxu0 0.0
        %2251 = vmatprep.subr.mxu0 0.0
        %2252 = vmatpush1.xpose.msra.mxu0 0.0
        %2253 = vmatprep.subr.mxu0 0.0
        %2254 = vmatpush1.xpose.msra.mxu0 0.0
        %2255 = vmatprep.subr.mxu0 0.0
        %2256 = vmatpush1.xpose.msra.mxu0 0.0
        %2257 = vmatprep.subr.mxu0 0.0
        %2258 = vmatpush1.xpose.msra.mxu0 0.0
        %2259 = vmatprep.subr.mxu0 0.0
        %2260 = vmatpush1.xpose.msra.mxu0 0.0
        %2261 = vmatprep.subr.mxu0 0.0
        %2262 = vmatpush1.xpose.msra.mxu0 0.0
        %2263 = vmatprep.subr.mxu0 0.0
        %2264 = vmatpush1.xpose.msra.mxu0 0.0
        %2265 = vmatprep.subr.mxu0 0.0
        %2266 = vmatpush1.xpose.msra.mxu0 0.0
        %2267 = vmatprep.subr.mxu0 0.0
        %2268 = vmatpush1.xpose.msra.mxu0 0.0
        %2269 = vmatprep.subr.mxu0 0.0
        %2270 = vmatpush1.xpose.msra.mxu0 0.0
        %2271 = vmatprep.subr.mxu0 0.0
        %2272 = vmatpush1.xpose.msra.mxu0 0.0
        %2273 = vmatprep.subr.mxu0 0.0
        %2274 = vmatpush1.xpose.msra.mxu0 0.0
        %2275 = vmatprep.subr.mxu0 0.0
        %2276 = vmatpush1.xpose.msra.mxu0 0.0
        %2277 = vmatprep.subr.mxu0 0.0
        %2278 = vmatpush1.xpose.msra.mxu0 0.0
        %2279 = vmatprep.subr.mxu0 0.0
        %2280 = vmatpush1.xpose.msra.mxu0 0.0
        %2281 = vmatprep.subr.mxu0 0.0
        %2282 = vmatpush1.xpose.msra.mxu0 0.0
        %2283 = vmatprep.mubr.f32.mxu0 0.0
        %2284 = vmatmul.mubr.f32.gmra.mrb[0].mxu0 %v2214
        %v2285 = vpop.f32.mrb[0].mxu0
        %v2286 = vadd.f32 %v1983, %v2285
        %v2287 = vpop.f32.mrb[0].mxu0
        %2288 = vdwg.mxu0
        %vm2289 = vcmask 64512
        %v2290 = vsel %vm2289, %v2058, -inf
        %2291 = vmax.xlane.f32.xlu0 %v2290
        %v2292 = vpop.xlane.xlu0 %2291
        %v2293 = vsel %vm2289, %v2134, -inf
        %2294 = vmax.xlane.f32.xlu0 %v2293
        %v2295 = vpop.xlane.xlu0 %2294
        %v2296 = vsel %vm2289, %v2210, -inf
        %2297 = vmax.xlane.f32.xlu0 %v2296
        %v2298 = vpop.xlane.xlu0 %2297
        %v2299 = vsel %vm2289, %v2286, -inf
        %2300 = vmax.xlane.f32.xlu0 %v2299
        %v2301 = vpop.xlane.xlu0 %2300
        %v2302 = vsub.f32 %v2058, %v2292
        %v2303 = vsub.f32 %v2134, %v2295
        %v2304 = vsub.f32 %v2210, %v2298
        %v2305 = vsub.f32 %v2286, %v2301
        %v2306 = vmul.f32 %v2302, 1.442695
        %v2307 = vpow.pop %v2306
        %v2308 = vmul.f32 %v2303, 1.442695
        %v2309 = vpow.pop %v2308
        %v2310 = vmul.f32 %v2304, 1.442695
        %v2311 = vpow.pop %v2310
        %v2312 = vmul.f32 %v2305, 1.442695
        %v2313 = vpow.pop %v2312
        %v2314 = vsel %vm2289, %v2307, 0.0
        %2315 = vadd.xlane.f32.xlu0 %v2314
        %v2316 = vpop.xlane.xlu0 %2315
        %v2317 = vsel %vm2289, %v2309, 0.0
        %2318 = vadd.xlane.f32.xlu0 %v2317
        %v2319 = vpop.xlane.xlu0 %2318
        %v2320 = vsel %vm2289, %v2311, 0.0
        %2321 = vadd.xlane.f32.xlu0 %v2320
        %v2322 = vpop.xlane.xlu0 %2321
        %v2323 = vsel %vm2289, %v2313, 0.0
        %2324 = vadd.xlane.f32.xlu0 %v2323
        %v2325 = vpop.xlane.xlu0 %2324
        %v2326 = vrcp.pop %v2316
        %v2327 = vrcp.pop %v2319
        %v2328 = vrcp.pop %v2322
        %v2329 = vrcp.pop %v2325
        %v2330 = vmul.f32 %v2307, %v2326
        %v2331 = vmul.f32 %v2309, %v2327
        %v2332 = vmul.f32 %v2311, %v2328
        %v2333 = vmul.f32 %v2313, %v2329
        %v2335 = vsel %vm2289, %v2330, 0
        %2337 = vmatprep.subr.mxu0 0.0
        %2338 = vmatpush1.msra.mxu0 %v1769
        %2339 = vmatprep.subr.mxu0 0.0
        %2340 = vmatpush1.msra.mxu0 0.0
        %2341 = vmatprep.subr.mxu0 0.0
        %2342 = vmatpush1.msra.mxu0 0.0
        %2343 = vmatprep.subr.mxu0 0.0
        %2344 = vmatpush1.msra.mxu0 0.0
        %2345 = vmatprep.subr.mxu0 0.0
        %2346 = vmatpush1.msra.mxu0 0.0
        %2347 = vmatprep.subr.mxu0 0.0
        %2348 = vmatpush1.msra.mxu0 0.0
        %2349 = vmatprep.subr.mxu0 0.0
        %2350 = vmatpush1.msra.mxu0 0.0
        %2351 = vmatprep.subr.mxu0 0.0
        %2352 = vmatpush1.msra.mxu0 0.0
        %2353 = vmatprep.subr.mxu0 0.0
        %2354 = vmatpush1.msra.mxu0 0.0
        %2355 = vmatprep.subr.mxu0 0.0
        %2356 = vmatpush1.msra.mxu0 0.0
        %2357 = vmatprep.subr.mxu0 0.0
        %2358 = vmatpush1.msra.mxu0 0.0
        %2359 = vmatprep.subr.mxu0 0.0
        %2360 = vmatpush1.msra.mxu0 0.0
        %2361 = vmatprep.subr.mxu0 0.0
        %2362 = vmatpush1.msra.mxu0 0.0
        %2363 = vmatprep.subr.mxu0 0.0
        %2364 = vmatpush1.msra.mxu0 0.0
        %2365 = vmatprep.subr.mxu0 0.0
        %2366 = vmatpush1.msra.mxu0 0.0
        %2367 = vmatprep.subr.mxu0 0.0
        %2368 = vmatpush1.msra.mxu0 0.0
        %2369 = vmatprep.subr.mxu0 0.0
        %2370 = vmatpush1.msra.mxu0 0.0
        %2371 = vmatprep.subr.mxu0 0.0
        %2372 = vmatpush1.msra.mxu0 0.0
        %2373 = vmatprep.subr.mxu0 0.0
        %2374 = vmatpush1.msra.mxu0 0.0
        %2375 = vmatprep.subr.mxu0 0.0
        %2376 = vmatpush1.msra.mxu0 0.0
        %2377 = vmatprep.subr.mxu0 0.0
        %2378 = vmatpush1.msra.mxu0 0.0
        %2379 = vmatprep.subr.mxu0 0.0
        %2380 = vmatpush1.msra.mxu0 0.0
        %2381 = vmatprep.subr.mxu0 0.0
        %2382 = vmatpush1.msra.mxu0 0.0
        %2383 = vmatprep.subr.mxu0 0.0
        %2384 = vmatpush1.msra.mxu0 0.0
        %2385 = vmatprep.subr.mxu0 0.0
        %2386 = vmatpush1.msra.mxu0 0.0
        %2387 = vmatprep.subr.mxu0 0.0
        %2388 = vmatpush1.msra.mxu0 0.0
        %2389 = vmatprep.subr.mxu0 0.0
        %2390 = vmatpush1.msra.mxu0 0.0
        %2391 = vmatprep.subr.mxu0 0.0
        %2392 = vmatpush1.msra.mxu0 0.0
        %2393 = vmatprep.subr.mxu0 0.0
        %2394 = vmatpush1.msra.mxu0 0.0
        %2395 = vmatprep.subr.mxu0 0.0
        %2396 = vmatpush1.msra.mxu0 0.0
        %2397 = vmatprep.subr.mxu0 0.0
        %2398 = vmatpush1.msra.mxu0 0.0
        %2399 = vmatprep.subr.mxu0 0.0
        %2400 = vmatpush1.msra.mxu0 0.0
        %2401 = vmatprep.mubr.f32.mxu0 0.0
        %2402 = vmatmul.mubr.f32.gmra.mrb[0].mxu0 %v2335
        %v2403 = vpop.f32.mrb[0].mxu0
        %v2404 = vadd.f32 0.0, %v2403
        %v2405 = vpop.f32.mrb[0].mxu0
        %2406 = vdwg.mxu0
        %v2408 = vsel %vm2289, %v2331, 0
        %2410 = vmatprep.subr.mxu0 0.0
        %2411 = vmatpush1.msra.mxu0 %v1839
        %2412 = vmatprep.subr.mxu0 0.0
        %2413 = vmatpush1.msra.mxu0 0.0
        %2414 = vmatprep.subr.mxu0 0.0
        %2415 = vmatpush1.msra.mxu0 0.0
        %2416 = vmatprep.subr.mxu0 0.0
        %2417 = vmatpush1.msra.mxu0 0.0
        %2418 = vmatprep.subr.mxu0 0.0
        %2419 = vmatpush1.msra.mxu0 0.0
        %2420 = vmatprep.subr.mxu0 0.0
        %2421 = vmatpush1.msra.mxu0 0.0
        %2422 = vmatprep.subr.mxu0 0.0
        %2423 = vmatpush1.msra.mxu0 0.0
        %2424 = vmatprep.subr.mxu0 0.0
        %2425 = vmatpush1.msra.mxu0 0.0
        %2426 = vmatprep.subr.mxu0 0.0
        %2427 = vmatpush1.msra.mxu0 0.0
        %2428 = vmatprep.subr.mxu0 0.0
        %2429 = vmatpush1.msra.mxu0 0.0
        %2430 = vmatprep.subr.mxu0 0.0
        %2431 = vmatpush1.msra.mxu0 0.0
        %2432 = vmatprep.subr.mxu0 0.0
        %2433 = vmatpush1.msra.mxu0 0.0
        %2434 = vmatprep.subr.mxu0 0.0
        %2435 = vmatpush1.msra.mxu0 0.0
        %2436 = vmatprep.subr.mxu0 0.0
        %2437 = vmatpush1.msra.mxu0 0.0
        %2438 = vmatprep.subr.mxu0 0.0
        %2439 = vmatpush1.msra.mxu0 0.0
        %2440 = vmatprep.subr.mxu0 0.0
        %2441 = vmatpush1.msra.mxu0 0.0
        %2442 = vmatprep.subr.mxu0 0.0
        %2443 = vmatpush1.msra.mxu0 0.0
        %2444 = vmatprep.subr.mxu0 0.0
        %2445 = vmatpush1.msra.mxu0 0.0
        %2446 = vmatprep.subr.mxu0 0.0
        %2447 = vmatpush1.msra.mxu0 0.0
        %2448 = vmatprep.subr.mxu0 0.0
        %2449 = vmatpush1.msra.mxu0 0.0
        %2450 = vmatprep.subr.mxu0 0.0
        %2451 = vmatpush1.msra.mxu0 0.0
        %2452 = vmatprep.subr.mxu0 0.0
        %2453 = vmatpush1.msra.mxu0 0.0
        %2454 = vmatprep.subr.mxu0 0.0
        %2455 = vmatpush1.msra.mxu0 0.0
        %2456 = vmatprep.subr.mxu0 0.0
        %2457 = vmatpush1.msra.mxu0 0.0
        %2458 = vmatprep.subr.mxu0 0.0
        %2459 = vmatpush1.msra.mxu0 0.0
        %2460 = vmatprep.subr.mxu0 0.0
        %2461 = vmatpush1.msra.mxu0 0.0
        %2462 = vmatprep.subr.mxu0 0.0
        %2463 = vmatpush1.msra.mxu0 0.0
        %2464 = vmatprep.subr.mxu0 0.0
        %2465 = vmatpush1.msra.mxu0 0.0
        %2466 = vmatprep.subr.mxu0 0.0
        %2467 = vmatpush1.msra.mxu0 0.0
        %2468 = vmatprep.subr.mxu0 0.0
        %2469 = vmatpush1.msra.mxu0 0.0
        %2470 = vmatprep.subr.mxu0 0.0
        %2471 = vmatpush1.msra.mxu0 0.0
        %2472 = vmatprep.subr.mxu0 0.0
        %2473 = vmatpush1.msra.mxu0 0.0
        %2474 = vmatprep.mubr.f32.mxu0 0.0
        %2475 = vmatmul.mubr.f32.gmra.mrb[0].mxu0 %v2408
        %v2476 = vpop.f32.mrb[0].mxu0
        %v2477 = vadd.f32 0.0, %v2476
        %v2478 = vpop.f32.mrb[0].mxu0
        %2479 = vdwg.mxu0
        %v2481 = vsel %vm2289, %v2332, 0
        %2483 = vmatprep.subr.mxu0 0.0
        %2484 = vmatpush1.msra.mxu0 %v1909
        %2485 = vmatprep.subr.mxu0 0.0
        %2486 = vmatpush1.msra.mxu0 0.0
        %2487 = vmatprep.subr.mxu0 0.0
        %2488 = vmatpush1.msra.mxu0 0.0
        %2489 = vmatprep.subr.mxu0 0.0
        %2490 = vmatpush1.msra.mxu0 0.0
        %2491 = vmatprep.subr.mxu0 0.0
        %2492 = vmatpush1.msra.mxu0 0.0
        %2493 = vmatprep.subr.mxu0 0.0
        %2494 = vmatpush1.msra.mxu0 0.0
        %2495 = vmatprep.subr.mxu0 0.0
        %2496 = vmatpush1.msra.mxu0 0.0
        %2497 = vmatprep.subr.mxu0 0.0
        %2498 = vmatpush1.msra.mxu0 0.0
        %2499 = vmatprep.subr.mxu0 0.0
        %2500 = vmatpush1.msra.mxu0 0.0
        %2501 = vmatprep.subr.mxu0 0.0
        %2502 = vmatpush1.msra.mxu0 0.0
        %2503 = vmatprep.subr.mxu0 0.0
        %2504 = vmatpush1.msra.mxu0 0.0
        %2505 = vmatprep.subr.mxu0 0.0
        %2506 = vmatpush1.msra.mxu0 0.0
        %2507 = vmatprep.subr.mxu0 0.0
        %2508 = vmatpush1.msra.mxu0 0.0
        %2509 = vmatprep.subr.mxu0 0.0
        %2510 = vmatpush1.msra.mxu0 0.0
        %2511 = vmatprep.subr.mxu0 0.0
        %2512 = vmatpush1.msra.mxu0 0.0
        %2513 = vmatprep.subr.mxu0 0.0
        %2514 = vmatpush1.msra.mxu0 0.0
        %2515 = vmatprep.subr.mxu0 0.0
        %2516 = vmatpush1.msra.mxu0 0.0
        %2517 = vmatprep.subr.mxu0 0.0
        %2518 = vmatpush1.msra.mxu0 0.0
        %2519 = vmatprep.subr.mxu0 0.0
        %2520 = vmatpush1.msra.mxu0 0.0
        %2521 = vmatprep.subr.mxu0 0.0
        %2522 = vmatpush1.msra.mxu0 0.0
        %2523 = vmatprep.subr.mxu0 0.0
        %2524 = vmatpush1.msra.mxu0 0.0
        %2525 = vmatprep.subr.mxu0 0.0
        %2526 = vmatpush1.msra.mxu0 0.0
        %2527 = vmatprep.subr.mxu0 0.0
        %2528 = vmatpush1.msra.mxu0 0.0
        %2529 = vmatprep.subr.mxu0 0.0
        %2530 = vmatpush1.msra.mxu0 0.0
        %2531 = vmatprep.subr.mxu0 0.0
        %2532 = vmatpush1.msra.mxu0 0.0
        %2533 = vmatprep.subr.mxu0 0.0
        %2534 = vmatpush1.msra.mxu0 0.0
        %2535 = vmatprep.subr.mxu0 0.0
        %2536 = vmatpush1.msra.mxu0 0.0
        %2537 = vmatprep.subr.mxu0 0.0
        %2538 = vmatpush1.msra.mxu0 0.0
        %2539 = vmatprep.subr.mxu0 0.0
        %2540 = vmatpush1.msra.mxu0 0.0
        %2541 = vmatprep.subr.mxu0 0.0
        %2542 = vmatpush1.msra.mxu0 0.0
        %2543 = vmatprep.subr.mxu0 0.0
        %2544 = vmatpush1.msra.mxu0 0.0
        %2545 = vmatprep.subr.mxu0 0.0
        %2546 = vmatpush1.msra.mxu0 0.0
        %2547 = vmatprep.mubr.f32.mxu0 0.0
        %2548 = vmatmul.mubr.f32.gmra.mrb[0].mxu0 %v2481
        %v2549 = vpop.f32.mrb[0].mxu0
        %v2550 = vadd.f32 0.0, %v2549
        %v2551 = vpop.f32.mrb[0].mxu0
        %2552 = vdwg.mxu0
        %v2554 = vsel %vm2289, %v2333, 0
        %2556 = vmatprep.subr.mxu0 0.0
        %2557 = vmatpush1.msra.mxu0 %v1979
        %2558 = vmatprep.subr.mxu0 0.0
        %2559 = vmatpush1.msra.mxu0 0.0
        %2560 = vmatprep.subr.mxu0 0.0
        %2561 = vmatpush1.msra.mxu0 0.0
        %2562 = vmatprep.subr.mxu0 0.0
        %2563 = vmatpush1.msra.mxu0 0.0
        %2564 = vmatprep.subr.mxu0 0.0
        %2565 = vmatpush1.msra.mxu0 0.0
        %2566 = vmatprep.subr.mxu0 0.0
        %2567 = vmatpush1.msra.mxu0 0.0
        %2568 = vmatprep.subr.mxu0 0.0
        %2569 = vmatpush1.msra.mxu0 0.0
        %2570 = vmatprep.subr.mxu0 0.0
        %2571 = vmatpush1.msra.mxu0 0.0
        %2572 = vmatprep.subr.mxu0 0.0
        %2573 = vmatpush1.msra.mxu0 0.0
        %2574 = vmatprep.subr.mxu0 0.0
        %2575 = vmatpush1.msra.mxu0 0.0
        %2576 = vmatprep.subr.mxu0 0.0
        %2577 = vmatpush1.msra.mxu0 0.0
        %2578 = vmatprep.subr.mxu0 0.0
        %2579 = vmatpush1.msra.mxu0 0.0
        %2580 = vmatprep.subr.mxu0 0.0
        %2581 = vmatpush1.msra.mxu0 0.0
        %2582 = vmatprep.subr.mxu0 0.0
        %2583 = vmatpush1.msra.mxu0 0.0
        %2584 = vmatprep.subr.mxu0 0.0
        %2585 = vmatpush1.msra.mxu0 0.0
        %2586 = vmatprep.subr.mxu0 0.0
        %2587 = vmatpush1.msra.mxu0 0.0
        %2588 = vmatprep.subr.mxu0 0.0
        %2589 = vmatpush1.msra.mxu0 0.0
        %2590 = vmatprep.subr.mxu0 0.0
        %2591 = vmatpush1.msra.mxu0 0.0
        %2592 = vmatprep.subr.mxu0 0.0
        %2593 = vmatpush1.msra.mxu0 0.0
        %2594 = vmatprep.subr.mxu0 0.0
        %2595 = vmatpush1.msra.mxu0 0.0
        %2596 = vmatprep.subr.mxu0 0.0
        %2597 = vmatpush1.msra.mxu0 0.0
        %2598 = vmatprep.subr.mxu0 0.0
        %2599 = vmatpush1.msra.mxu0 0.0
        %2600 = vmatprep.subr.mxu0 0.0
        %2601 = vmatpush1.msra.mxu0 0.0
        %2602 = vmatprep.subr.mxu0 0.0
        %2603 = vmatpush1.msra.mxu0 0.0
        %2604 = vmatprep.subr.mxu0 0.0
        %2605 = vmatpush1.msra.mxu0 0.0
        %2606 = vmatprep.subr.mxu0 0.0
        %2607 = vmatpush1.msra.mxu0 0.0
        %2608 = vmatprep.subr.mxu0 0.0
        %2609 = vmatpush1.msra.mxu0 0.0
        %2610 = vmatprep.subr.mxu0 0.0
        %2611 = vmatpush1.msra.mxu0 0.0
        %2612 = vmatprep.subr.mxu0 0.0
        %2613 = vmatpush1.msra.mxu0 0.0
        %2614 = vmatprep.subr.mxu0 0.0
        %2615 = vmatpush1.msra.mxu0 0.0
        %2616 = vmatprep.subr.mxu0 0.0
        %2617 = vmatpush1.msra.mxu0 0.0
        %2618 = vmatprep.subr.mxu0 0.0
        %2619 = vmatpush1.msra.mxu0 0.0
        %2620 = vmatprep.mubr.f32.mxu0 0.0
        %2621 = vmatmul.mubr.f32.gmra.mrb[0].mxu0 %v2554
        %v2622 = vpop.f32.mrb[0].mxu0
        %v2623 = vadd.f32 0.0, %v2622
        %v2624 = vpop.f32.mrb[0].mxu0
        %2625 = vdwg.mxu0
        %v2626 = vld [vmem:[%s799] sm:$0xff]
        %v2627 = vld [vmem:[%s799 + $0x8] sm:$0xff]
        %v2628 = vld [vmem:[%s799 + $0x10] sm:$0xff]
        %v2629 = vld [vmem:[%s799 + $0x18] sm:$0xff]
        %v2630 = vld [vmem:[%s799 + $0x20] sm:$0xff]
        %v2631 = vld [vmem:[%s799 + $0x28] sm:$0xff]
        %v2632 = vld [vmem:[%s799 + $0x30] sm:$0xff]
        %v2633 = vld [vmem:[%s799 + $0x38] sm:$0xff]
        %v2634 = vld [vmem:[%s799 + $0x40] sm:$0xff]
        %v2635 = vld [vmem:[%s799 + $0x48] sm:$0xff]
        %v2636 = vld [vmem:[%s799 + $0x50] sm:$0xff]
        %v2637 = vld [vmem:[%s799 + $0x58] sm:$0xff]
        %v2638 = vld [vmem:[%s799 + $0x60] sm:$0xff]
        %v2639 = vld [vmem:[%s799 + $0x68] sm:$0xff]
        %v2640 = vld [vmem:[%s799 + $0x70] sm:$0xff]
        %v2641 = vld [vmem:[%s799 + $0x78] sm:$0xff]
        %v2643 = vsel %vm1984, %v2404, 0
        %2645 = vmatprep.subr.mxu0 0.0
        %2646 = vmatpush1.msra.mxu0 %v2626
        %2647 = vmatprep.subr.mxu0 0.0
        %2648 = vmatpush1.msra.mxu0 %v2627
        %2649 = vmatprep.subr.mxu0 0.0
        %2650 = vmatpush1.msra.mxu0 %v2628
        %2651 = vmatprep.subr.mxu0 0.0
        %2652 = vmatpush1.msra.mxu0 %v2629
        %2653 = vmatprep.subr.mxu0 0.0
        %2654 = vmatpush1.msra.mxu0 0.0
        %2655 = vmatprep.subr.mxu0 0.0
        %2656 = vmatpush1.msra.mxu0 0.0
        %2657 = vmatprep.subr.mxu0 0.0
        %2658 = vmatpush1.msra.mxu0 0.0
        %2659 = vmatprep.subr.mxu0 0.0
        %2660 = vmatpush1.msra.mxu0 0.0
        %2661 = vmatprep.subr.mxu0 0.0
        %2662 = vmatpush1.msra.mxu0 0.0
        %2663 = vmatprep.subr.mxu0 0.0
        %2664 = vmatpush1.msra.mxu0 0.0
        %2665 = vmatprep.subr.mxu0 0.0
        %2666 = vmatpush1.msra.mxu0 0.0
        %2667 = vmatprep.subr.mxu0 0.0
        %2668 = vmatpush1.msra.mxu0 0.0
        %2669 = vmatprep.subr.mxu0 0.0
        %2670 = vmatpush1.msra.mxu0 0.0
        %2671 = vmatprep.subr.mxu0 0.0
        %2672 = vmatpush1.msra.mxu0 0.0
        %2673 = vmatprep.subr.mxu0 0.0
        %2674 = vmatpush1.msra.mxu0 0.0
        %2675 = vmatprep.subr.mxu0 0.0
        %2676 = vmatpush1.msra.mxu0 0.0
        %2677 = vmatprep.subr.mxu0 0.0
        %2678 = vmatpush1.msra.mxu0 0.0
        %2679 = vmatprep.subr.mxu0 0.0
        %2680 = vmatpush1.msra.mxu0 0.0
        %2681 = vmatprep.subr.mxu0 0.0
        %2682 = vmatpush1.msra.mxu0 0.0
        %2683 = vmatprep.subr.mxu0 0.0
        %2684 = vmatpush1.msra.mxu0 0.0
        %2685 = vmatprep.subr.mxu0 0.0
        %2686 = vmatpush1.msra.mxu0 0.0
        %2687 = vmatprep.subr.mxu0 0.0
        %2688 = vmatpush1.msra.mxu0 0.0
        %2689 = vmatprep.subr.mxu0 0.0
        %2690 = vmatpush1.msra.mxu0 0.0
        %2691 = vmatprep.subr.mxu0 0.0
        %2692 = vmatpush1.msra.mxu0 0.0
        %2693 = vmatprep.subr.mxu0 0.0
        %2694 = vmatpush1.msra.mxu0 0.0
        %2695 = vmatprep.subr.mxu0 0.0
        %2696 = vmatpush1.msra.mxu0 0.0
        %2697 = vmatprep.subr.mxu0 0.0
        %2698 = vmatpush1.msra.mxu0 0.0
        %2699 = vmatprep.subr.mxu0 0.0
        %2700 = vmatpush1.msra.mxu0 0.0
        %2701 = vmatprep.subr.mxu0 0.0
        %2702 = vmatpush1.msra.mxu0 0.0
        %2703 = vmatprep.subr.mxu0 0.0
        %2704 = vmatpush1.msra.mxu0 0.0
        %2705 = vmatprep.subr.mxu0 0.0
        %2706 = vmatpush1.msra.mxu0 0.0
        %2707 = vmatprep.subr.mxu0 0.0
        %2708 = vmatpush1.msra.mxu0 0.0
        %2709 = vmatprep.mubr.f32.mxu0 0.0
        %2710 = vmatmul.mubr.f32.gmra.mrb[0].mxu0 %v2643
        %v2711 = vpop.f32.mrb[0].mxu0
        %v2712 = vadd.f32 0.0, %v2711
        %v2713 = vpop.f32.mrb[0].mxu0
        %2714 = vdwg.mxu0
        %v2716 = vsel %vm1984, %v2477, 0
        %2718 = vmatprep.subr.mxu0 0.0
        %2719 = vmatpush1.msra.mxu0 %v2630
        %2720 = vmatprep.subr.mxu0 0.0
        %2721 = vmatpush1.msra.mxu0 %v2631
        %2722 = vmatprep.subr.mxu0 0.0
        %2723 = vmatpush1.msra.mxu0 %v2632
        %2724 = vmatprep.subr.mxu0 0.0
        %2725 = vmatpush1.msra.mxu0 %v2633
        %2726 = vmatprep.subr.mxu0 0.0
        %2727 = vmatpush1.msra.mxu0 0.0
        %2728 = vmatprep.subr.mxu0 0.0
        %2729 = vmatpush1.msra.mxu0 0.0
        %2730 = vmatprep.subr.mxu0 0.0
        %2731 = vmatpush1.msra.mxu0 0.0
        %2732 = vmatprep.subr.mxu0 0.0
        %2733 = vmatpush1.msra.mxu0 0.0
        %2734 = vmatprep.subr.mxu0 0.0
        %2735 = vmatpush1.msra.mxu0 0.0
        %2736 = vmatprep.subr.mxu0 0.0
        %2737 = vmatpush1.msra.mxu0 0.0
        %2738 = vmatprep.subr.mxu0 0.0
        %2739 = vmatpush1.msra.mxu0 0.0
        %2740 = vmatprep.subr.mxu0 0.0
        %2741 = vmatpush1.msra.mxu0 0.0
        %2742 = vmatprep.subr.mxu0 0.0
        %2743 = vmatpush1.msra.mxu0 0.0
        %2744 = vmatprep.subr.mxu0 0.0
        %2745 = vmatpush1.msra.mxu0 0.0
        %2746 = vmatprep.subr.mxu0 0.0
        %2747 = vmatpush1.msra.mxu0 0.0
        %2748 = vmatprep.subr.mxu0 0.0
        %2749 = vmatpush1.msra.mxu0 0.0
        %2750 = vmatprep.subr.mxu0 0.0
        %2751 = vmatpush1.msra.mxu0 0.0
        %2752 = vmatprep.subr.mxu0 0.0
        %2753 = vmatpush1.msra.mxu0 0.0
        %2754 = vmatprep.subr.mxu0 0.0
        %2755 = vmatpush1.msra.mxu0 0.0
        %2756 = vmatprep.subr.mxu0 0.0
        %2757 = vmatpush1.msra.mxu0 0.0
        %2758 = vmatprep.subr.mxu0 0.0
        %2759 = vmatpush1.msra.mxu0 0.0
        %2760 = vmatprep.subr.mxu0 0.0
        %2761 = vmatpush1.msra.mxu0 0.0
        %2762 = vmatprep.subr.mxu0 0.0
        %2763 = vmatpush1.msra.mxu0 0.0
        %2764 = vmatprep.subr.mxu0 0.0
        %2765 = vmatpush1.msra.mxu0 0.0
        %2766 = vmatprep.subr.mxu0 0.0
        %2767 = vmatpush1.msra.mxu0 0.0
        %2768 = vmatprep.subr.mxu0 0.0
        %2769 = vmatpush1.msra.mxu0 0.0
        %2770 = vmatprep.subr.mxu0 0.0
        %2771 = vmatpush1.msra.mxu0 0.0
        %2772 = vmatprep.subr.mxu0 0.0
        %2773 = vmatpush1.msra.mxu0 0.0
        %2774 = vmatprep.subr.mxu0 0.0
        %2775 = vmatpush1.msra.mxu0 0.0
        %2776 = vmatprep.subr.mxu0 0.0
        %2777 = vmatpush1.msra.mxu0 0.0
        %2778 = vmatprep.subr.mxu0 0.0
        %2779 = vmatpush1.msra.mxu0 0.0
        %2780 = vmatprep.subr.mxu0 0.0
        %2781 = vmatpush1.msra.mxu0 0.0
        %2782 = vmatprep.mubr.f32.mxu0 0.0
        %2783 = vmatmul.mubr.f32.gmra.mrb[0].mxu0 %v2716
        %v2784 = vpop.f32.mrb[0].mxu0
        %v2785 = vadd.f32 0.0, %v2784
        %v2786 = vpop.f32.mrb[0].mxu0
        %2787 = vdwg.mxu0
        %v2789 = vsel %vm1984, %v2550, 0
        %2791 = vmatprep.subr.mxu0 0.0
        %2792 = vmatpush1.msra.mxu0 %v2634
        %2793 = vmatprep.subr.mxu0 0.0
        %2794 = vmatpush1.msra.mxu0 %v2635
        %2795 = vmatprep.subr.mxu0 0.0
        %2796 = vmatpush1.msra.mxu0 %v2636
        %2797 = vmatprep.subr.mxu0 0.0
        %2798 = vmatpush1.msra.mxu0 %v2637
        %2799 = vmatprep.subr.mxu0 0.0
        %2800 = vmatpush1.msra.mxu0 0.0
        %2801 = vmatprep.subr.mxu0 0.0
        %2802 = vmatpush1.msra.mxu0 0.0
        %2803 = vmatprep.subr.mxu0 0.0
        %2804 = vmatpush1.msra.mxu0 0.0
        %2805 = vmatprep.subr.mxu0 0.0
        %2806 = vmatpush1.msra.mxu0 0.0
        %2807 = vmatprep.subr.mxu0 0.0
        %2808 = vmatpush1.msra.mxu0 0.0
        %2809 = vmatprep.subr.mxu0 0.0
        %2810 = vmatpush1.msra.mxu0 0.0
        %2811 = vmatprep.subr.mxu0 0.0
        %2812 = vmatpush1.msra.mxu0 0.0
        %2813 = vmatprep.subr.mxu0 0.0
        %2814 = vmatpush1.msra.mxu0 0.0
        %2815 = vmatprep.subr.mxu0 0.0
        %2816 = vmatpush1.msra.mxu0 0.0
        %2817 = vmatprep.subr.mxu0 0.0
        %2818 = vmatpush1.msra.mxu0 0.0
        %2819 = vmatprep.subr.mxu0 0.0
        %2820 = vmatpush1.msra.mxu0 0.0
        %2821 = vmatprep.subr.mxu0 0.0
        %2822 = vmatpush1.msra.mxu0 0.0
        %2823 = vmatprep.subr.mxu0 0.0
        %2824 = vmatpush1.msra.mxu0 0.0
        %2825 = vmatprep.subr.mxu0 0.0
        %2826 = vmatpush1.msra.mxu0 0.0
        %2827 = vmatprep.subr.mxu0 0.0
        %2828 = vmatpush1.msra.mxu0 0.0
        %2829 = vmatprep.subr.mxu0 0.0
        %2830 = vmatpush1.msra.mxu0 0.0
        %2831 = vmatprep.subr.mxu0 0.0
        %2832 = vmatpush1.msra.mxu0 0.0
        %2833 = vmatprep.subr.mxu0 0.0
        %2834 = vmatpush1.msra.mxu0 0.0
        %2835 = vmatprep.subr.mxu0 0.0
        %2836 = vmatpush1.msra.mxu0 0.0
        %2837 = vmatprep.subr.mxu0 0.0
        %2838 = vmatpush1.msra.mxu0 0.0
        %2839 = vmatprep.subr.mxu0 0.0
        %2840 = vmatpush1.msra.mxu0 0.0
        %2841 = vmatprep.subr.mxu0 0.0
        %2842 = vmatpush1.msra.mxu0 0.0
        %2843 = vmatprep.subr.mxu0 0.0
        %2844 = vmatpush1.msra.mxu0 0.0
        %2845 = vmatprep.subr.mxu0 0.0
        %2846 = vmatpush1.msra.mxu0 0.0
        %2847 = vmatprep.subr.mxu0 0.0
        %2848 = vmatpush1.msra.mxu0 0.0
        %2849 = vmatprep.subr.mxu0 0.0
        %2850 = vmatpush1.msra.mxu0 0.0
        %2851 = vmatprep.subr.mxu0 0.0
        %2852 = vmatpush1.msra.mxu0 0.0
        %2853 = vmatprep.subr.mxu0 0.0
        %2854 = vmatpush1.msra.mxu0 0.0
        %2855 = vmatprep.mubr.f32.mxu0 0.0
        %2856 = vmatmul.mubr.f32.gmra.mrb[0].mxu0 %v2789
        %v2857 = vpop.f32.mrb[0].mxu0
        %v2858 = vadd.f32 0.0, %v2857
        %v2859 = vpop.f32.mrb[0].mxu0
        %2860 = vdwg.mxu0
        %v2862 = vsel %vm1984, %v2623, 0
        %2864 = vmatprep.subr.mxu0 0.0
        %2865 = vmatpush1.msra.mxu0 %v2638
        %2866 = vmatprep.subr.mxu0 0.0
        %2867 = vmatpush1.msra.mxu0 %v2639
        %2868 = vmatprep.subr.mxu0 0.0
        %2869 = vmatpush1.msra.mxu0 %v2640
        %2870 = vmatprep.subr.mxu0 0.0
        %2871 = vmatpush1.msra.mxu0 %v2641
        %2872 = vmatprep.subr.mxu0 0.0
        %2873 = vmatpush1.msra.mxu0 0.0
        %2874 = vmatprep.subr.mxu0 0.0
        %2875 = vmatpush1.msra.mxu0 0.0
        %2876 = vmatprep.subr.mxu0 0.0
        %2877 = vmatpush1.msra.mxu0 0.0
        %2878 = vmatprep.subr.mxu0 0.0
        %2879 = vmatpush1.msra.mxu0 0.0
        %2880 = vmatprep.subr.mxu0 0.0
        %2881 = vmatpush1.msra.mxu0 0.0
        %2882 = vmatprep.subr.mxu0 0.0
        %2883 = vmatpush1.msra.mxu0 0.0
        %2884 = vmatprep.subr.mxu0 0.0
        %2885 = vmatpush1.msra.mxu0 0.0
        %2886 = vmatprep.subr.mxu0 0.0
        %2887 = vmatpush1.msra.mxu0 0.0
        %2888 = vmatprep.subr.mxu0 0.0
        %2889 = vmatpush1.msra.mxu0 0.0
        %2890 = vmatprep.subr.mxu0 0.0
        %2891 = vmatpush1.msra.mxu0 0.0
        %2892 = vmatprep.subr.mxu0 0.0
        %2893 = vmatpush1.msra.mxu0 0.0
        %2894 = vmatprep.subr.mxu0 0.0
        %2895 = vmatpush1.msra.mxu0 0.0
        %2896 = vmatprep.subr.mxu0 0.0
        %2897 = vmatpush1.msra.mxu0 0.0
        %2898 = vmatprep.subr.mxu0 0.0
        %2899 = vmatpush1.msra.mxu0 0.0
        %2900 = vmatprep.subr.mxu0 0.0
        %2901 = vmatpush1.msra.mxu0 0.0
        %2902 = vmatprep.subr.mxu0 0.0
        %2903 = vmatpush1.msra.mxu0 0.0
        %2904 = vmatprep.subr.mxu0 0.0
        %2905 = vmatpush1.msra.mxu0 0.0
        %2906 = vmatprep.subr.mxu0 0.0
        %2907 = vmatpush1.msra.mxu0 0.0
        %2908 = vmatprep.subr.mxu0 0.0
        %2909 = vmatpush1.msra.mxu0 0.0
        %2910 = vmatprep.subr.mxu0 0.0
        %2911 = vmatpush1.msra.mxu0 0.0
        %2912 = vmatprep.subr.mxu0 0.0
        %2913 = vmatpush1.msra.mxu0 0.0
        %2914 = vmatprep.subr.mxu0 0.0
        %2915 = vmatpush1.msra.mxu0 0.0
        %2916 = vmatprep.subr.mxu0 0.0
        %2917 = vmatpush1.msra.mxu0 0.0
        %2918 = vmatprep.subr.mxu0 0.0
        %2919 = vmatpush1.msra.mxu0 0.0
        %2920 = vmatprep.subr.mxu0 0.0
        %2921 = vmatpush1.msra.mxu0 0.0
        %2922 = vmatprep.subr.mxu0 0.0
        %2923 = vmatpush1.msra.mxu0 0.0
        %2924 = vmatprep.subr.mxu0 0.0
        %2925 = vmatpush1.msra.mxu0 0.0
        %2926 = vmatprep.subr.mxu0 0.0
        %2927 = vmatpush1.msra.mxu0 0.0
        %2928 = vmatprep.mubr.f32.mxu0 0.0
        %2929 = vmatmul.mubr.f32.gmra.mrb[0].mxu0 %v2862
        %v2930 = vpop.f32.mrb[0].mxu0
        %v2931 = vadd.f32 0.0, %v2930
        %v2932 = vpop.f32.mrb[0].mxu0
        %2933 = vdwg.mxu0
        %v2934 = vadd.f32 %v2712, %v2785
        %v2935 = vadd.f32 %v2934, %v2858
        %v2936 = vadd.f32 %v2935, %v2931
        %v2937 = vld [vmem:[%s802] sm:$0x1]
        %v2939 = vlaneseq
        %v2940 = vshrl.u32 %v2939, 7
        %v2941 = vsub.s32 0, %v2940
        %v2942 = vrot.slane %v2937, %v2941
        %v2944 = vadd.f32 %v2936, %v2942
        %v2945 = vadd.f32 %v837, %v2944
        %v2946 = vld [vmem:[%s805] sm:$0x1]
        %v2947 = vld [vmem:[%s808] sm:$0x1]
        %2948 = vadd.xlane.f32.xlu0 %v2945
        %v2949 = vpop.xlane.xlu0 %2948
        %v2950 = vmul.f32 %v2949, %v842
        %v2951 = vsub.f32 %v2945, %v2950
        %v2952 = vmul.f32 %v2951, %v2951
        %2953 = vadd.xlane.f32.xlu0 %v2952
        %v2954 = vpop.xlane.xlu0 %2953
        %v2955 = vmul.f32 %v2954, %v842
        %v2956 = vadd.f32 %v2955, 1e-05
        %v2957 = vrsqrt.pop %v2956
        %v2958 = vmul.f32 %v2951, %v2957
        %v2960 = vlaneseq
        %v2961 = vshrl.u32 %v2960, 7
        %v2962 = vsub.s32 0, %v2961
        %v2963 = vrot.slane %v2946, %v2962
        %v2965 = vmul.f32 %v2958, %v2963
        %v2967 = vlaneseq
        %v2968 = vshrl.u32 %v2967, 7
        %v2969 = vsub.s32 0, %v2968
        %v2970 = vrot.slane %v2947, %v2969
        %v2972 = vadd.f32 %v2965, %v2970
        %v2973 = vld [vmem:[%s813] sm:$0xff]
        %v2974 = vld [vmem:[%s813 + $0x8] sm:$0xff]
        %v2975 = vld [vmem:[%s813 + $0x10] sm:$0xff]
        %v2976 = vld [vmem:[%s813 + $0x18] sm:$0xff]
        %v2977 = vld [vmem:[%s813 + $0x20] sm:$0xff]
        %v2978 = vld [vmem:[%s813 + $0x28] sm:$0xff]
        %v2979 = vld [vmem:[%s813 + $0x30] sm:$0xff]
        %v2980 = vld [vmem:[%s813 + $0x38] sm:$0xff]
        %v2981 = vld [vmem:[%s813 + $0x40] sm:$0xff]
        %v2982 = vld [vmem:[%s813 + $0x48] sm:$0xff]
        %v2983 = vld [vmem:[%s813 + $0x50] sm:$0xff]
        %v2984 = vld [vmem:[%s813 + $0x58] sm:$0xff]
        %v2985 = vld [vmem:[%s813 + $0x60] sm:$0xff]
        %v2986 = vld [vmem:[%s813 + $0x68] sm:$0xff]
        %v2987 = vld [vmem:[%s813 + $0x70] sm:$0xff]
        %v2988 = vld [vmem:[%s813 + $0x78] sm:$0xff]
        %v2989 = vld [vmem:[%s813 + $0x80] sm:$0xff]
        %v2990 = vld [vmem:[%s813 + $0x88] sm:$0xff]
        %v2991 = vld [vmem:[%s813 + $0x90] sm:$0xff]
        %v2992 = vld [vmem:[%s813 + $0x98] sm:$0xff]
        %v2993 = vld [vmem:[%s813 + $0xa0] sm:$0xff]
        %v2994 = vld [vmem:[%s813 + $0xa8] sm:$0xff]
        %v2995 = vld [vmem:[%s813 + $0xb0] sm:$0xff]
        %v2996 = vld [vmem:[%s813 + $0xb8] sm:$0xff]
        %v2997 = vld [vmem:[%s813 + $0xc0] sm:$0xff]
        %v2998 = vld [vmem:[%s813 + $0xc8] sm:$0xff]
        %v2999 = vld [vmem:[%s813 + $0xd0] sm:$0xff]
        %v3000 = vld [vmem:[%s813 + $0xd8] sm:$0xff]
        %v3001 = vld [vmem:[%s813 + $0xe0] sm:$0xff]
        %v3002 = vld [vmem:[%s813 + $0xe8] sm:$0xff]
        %v3003 = vld [vmem:[%s813 + $0xf0] sm:$0xff]
        %v3004 = vld [vmem:[%s813 + $0xf8] sm:$0xff]
        %v3005 = vld [vmem:[%s817] sm:$0x3]
        %v3007 = vlaneseq
        %v3008 = vshrl.u32 %v3007, 7
        %v3009 = vsub.s32 0, %v3008
        %v3010 = vrot.slane %v3005, %v3009
        %v3011 = vlaneseq
        %v3012 = vshrl.u32 %v3011, 7
        %v3013 = vsub.s32 1, %v3012
        %v3014 = vrot.slane %v3005, %v3013
        %3017 = vmatprep.subr.mxu0 %v2974
        %3018 = vmatpush1.msra.mxu0 %v2973
        %3019 = vmatprep.subr.mxu0 %v2976
        %3020 = vmatpush1.msra.mxu0 %v2975
        %3021 = vmatprep.subr.mxu0 %v2978
        %3022 = vmatpush1.msra.mxu0 %v2977
        %3023 = vmatprep.subr.mxu0 %v2980
        %3024 = vmatpush1.msra.mxu0 %v2979
        %3025 = vmatprep.subr.mxu0 %v2982
        %3026 = vmatpush1.msra.mxu0 %v2981
        %3027 = vmatprep.subr.mxu0 %v2984
        %3028 = vmatpush1.msra.mxu0 %v2983
        %3029 = vmatprep.subr.mxu0 %v2986
        %3030 = vmatpush1.msra.mxu0 %v2985
        %3031 = vmatprep.subr.mxu0 %v2988
        %3032 = vmatpush1.msra.mxu0 %v2987
        %3033 = vmatprep.subr.mxu0 %v2990
        %3034 = vmatpush1.msra.mxu0 %v2989
        %3035 = vmatprep.subr.mxu0 %v2992
        %3036 = vmatpush1.msra.mxu0 %v2991
        %3037 = vmatprep.subr.mxu0 %v2994
        %3038 = vmatpush1.msra.mxu0 %v2993
        %3039 = vmatprep.subr.mxu0 %v2996
        %3040 = vmatpush1.msra.mxu0 %v2995
        %3041 = vmatprep.subr.mxu0 %v2998
        %3042 = vmatpush1.msra.mxu0 %v2997
        %3043 = vmatprep.subr.mxu0 %v3000
        %3044 = vmatpush1.msra.mxu0 %v2999
        %3045 = vmatprep.subr.mxu0 %v3002
        %3046 = vmatpush1.msra.mxu0 %v3001
        %3047 = vmatprep.subr.mxu0 %v3004
        %3048 = vmatpush1.msra.mxu0 %v3003
        %3049 = vmatprep.subr.mxu0 0.0
        %3050 = vmatpush1.msra.mxu0 0.0
        %3051 = vmatprep.subr.mxu0 0.0
        %3052 = vmatpush1.msra.mxu0 0.0
        %3053 = vmatprep.subr.mxu0 0.0
        %3054 = vmatpush1.msra.mxu0 0.0
        %3055 = vmatprep.subr.mxu0 0.0
        %3056 = vmatpush1.msra.mxu0 0.0
        %3057 = vmatprep.subr.mxu0 0.0
        %3058 = vmatpush1.msra.mxu0 0.0
        %3059 = vmatprep.subr.mxu0 0.0
        %3060 = vmatpush1.msra.mxu0 0.0
        %3061 = vmatprep.subr.mxu0 0.0
        %3062 = vmatpush1.msra.mxu0 0.0
        %3063 = vmatprep.subr.mxu0 0.0
        %3064 = vmatpush1.msra.mxu0 0.0
        %3065 = vmatprep.subr.mxu0 0.0
        %3066 = vmatpush1.msra.mxu0 0.0
        %3067 = vmatprep.subr.mxu0 0.0
        %3068 = vmatpush1.msra.mxu0 0.0
        %3069 = vmatprep.subr.mxu0 0.0
        %3070 = vmatpush1.msra.mxu0 0.0
        %3071 = vmatprep.subr.mxu0 0.0
        %3072 = vmatpush1.msra.mxu0 0.0
        %3073 = vmatprep.subr.mxu0 0.0
        %3074 = vmatpush1.msra.mxu0 0.0
        %3075 = vmatprep.subr.mxu0 0.0
        %3076 = vmatpush1.msra.mxu0 0.0
        %3077 = vmatprep.subr.mxu0 0.0
        %3078 = vmatpush1.msra.mxu0 0.0
        %3079 = vmatprep.subr.mxu0 0.0
        %3080 = vmatpush1.msra.mxu0 0.0
        %3081 = vmatprep.mubr.f32.mxu0 0.0
        %3082 = vmatmul.mubr.f32.gmra.mrb[0].mxu0 %v2972
        %v3083 = vpop.f32.mrb[0].mxu0
        %v3084 = vadd.f32 %v3010, %v3083
        %v3085 = vpop.f32.mrb[0].mxu0
        %v3086 = vadd.f32 %v3014, %v3085
        %3087 = vdwg.mxu0
        %v3088 = vmul.f32 %v3084, 1.702
        %v3089 = vmul.f32 %v3086, 1.702
        %v3090 = vxor.u32 %v3088, 2147483648
        %v3091 = vxor.u32 %v3089, 2147483648
        %v3092 = vmul.f32 %v3090, 1.442695
        %v3093 = vpow.pop %v3092
        %v3094 = vmul.f32 %v3091, 1.442695
        %v3095 = vpow.pop %v3094
        %v3096 = vadd.f32 %v3093, 1.0
        %v3097 = vadd.f32 %v3095, 1.0
        %v3098 = vrcp.pop %v3096
        %v3099 = vmul.f32 1.0, %v3098
        %v3100 = vrcp.pop %v3097
        %v3101 = vmul.f32 1.0, %v3100
        %v3102 = vmul.f32 %v3084, %v3099
        %v3103 = vmul.f32 %v3086, %v3101
        %v3104 = vld [vmem:[%s822] sm:$0xff]
        %v3105 = vld [vmem:[%s822 + $0x8] sm:$0xff]
        %v3106 = vld [vmem:[%s822 + $0x10] sm:$0xff]
        %v3107 = vld [vmem:[%s822 + $0x18] sm:$0xff]
        %v3108 = vld [vmem:[%s822 + $0x20] sm:$0xff]
        %v3109 = vld [vmem:[%s822 + $0x28] sm:$0xff]
        %v3110 = vld [vmem:[%s822 + $0x30] sm:$0xff]
        %v3111 = vld [vmem:[%s822 + $0x38] sm:$0xff]
        %v3112 = vld [vmem:[%s822 + $0x40] sm:$0xff]
        %v3113 = vld [vmem:[%s822 + $0x48] sm:$0xff]
        %v3114 = vld [vmem:[%s822 + $0x50] sm:$0xff]
        %v3115 = vld [vmem:[%s822 + $0x58] sm:$0xff]
        %v3116 = vld [vmem:[%s822 + $0x60] sm:$0xff]
        %v3117 = vld [vmem:[%s822 + $0x68] sm:$0xff]
        %v3118 = vld [vmem:[%s822 + $0x70] sm:$0xff]
        %v3119 = vld [vmem:[%s822 + $0x78] sm:$0xff]
        %v3120 = vld [vmem:[%s822 + $0x80] sm:$0xff]
        %v3121 = vld [vmem:[%s822 + $0x88] sm:$0xff]
        %v3122 = vld [vmem:[%s822 + $0x90] sm:$0xff]
        %v3123 = vld [vmem:[%s822 + $0x98] sm:$0xff]
        %v3124 = vld [vmem:[%s822 + $0xa0] sm:$0xff]
        %v3125 = vld [vmem:[%s822 + $0xa8] sm:$0xff]
        %v3126 = vld [vmem:[%s822 + $0xb0] sm:$0xff]
        %v3127 = vld [vmem:[%s822 + $0xb8] sm:$0xff]
        %v3128 = vld [vmem:[%s822 + $0xc0] sm:$0xff]
        %v3129 = vld [vmem:[%s822 + $0xc8] sm:$0xff]
        %v3130 = vld [vmem:[%s822 + $0xd0] sm:$0xff]
        %v3131 = vld [vmem:[%s822 + $0xd8] sm:$0xff]
        %v3132 = vld [vmem:[%s822 + $0xe0] sm:$0xff]
        %v3133 = vld [vmem:[%s822 + $0xe8] sm:$0xff]
        %v3134 = vld [vmem:[%s822 + $0xf0] sm:$0xff]
        %v3135 = vld [vmem:[%s822 + $0xf8] sm:$0xff]
        %v3136 = vld [vmem:[%s825] sm:$0x1]
        %v3138 = vlaneseq
        %v3139 = vshrl.u32 %v3138, 7
        %v3140 = vsub.s32 0, %v3139
        %v3141 = vrot.slane %v3136, %v3140
        %3143 = vmatprep.subr.mxu0 0.0
        %3144 = vmatpush1.msra.mxu0 %v3104
        %3145 = vmatprep.subr.mxu0 0.0
        %3146 = vmatpush1.msra.mxu0 %v3105
        %3147 = vmatprep.subr.mxu0 0.0
        %3148 = vmatpush1.msra.mxu0 %v3106
        %3149 = vmatprep.subr.mxu0 0.0
        %3150 = vmatpush1.msra.mxu0 %v3107
        %3151 = vmatprep.subr.mxu0 0.0
        %3152 = vmatpush1.msra.mxu0 %v3108
        %3153 = vmatprep.subr.mxu0 0.0
        %3154 = vmatpush1.msra.mxu0 %v3109
        %3155 = vmatprep.subr.mxu0 0.0
        %3156 = vmatpush1.msra.mxu0 %v3110
        %3157 = vmatprep.subr.mxu0 0.0
        %3158 = vmatpush1.msra.mxu0 %v3111
        %3159 = vmatprep.subr.mxu0 0.0
        %3160 = vmatpush1.msra.mxu0 %v3112
        %3161 = vmatprep.subr.mxu0 0.0
        %3162 = vmatpush1.msra.mxu0 %v3113
        %3163 = vmatprep.subr.mxu0 0.0
        %3164 = vmatpush1.msra.mxu0 %v3114
        %3165 = vmatprep.subr.mxu0 0.0
        %3166 = vmatpush1.msra.mxu0 %v3115
        %3167 = vmatprep.subr.mxu0 0.0
        %3168 = vmatpush1.msra.mxu0 %v3116
        %3169 = vmatprep.subr.mxu0 0.0
        %3170 = vmatpush1.msra.mxu0 %v3117
        %3171 = vmatprep.subr.mxu0 0.0
        %3172 = vmatpush1.msra.mxu0 %v3118
        %3173 = vmatprep.subr.mxu0 0.0
        %3174 = vmatpush1.msra.mxu0 %v3119
        %3175 = vmatprep.subr.mxu0 0.0
        %3176 = vmatpush1.msra.mxu0 %v3120
        %3177 = vmatprep.subr.mxu0 0.0
        %3178 = vmatpush1.msra.mxu0 %v3121
        %3179 = vmatprep.subr.mxu0 0.0
        %3180 = vmatpush1.msra.mxu0 %v3122
        %3181 = vmatprep.subr.mxu0 0.0
        %3182 = vmatpush1.msra.mxu0 %v3123
        %3183 = vmatprep.subr.mxu0 0.0
        %3184 = vmatpush1.msra.mxu0 %v3124
        %3185 = vmatprep.subr.mxu0 0.0
        %3186 = vmatpush1.msra.mxu0 %v3125
        %3187 = vmatprep.subr.mxu0 0.0
        %3188 = vmatpush1.msra.mxu0 %v3126
        %3189 = vmatprep.subr.mxu0 0.0
        %3190 = vmatpush1.msra.mxu0 %v3127
        %3191 = vmatprep.subr.mxu0 0.0
        %3192 = vmatpush1.msra.mxu0 %v3128
        %3193 = vmatprep.subr.mxu0 0.0
        %3194 = vmatpush1.msra.mxu0 %v3129
        %3195 = vmatprep.subr.mxu0 0.0
        %3196 = vmatpush1.msra.mxu0 %v3130
        %3197 = vmatprep.subr.mxu0 0.0
        %3198 = vmatpush1.msra.mxu0 %v3131
        %3199 = vmatprep.subr.mxu0 0.0
        %3200 = vmatpush1.msra.mxu0 %v3132
        %3201 = vmatprep.subr.mxu0 0.0
        %3202 = vmatpush1.msra.mxu0 %v3133
        %3203 = vmatprep.subr.mxu0 0.0
        %3204 = vmatpush1.msra.mxu0 %v3134
        %3205 = vmatprep.subr.mxu0 0.0
        %3206 = vmatpush1.msra.mxu0 %v3135
        %3207 = vmatprep.mubr.f32.mxu0 %v3103
        %3208 = vmatmul.mubr.f32.gmra.mrb[0].mxu0 %v3102
        %v3209 = vpop.f32.mrb[0].mxu0
        %v3210 = vadd.f32 %v3141, %v3209
        %v3211 = vpop.f32.mrb[0].mxu0
        %3212 = vdwg.mxu0
        %v3213 = vadd.f32 %v2945, %v3210
        %3214 = vst [vmem:[%s836] sm:$0xff] %v3213
        %p3215 = scmp.eq.s32.totalorder %s34, 1
        // Predicated region
        $region97: #{tpu_custom_call.1} parent=91 // pred_check
          %p3216 = pneg %p3215
        $region98: #{tpu_custom_call.1} parent=91 // pred_check_branch
          %3218 = sbr.rel (%p3216) target = $region100
        $region99: #{tpu_custom_call.1} parent=91 // pred_region
          %s3219 = scalar_lea.vmem [#allocation3], %s835
          %3220 = vst [vmem:[%s3219] sm:$0xff] %v3213
        $region100: #{tpu_custom_call.1} parent=91 // pred_fallthru
          _
        // Predicated region
        $region101: #{tpu_custom_call.1} parent=91 // pred_check
          %p3221 = pneg %p513
        $region102: #{tpu_custom_call.1} parent=91 // pred_check_branch
          %3223 = sbr.rel (%p3221) target = $region104
        $region103: #{tpu_custom_call.1} parent=91 // pred_region
          %s3225 = ssub.s32 256, 256
          %3226 = vsyncadd [#allocation4], %s3225
          %s3227 = sshll.u32 [#allocation3], 4
          %s3228 = int_to_ptr.vmem [resolvable:$true] %s3227
          %3233 = dma.vmem_to_hbm [thread:$0]  %s3228, 256, %s18, [#allocation4], 128, 128, 8
        $region104: #{tpu_custom_call.1} parent=91 // pred_fallthru
          _
        // Predicated region
        $region105: #{tpu_custom_call.1} parent=91 // pred_check
          %p3234 = pneg %p513
        $region106: #{tpu_custom_call.1} parent=91 // pred_check_branch
          %3236 = sbr.rel (%p3234) target = $region108
        $region107: #{tpu_custom_call.1} parent=91 // pred_region
          %3237 = dma.done [#allocation4], 256
        $region108: #{tpu_custom_call.1} parent=91 // pred_fallthru
          _
      $region92: #{tpu_custom_call.1} parent=5 // pred_fallthru
        _
      %p3238 = scmp.le.s32.totalorder 2, %s25
      // Predicated region
      $region109: #{tpu_custom_call.1} parent=5 // pred_check
        %p3239 = pneg %p3238
      $region110: #{tpu_custom_call.1} parent=5 // pred_check_branch
        %3241 = sbr.rel (%p3239) target = $region112
      $region111: #{tpu_custom_call.1} parent=5 // pred_region
        %s3242 = ssub.s32 %s25, 2
      $region112: #{tpu_custom_call.1} parent=5 // pred_fallthru
        _
    $region6: #{tpu_custom_call.1} parent=1 // loop_footer
      %s29 = sadd.s32 1, %s25
    $region7: #{tpu_custom_call.1} parent=1 // loop_footer_branch
      %24 = sbr.rel target = $region3
    $region8: #{tpu_custom_call.1} parent=1 // loop_exit
      _
    %3243 = vsyncpa [#allocation4], 1
    %s3244 = scalar_lea.sflag [#allocation4], 1
    %3245 = vsyncpa %s3244, 1

</llo_original>
